<compile_context>
chip_gen: v7x
topology: tpu7x:2x2x1
jax: 0.10.0
libtpu: 0.0.40
codegen_flags: <defaults>
</compile_context>

<pallas_src>
import functools

import jax
import jax.numpy as jnp
from jax.experimental import pallas as pl
from jax.experimental.pallas import tpu as pltpu

LN_EPS = 1e-5        # nn.LayerNorm default
NEG_INF = -1e30      # finite "minus infinity" for the online-softmax carry


# ----------------------------------------------------------------------------
# In-kernel math helpers
# ----------------------------------------------------------------------------
def _layernorm(v, w, b):
    """FP32_Layernorm: statistics and affine in f32. Returns f32."""
    v = v.astype(jnp.float32)
    mu = jnp.mean(v, axis=-1, keepdims=True)
    var = jnp.mean(jnp.square(v - mu), axis=-1, keepdims=True)
    return (v - mu) * jax.lax.rsqrt(var + LN_EPS) * w.astype(jnp.float32) \
        + b.astype(jnp.float32)


def _silu_kernel(v):
    """FP32_SiLU with the sigmoid reciprocal on the EUP. Returns f32."""
    v = v.astype(jnp.float32)
    return v * pl.reciprocal(1.0 + jnp.exp(-v), approx=True)


def _split_heads(x2d, num_heads):
    """(T, H) -> (num_heads, T, head_dim): heads-leading layout for batched MXU."""
    t, h = x2d.shape
    hd = h // num_heads
    return jnp.transpose(x2d.reshape(t, num_heads, hd), (1, 0, 2))


def _merge_heads(x3d):
    """(num_heads, T, head_dim) -> (T, H)."""
    nh, t, hd = x3d.shape
    return jnp.transpose(x3d, (1, 0, 2)).reshape(t, nh * hd)


def _cross_attn_direct(qh, k, v):
    """Head-batched attention with a direct softmax (short text KV).

    qh: (nh, TN, hd) compute dtype (already scaled); k/v: (nh, M, hd).
    Returns (nh, TN, hd) f32.
    """
    s = jnp.einsum('hqd,hkd->hqk', qh, k, preferred_element_type=jnp.float32)
    s = s - jnp.max(s, axis=-1, keepdims=True)
    p = jnp.exp(s)
    p = p * pl.reciprocal(jnp.sum(p, axis=-1, keepdims=True), approx=True)
    return jnp.einsum('hqk,hkd->hqd', p.astype(v.dtype), v,
                      preferred_element_type=jnp.float32)


def _flash_self_attn(qh, k_ref, v_ref, kv_chunk):
    """Flash-style attention: online softmax over KV chunks held in VMEM scratch.

    qh: (nh, TN, hd) compute dtype (already scaled);
    k_ref/v_ref: VMEM refs of shape (nh, N, hd).  Returns (nh, TN, hd) f32.
    """
    nh, tn, hd = qh.shape
    n_kv = k_ref.shape[1]
    n_chunks = n_kv // kv_chunk

    def body(i, carry):
        m, l, acc = carry
        start = i * kv_chunk
        if not isinstance(start, int):
            start = pl.multiple_of(start, kv_chunk)
        kc = k_ref[:, pl.ds(start, kv_chunk), :]                     # (nh, KC, hd)
        vc = v_ref[:, pl.ds(start, kv_chunk), :]
        s = jnp.einsum('hqd,hkd->hqk', qh, kc,
                       preferred_element_type=jnp.float32)           # (nh, TN, KC)
        m_new = jnp.maximum(m, jnp.max(s, axis=-1, keepdims=True))
        alpha = jnp.exp(m - m_new)
        p = jnp.exp(s - m_new)
        l_new = alpha * l + jnp.sum(p, axis=-1, keepdims=True)
        acc_new = alpha * acc + jnp.einsum('hqk,hkd->hqd', p.astype(vc.dtype), vc,
                                           preferred_element_type=jnp.float32)
        return m_new, l_new, acc_new

    init = (jnp.full((nh, tn, 1), NEG_INF, jnp.float32),
            jnp.zeros((nh, tn, 1), jnp.float32),
            jnp.zeros((nh, tn, hd), jnp.float32))
    if n_chunks == 1:
        m, l, acc = body(0, init)
    else:
        m, l, acc = jax.lax.fori_loop(0, n_chunks, body, init,
                                      unroll=(n_chunks <= 4))
    return acc * pl.reciprocal(l, approx=True)                       # (nh, TN, hd)


# ----------------------------------------------------------------------------
# Pallas kernel: grid = (batch, token_tile)
# ----------------------------------------------------------------------------
def adpdit_block_kernel(num_heads, kv_chunk,
                        # inputs
                        x_ref, c_ref, ts_ref,
                        mod_w, mod_b, ln1_w, ln1_b,
                        wq1, bq1, wk1, bk1, wv1, bv1, p1_w, p1_b,
                        ln3_w, ln3_b, wq2, bq2, wk2, bk2, wv2, bv2, p2_w, p2_b,
                        ln2_w, ln2_b, fc1_w, fc1_b, fc2_w, fc2_b,
                        # output
                        out_ref,
                        # scratch (persist across token tiles of one batch elem)
                        shift_scr, ks_scr, vs_scr, kx_scr, vx_scr):
    t = pl.program_id(1)
    cdt = x_ref.dtype
    tn, h_dim = out_ref.shape

    # ---- hoisted per-batch-element work (token-tile axis is innermost) ------
    @pl.when(t == 0)
    def _():
        # shift_msa = Linear(FP32_SiLU(c))
        c_row = c_ref[...]                                            # (1, C)
        shift = (jnp.dot(_silu_kernel(c_row).astype(cdt), mod_w[...],
                         preferred_element_type=jnp.float32) + mod_b[...])
        shift_scr[...] = shift                                        # (1, H) f32

        # self-attention K/V over the FULL sequence: h1 = LN1(x) + shift
        h1 = (_layernorm(x_ref[...], ln1_w[...], ln1_b[...]) + shift).astype(cdt)
        k_full = (jnp.dot(h1, wk1[...], preferred_element_type=jnp.float32)
                  + bk1[...]).astype(cdt)
        v_full = (jnp.dot(h1, wv1[...], preferred_element_type=jnp.float32)
                  + bv1[...]).astype(cdt)
        ks_scr[...] = _split_heads(k_full, num_heads)                 # (nh, N, hd)
        vs_scr[...] = _split_heads(v_full, num_heads)

        # cross-attention K/V from text states (computed once per batch element)
        ts = ts_ref[...]
        kx = (jnp.dot(ts, wk2[...], preferred_element_type=jnp.float32)
              + bk2[...]).astype(cdt)
        vx = (jnp.dot(ts, wv2[...], preferred_element_type=jnp.float32)
              + bv2[...]).astype(cdt)
        kx_scr[...] = _split_heads(kx, num_heads)                     # (nh, M, hd)
        vx_scr[...] = _split_heads(vx, num_heads)

    # ---- per token tile -----------------------------------------------------
    start = pl.multiple_of(t * tn, tn)
    x_t = x_ref[pl.ds(start, tn), :]                                  # (TN, H) cdt
    shift = shift_scr[...]                                            # (1, H) f32

    # x = x + attn1(norm1(x) + shift_msa)        (scale folded into wq1/bq1)
    h1 = (_layernorm(x_t, ln1_w[...], ln1_b[...]) + shift).astype(cdt)
    q1 = (jnp.dot(h1, wq1[...], preferred_element_type=jnp.float32)
          + bq1[...]).astype(cdt)
    a1 = _flash_self_attn(_split_heads(q1, num_heads), ks_scr, vs_scr, kv_chunk)
    a1 = _merge_heads(a1.astype(cdt))                                 # (TN, H) cdt
    a1 = jnp.dot(a1, p1_w[...], preferred_element_type=jnp.float32) + p1_b[...]
    x1 = x_t.astype(jnp.float32) + a1

    # x = x + attn2(norm3(x), text_states)       (scale folded into wq2/bq2)
    h2 = _layernorm(x1, ln3_w[...], ln3_b[...]).astype(cdt)
    q2 = (jnp.dot(h2, wq2[...], preferred_element_type=jnp.float32)
          + bq2[...]).astype(cdt)
    a2 = _cross_attn_direct(_split_heads(q2, num_heads), kx_scr[...], vx_scr[...])
    a2 = _merge_heads(a2.astype(cdt))                                 # (TN, H) cdt
    a2 = jnp.dot(a2, p2_w[...], preferred_element_type=jnp.float32) + p2_b[...]
    x2 = x1 + a2

    # x = x + mlp(norm2(x))
    h3 = _layernorm(x2, ln2_w[...], ln2_b[...]).astype(cdt)
    m = jnp.dot(h3, fc1_w[...], preferred_element_type=jnp.float32) + fc1_b[...]
    m = _silu_kernel(m).astype(cdt)
    m = jnp.dot(m, fc2_w[...], preferred_element_type=jnp.float32) + fc2_b[...]
    out_ref[...] = (x2 + m).astype(out_ref.dtype)


# ----------------------------------------------------------------------------
# Wrapper
# ----------------------------------------------------------------------------
def _pick_tile(n, target):
    """Largest multiple of 8 that divides n and is <= target, else n itself."""
    if n <= target:
        return n
    for t in range(target - (target % 8), 7, -8):
        if n % t == 0:
            return t
    return n


def adpdit_block(x, c, text_states, params, num_heads,
                 q_tile=256, kv_chunk=512):
    B, N, H = x.shape
    M, T = text_states.shape[1], text_states.shape[2]
    c3 = c.reshape(B, 1, -1)
    C = c3.shape[-1]

    (mod_w, mod_b, ln1_w, ln1_b, qkv_w, qkv_b, p1_w, p1_b,
     ln3_w, ln3_b, q2_w, q2_b, kv_w, kv_b, p2_w, p2_b,
     ln2_w, ln2_b, fc1_w, fc1_b, fc2_w, fc2_b) = params

    hd = H // num_heads
    scale = float(hd) ** -0.5

    # Split fused projections; fold the attention scale into the Q weights.
    # (In production this folding would be done once, outside the hot path.)
    wq1 = qkv_w[:, :H] * scale
    bq1 = qkv_b[:, :H] * scale
    wk1 = qkv_w[:, H:2 * H]
    bk1 = qkv_b[:, H:2 * H]
    wv1 = qkv_w[:, 2 * H:]
    bv1 = qkv_b[:, 2 * H:]
    wq2 = q2_w * scale
    bq2 = q2_b * scale
    wk2 = kv_w[:, :H]
    bk2 = kv_b[:, :H]
    wv2 = kv_w[:, H:]
    bv2 = kv_b[:, H:]

    weights = [mod_w, mod_b, ln1_w, ln1_b,
               wq1, bq1, wk1, bk1, wv1, bv1, p1_w, p1_b,
               ln3_w, ln3_b, wq2, bq2, wk2, bk2, wv2, bv2, p2_w, p2_b,
               ln2_w, ln2_b, fc1_w, fc1_b, fc2_w, fc2_b]

    TN = _pick_tile(N, q_tile)
    KC = _pick_tile(N, kv_chunk)
    n_tiles = N // TN
    mlp_hidden = fc1_w.shape[1]

    # Rough explicit VMEM budget (blocks are double-buffered by default).
    itemsize = x.dtype.itemsize
    hd_pad = -(-hd // 128) * 128                 # lane padding of head_dim
    weight_bytes = sum(int(w.size) * w.dtype.itemsize for w in weights)
    block_bytes = (N * H + C + M * T + TN * H) * itemsize
    scratch_bytes = 128 * 4 + 2 * num_heads * (N + M) * hd_pad * itemsize
    interm_bytes = (6 * TN * max(mlp_hidden, H) * 4
                    + 2 * num_heads * TN * max(KC, M) * 4
                    + 2 * num_heads * TN * hd_pad * 4)
    est = 2 * (weight_bytes + block_bytes) + scratch_bytes + interm_bytes
    vmem_limit = int(min(64 * 1024 * 1024, max(2 * est, 32 * 1024 * 1024)))

    def const_spec(shape):
        nd = len(shape)
        return pl.BlockSpec(shape, lambda b, t, _nd=nd: (0,) * _nd)

    in_specs = [
        pl.BlockSpec((None, N, H), lambda b, t: (b, 0, 0)),   # x (full sequence)
        pl.BlockSpec((None, 1, C), lambda b, t: (b, 0, 0)),   # c (as (B,1,C))
        pl.BlockSpec((None, M, T), lambda b, t: (b, 0, 0)),   # text_states
    ] + [const_spec(w.shape) for w in weights]

    return pl.pallas_call(
        functools.partial(adpdit_block_kernel, num_heads, KC),
        out_shape=jax.ShapeDtypeStruct((B, N, H), x.dtype),
        grid_spec=pltpu.PrefetchScalarGridSpec(
            num_scalar_prefetch=0,
            grid=(B, n_tiles),
            in_specs=in_specs,
            out_specs=pl.BlockSpec((None, TN, H), lambda b, t: (b, t, 0)),
            scratch_shapes=[
                pltpu.VMEM((1, H), jnp.float32),             # shift_msa
                pltpu.VMEM((num_heads, N, hd), x.dtype),     # self-attn K (heads-leading)
                pltpu.VMEM((num_heads, N, hd), x.dtype),     # self-attn V
                pltpu.VMEM((num_heads, M, hd), x.dtype),     # cross-attn K
                pltpu.VMEM((num_heads, M, hd), x.dtype),     # cross-attn V
            ],
        ),
        compiler_params=pltpu.CompilerParams(
            dimension_semantics=("parallel", "arbitrary"),
            vmem_limit_bytes=vmem_limit),
    )(x, c3, text_states, *weights)


# ----------------------------------------------------------------------------
# Pure-JAX reference (exact math) for correctness check.
# ----------------------------------------------------------------------------
def adpdit_block_reference(x, c, ts, params, num_heads):
    (mod_w, mod_b, ln1_w, ln1_b, qkv_w, qkv_b, p1_w, p1_b,
     ln3_w, ln3_b, q2_w, q2_b, kv_w, kv_b, p2_w, p2_b,
     ln2_w, ln2_b, fc1_w, fc1_b, fc2_w, fc2_b) = [
        jnp.asarray(p, jnp.float32) for p in params]
    H = x.shape[-1]
    hd = H // num_heads
    scale = float(hd) ** -0.5

    def silu(v):
        return v * jax.nn.sigmoid(v)

    def ln(v, w, b):
        mu = jnp.mean(v, -1, keepdims=True)
        var = jnp.mean(jnp.square(v - mu), -1, keepdims=True)
        return (v - mu) * jax.lax.rsqrt(var + LN_EPS) * w + b

    def mha(q, k, v):
        B, Nq, _ = q.shape
        Mk = k.shape[1]
        qh = q.reshape(B, Nq, num_heads, hd)
        kh = k.reshape(B, Mk, num_heads, hd)
        vh = v.reshape(B, Mk, num_heads, hd)
        s = jnp.einsum('bqhd,bkhd->bhqk', qh, kh) * scale
        p = jax.nn.softmax(s, axis=-1)
        o = jnp.einsum('bhqk,bkhd->bqhd', p, vh)
        return o.reshape(B, Nq, H)

    xf = x.astype(jnp.float32)
    cf = c.astype(jnp.float32)
    tf = ts.astype(jnp.float32)

    shift = (jnp.dot(silu(cf), mod_w) + mod_b)[:, None, :]           # (B,1,H)

    h1 = ln(xf, ln1_w, ln1_b) + shift
    qkv = jnp.dot(h1, qkv_w) + qkv_b
    q, k, v = qkv[..., :H], qkv[..., H:2 * H], qkv[..., 2 * H:]
    xf = xf + (jnp.dot(mha(q, k, v), p1_w) + p1_b)

    h2 = ln(xf, ln3_w, ln3_b)
    q2 = jnp.dot(h2, q2_w) + q2_b
    kv2 = jnp.dot(tf, kv_w) + kv_b
    xf = xf + (jnp.dot(mha(q2, kv2[..., :H], kv2[..., H:]), p2_w) + p2_b)

    h3 = ln(xf, ln2_w, ln2_b)
    m = jnp.dot(h3, fc1_w) + fc1_b
    xf = xf + (jnp.dot(silu(m), fc2_w) + fc2_b)
    return xf.astype(x.dtype)


# ----------------------------------------------------------------------------
# Deterministic parameter init (shapes follow ADPDiTBlock.__init__).
# ----------------------------------------------------------------------------
def init_params(key, hidden, c_emb, text_dim, mlp_hidden):
    ks = jax.random.split(key, 22)

    def w(k, shape):
        return (0.02 * jax.random.normal(k, shape)).astype(jnp.float32)

    def b(k, shape):
        return (0.02 * jax.random.normal(k, shape)).astype(jnp.float32)

    def g(k, shape):  # layernorm gain ~ 1
        return (1.0 + 0.05 * jax.random.normal(k, shape)).astype(jnp.float32)

    params = [
        w(ks[0], (c_emb, hidden)),         b(ks[1], (1, hidden)),         # default_modulation Linear
        g(ks[2], (1, hidden)),             b(ks[3], (1, hidden)),         # norm1
        w(ks[4], (hidden, 3 * hidden)),    b(ks[5], (1, 3 * hidden)),     # attn1 qkv
        w(ks[6], (hidden, hidden)),        b(ks[7], (1, hidden)),         # attn1 proj
        g(ks[8], (1, hidden)),             b(ks[9], (1, hidden)),         # norm3
        w(ks[10], (hidden, hidden)),       b(ks[11], (1, hidden)),        # attn2 q
        w(ks[12], (text_dim, 2 * hidden)), b(ks[13], (1, 2 * hidden)),    # attn2 kv
        w(ks[14], (hidden, hidden)),       b(ks[15], (1, hidden)),        # attn2 proj
        g(ks[16], (1, hidden)),            b(ks[17], (1, hidden)),        # norm2
        w(ks[18], (hidden, mlp_hidden)),   b(ks[19], (1, mlp_hidden)),    # mlp fc1
        w(ks[20], (mlp_hidden, hidden)),   b(ks[21], (1, hidden)),        # mlp fc2
    ]
    return params


if __name__ == "__main__":
    B, N, HIDDEN = 2, 8, 32
    NUM_HEADS = 4
    C_EMB = 32
    TEXT_DIM = 64
    TEXT_LEN = 8
    MLP_HIDDEN = int(HIDDEN * 4.0)

    key = jax.random.PRNGKey(0)
    kx, kc, kt, kp = jax.random.split(key, 4)
    x = jax.random.normal(kx, (B, N, HIDDEN), dtype=jnp.float32)
    c = jax.random.normal(kc, (B, C_EMB), dtype=jnp.float32)
    text_states = jax.random.normal(kt, (B, TEXT_LEN, TEXT_DIM), dtype=jnp.float32)
    params = init_params(kp, HIDDEN, C_EMB, TEXT_DIM, MLP_HIDDEN)

    out = adpdit_block(x, c, text_states, params, NUM_HEADS)
    out = jax.block_until_ready(out)

    ref = jax.block_until_ready(
        adpdit_block_reference(x, c, text_states, params, NUM_HEADS))
    assert out.shape == (B, N, HIDDEN) and out.dtype == x.dtype
    assert jnp.allclose(out, ref, atol=1e-2, rtol=1e-2), \
        f"max abs err {float(jnp.max(jnp.abs(out - ref)))}"

    print("KERNEL_OK")
</pallas_src>

<mosaic_0001>
module attributes {stable_mosaic.version = 11 : i64} {
  func.func @adpdit_block_kernel(%arg0: i32, %arg1: i32, %arg2: memref<1x8x32xf32, #tpu.memory_space<vmem>>, %arg3: memref<1x1x32xf32, #tpu.memory_space<vmem>>, %arg4: memref<1x8x64xf32, #tpu.memory_space<vmem>>, %arg5: memref<32x32xf32, #tpu.memory_space<vmem>>, %arg6: memref<1x32xf32, #tpu.memory_space<vmem>>, %arg7: memref<1x32xf32, #tpu.memory_space<vmem>>, %arg8: memref<1x32xf32, #tpu.memory_space<vmem>>, %arg9: memref<32x32xf32, #tpu.memory_space<vmem>>, %arg10: memref<1x32xf32, #tpu.memory_space<vmem>>, %arg11: memref<32x32xf32, #tpu.memory_space<vmem>>, %arg12: memref<1x32xf32, #tpu.memory_space<vmem>>, %arg13: memref<32x32xf32, #tpu.memory_space<vmem>>, %arg14: memref<1x32xf32, #tpu.memory_space<vmem>>, %arg15: memref<32x32xf32, #tpu.memory_space<vmem>>, %arg16: memref<1x32xf32, #tpu.memory_space<vmem>>, %arg17: memref<1x32xf32, #tpu.memory_space<vmem>>, %arg18: memref<1x32xf32, #tpu.memory_space<vmem>>, %arg19: memref<32x32xf32, #tpu.memory_space<vmem>>, %arg20: memref<1x32xf32, #tpu.memory_space<vmem>>, %arg21: memref<64x32xf32, #tpu.memory_space<vmem>>, %arg22: memref<1x32xf32, #tpu.memory_space<vmem>>, %arg23: memref<64x32xf32, #tpu.memory_space<vmem>>, %arg24: memref<1x32xf32, #tpu.memory_space<vmem>>, %arg25: memref<32x32xf32, #tpu.memory_space<vmem>>, %arg26: memref<1x32xf32, #tpu.memory_space<vmem>>, %arg27: memref<1x32xf32, #tpu.memory_space<vmem>>, %arg28: memref<1x32xf32, #tpu.memory_space<vmem>>, %arg29: memref<32x128xf32, #tpu.memory_space<vmem>>, %arg30: memref<1x128xf32, #tpu.memory_space<vmem>>, %arg31: memref<128x32xf32, #tpu.memory_space<vmem>>, %arg32: memref<1x32xf32, #tpu.memory_space<vmem>>, %arg33: memref<1x8x32xf32, #tpu.memory_space<vmem>>, %arg34: memref<1x32xf32, #tpu.memory_space<vmem>>, %arg35: memref<4x8x8xf32, #tpu.memory_space<vmem>>, %arg36: memref<4x8x8xf32, #tpu.memory_space<vmem>>, %arg37: memref<4x8x8xf32, #tpu.memory_space<vmem>>, %arg38: memref<4x8x8xf32, #tpu.memory_space<vmem>>) attributes {dimension_semantics = [#tpu.dimension_semantics<parallel>, #tpu.dimension_semantics<arbitrary>], iteration_bounds = array<i64: 2, 1>, scalar_prefetch = 0 : i64, scratch_operands = 5 : i64, tpu.core_type = #tpu.core_type<tc>, window_params = [{transform_indices = @transform_0, window_bounds = array<i64: 1, 8, 32>}, {transform_indices = @transform_1, window_bounds = array<i64: 1, 1, 32>}, {transform_indices = @transform_2, window_bounds = array<i64: 1, 8, 64>}, {pipeline_mode = #tpu.pipeline_mode<synchronous>, transform_indices = @transform_3, window_bounds = array<i64: 32, 32>}, {pipeline_mode = #tpu.pipeline_mode<synchronous>, transform_indices = @transform_4, window_bounds = array<i64: 1, 32>}, {pipeline_mode = #tpu.pipeline_mode<synchronous>, transform_indices = @transform_5, window_bounds = array<i64: 1, 32>}, {pipeline_mode = #tpu.pipeline_mode<synchronous>, transform_indices = @transform_6, window_bounds = array<i64: 1, 32>}, {pipeline_mode = #tpu.pipeline_mode<synchronous>, transform_indices = @transform_7, window_bounds = array<i64: 32, 32>}, {pipeline_mode = #tpu.pipeline_mode<synchronous>, transform_indices = @transform_8, window_bounds = array<i64: 1, 32>}, {pipeline_mode = #tpu.pipeline_mode<synchronous>, transform_indices = @transform_9, window_bounds = array<i64: 32, 32>}, {pipeline_mode = #tpu.pipeline_mode<synchronous>, transform_indices = @transform_10, window_bounds = array<i64: 1, 32>}, {pipeline_mode = #tpu.pipeline_mode<synchronous>, transform_indices = @transform_11, window_bounds = array<i64: 32, 32>}, {pipeline_mode = #tpu.pipeline_mode<synchronous>, transform_indices = @transform_12, window_bounds = array<i64: 1, 32>}, {pipeline_mode = #tpu.pipeline_mode<synchronous>, transform_indices = @transform_13, window_bounds = array<i64: 32, 32>}, {pipeline_mode = #tpu.pipeline_mode<synchronous>, transform_indices = @transform_14, window_bounds = array<i64: 1, 32>}, {pipeline_mode = #tpu.pipeline_mode<synchronous>, transform_indices = @transform_15, window_bounds = array<i64: 1, 32>}, {pipeline_mode = #tpu.pipeline_mode<synchronous>, transform_indices = @transform_16, window_bounds = array<i64: 1, 32>}, {pipeline_mode = #tpu.pipeline_mode<synchronous>, transform_indices = @transform_17, window_bounds = array<i64: 32, 32>}, {pipeline_mode = #tpu.pipeline_mode<synchronous>, transform_indices = @transform_18, window_bounds = array<i64: 1, 32>}, {pipeline_mode = #tpu.pipeline_mode<synchronous>, transform_indices = @transform_19, window_bounds = array<i64: 64, 32>}, {pipeline_mode = #tpu.pipeline_mode<synchronous>, transform_indices = @transform_20, window_bounds = array<i64: 1, 32>}, {pipeline_mode = #tpu.pipeline_mode<synchronous>, transform_indices = @transform_21, window_bounds = array<i64: 64, 32>}, {pipeline_mode = #tpu.pipeline_mode<synchronous>, transform_indices = @transform_22, window_bounds = array<i64: 1, 32>}, {pipeline_mode = #tpu.pipeline_mode<synchronous>, transform_indices = @transform_23, window_bounds = array<i64: 32, 32>}, {pipeline_mode = #tpu.pipeline_mode<synchronous>, transform_indices = @transform_24, window_bounds = array<i64: 1, 32>}, {pipeline_mode = #tpu.pipeline_mode<synchronous>, transform_indices = @transform_25, window_bounds = array<i64: 1, 32>}, {pipeline_mode = #tpu.pipeline_mode<synchronous>, transform_indices = @transform_26, window_bounds = array<i64: 1, 32>}, {pipeline_mode = #tpu.pipeline_mode<synchronous>, transform_indices = @transform_27, window_bounds = array<i64: 32, 128>}, {pipeline_mode = #tpu.pipeline_mode<synchronous>, transform_indices = @transform_28, window_bounds = array<i64: 1, 128>}, {pipeline_mode = #tpu.pipeline_mode<synchronous>, transform_indices = @transform_29, window_bounds = array<i64: 128, 32>}, {pipeline_mode = #tpu.pipeline_mode<synchronous>, transform_indices = @transform_30, window_bounds = array<i64: 1, 32>}, {transform_indices = @transform_31, window_bounds = array<i64: 1, 8, 32>}]} {
    %c0_i32 = arith.constant 0 : i32
    %0 = arith.cmpi eq, %arg1, %c0_i32 : i32
    %1 = arith.extui %0 : i1 to i32
    %c0_i32_0 = arith.constant 0 : i32
    %2 = arith.cmpi ne, %1, %c0_i32_0 : i32
    scf.if %2 {
      %c0_88 = arith.constant 0 : index
      %c0_89 = arith.constant 0 : index
      %c0_90 = arith.constant 0 : index
      %173 = vector.load %arg3[%c0_88, %c0_89, %c0_90] : memref<1x1x32xf32, #tpu.memory_space<vmem>>, vector<1x1x32xf32>
      %174 = vector.shape_cast %173 : vector<1x1x32xf32> to vector<1x32xf32>
      %cst_91 = arith.constant 0.000000e+00 : f32
      %175 = vector.broadcast %cst_91 : f32 to vector<1x32xf32>
      %176 = arith.subf %175, %174 : vector<1x32xf32>
      %177 = math.exp %176 : vector<1x32xf32>
      %cst_92 = arith.constant 1.000000e+00 : f32
      %178 = vector.broadcast %cst_92 : f32 to vector<1x32xf32>
      %179 = arith.addf %178, %177 : vector<1x32xf32>
      %180 = tpu.reciprocal %179 {approx = true} : vector<1x32xf32> -> vector<1x32xf32>
      %181 = arith.mulf %174, %180 : vector<1x32xf32>
      %c0_93 = arith.constant 0 : index
      %c0_94 = arith.constant 0 : index
      %182 = vector.load %arg5[%c0_93, %c0_94] : memref<32x32xf32, #tpu.memory_space<vmem>>, vector<32x32xf32>
      %cst_95 = arith.constant dense<0.000000e+00> : vector<1x32xf32>
      %183 = tpu.matmul %181, %182, %cst_95 {dimension_numbers = #tpu.dot_dimension_numbers<[1], [0], [0], [1], [0, 0, 1, 1], [], []>} : vector<1x32xf32>, vector<32x32xf32>, vector<1x32xf32> -> vector<1x32xf32>
      %c0_96 = arith.constant 0 : index
      %c0_97 = arith.constant 0 : index
      %184 = vector.load %arg6[%c0_96, %c0_97] : memref<1x32xf32, #tpu.memory_space<vmem>>, vector<1x32xf32>
      %185 = arith.addf %183, %184 : vector<1x32xf32>
      %c0_98 = arith.constant 0 : index
      %c0_99 = arith.constant 0 : index
      %186 = vector.load %arg34[%c0_98, %c0_99] : memref<1x32xf32, #tpu.memory_space<vmem>>, vector<1x32xf32>
      tpu.vector_store %arg34[%c0_98, %c0_99], %185 {strides = array<i32>} : memref<1x32xf32, #tpu.memory_space<vmem>>, vector<1x32xf32>,
      %c0_100 = arith.constant 0 : index
      %c0_101 = arith.constant 0 : index
      %c0_102 = arith.constant 0 : index
      %187 = vector.load %arg2[%c0_100, %c0_101, %c0_102] : memref<1x8x32xf32, #tpu.memory_space<vmem>>, vector<1x8x32xf32>
      %188 = vector.shape_cast %187 : vector<1x8x32xf32> to vector<8x32xf32>
      %c0_103 = arith.constant 0 : index
      %c0_104 = arith.constant 0 : index
      %189 = vector.load %arg7[%c0_103, %c0_104] : memref<1x32xf32, #tpu.memory_space<vmem>>, vector<1x32xf32>
      %c0_105 = arith.constant 0 : index
      %c0_106 = arith.constant 0 : index
      %190 = vector.load %arg8[%c0_105, %c0_106] : memref<1x32xf32, #tpu.memory_space<vmem>>, vector<1x32xf32>
      %cst_107 = arith.constant dense<0.000000e+00> : vector<8xf32>
      %191 = vector.multi_reduction <add>, %188, %cst_107 [1] : vector<8x32xf32> to vector<8xf32>
      %192 = vector.shape_cast %191 : vector<8xf32> to vector<8x1xf32>
      %cst_108 = arith.constant 3.200000e+01 : f32
      %193 = vector.broadcast %cst_108 : f32 to vector<8x1xf32>
      %194 = arith.divf %192, %193 : vector<8x1xf32>
      %195 = vector.broadcast %194 : vector<8x1xf32> to vector<8x32xf32>
      %196 = arith.subf %188, %195 : vector<8x32xf32>
      %197 = arith.mulf %196, %196 : vector<8x32xf32>
      %cst_109 = arith.constant dense<0.000000e+00> : vector<8xf32>
      %198 = vector.multi_reduction <add>, %197, %cst_109 [1] : vector<8x32xf32> to vector<8xf32>
      %199 = vector.shape_cast %198 : vector<8xf32> to vector<8x1xf32>
      %cst_110 = arith.constant 3.200000e+01 : f32
      %200 = vector.broadcast %cst_110 : f32 to vector<8x1xf32>
      %201 = arith.divf %199, %200 : vector<8x1xf32>
      %202 = vector.broadcast %194 : vector<8x1xf32> to vector<8x32xf32>
      %203 = arith.subf %188, %202 : vector<8x32xf32>
      %cst_111 = arith.constant 9.99999974E-6 : f32
      %204 = vector.broadcast %cst_111 : f32 to vector<8x1xf32>
      %205 = arith.addf %201, %204 : vector<8x1xf32>
      %206 = math.rsqrt %205 : vector<8x1xf32>
      %207 = vector.broadcast %206 : vector<8x1xf32> to vector<8x32xf32>
      %208 = arith.mulf %203, %207 : vector<8x32xf32>
      %209 = vector.broadcast %189 : vector<1x32xf32> to vector<8x32xf32>
      %210 = arith.mulf %208, %209 : vector<8x32xf32>
      %211 = vector.broadcast %190 : vector<1x32xf32> to vector<8x32xf32>
      %212 = arith.addf %210, %211 : vector<8x32xf32>
      %213 = vector.broadcast %185 : vector<1x32xf32> to vector<8x32xf32>
      %214 = arith.addf %212, %213 : vector<8x32xf32>
      %c0_112 = arith.constant 0 : index
      %c0_113 = arith.constant 0 : index
      %215 = vector.load %arg11[%c0_112, %c0_113] : memref<32x32xf32, #tpu.memory_space<vmem>>, vector<32x32xf32>
      %cst_114 = arith.constant dense<0.000000e+00> : vector<8x32xf32>
      %216 = tpu.matmul %214, %215, %cst_114 {dimension_numbers = #tpu.dot_dimension_numbers<[1], [0], [0], [1], [0, 0, 1, 1], [], []>} : vector<8x32xf32>, vector<32x32xf32>, vector<8x32xf32> -> vector<8x32xf32>
      %c0_115 = arith.constant 0 : index
      %c0_116 = arith.constant 0 : index
      %217 = vector.load %arg12[%c0_115, %c0_116] : memref<1x32xf32, #tpu.memory_space<vmem>>, vector<1x32xf32>
      %218 = vector.broadcast %217 : vector<1x32xf32> to vector<8x32xf32>
      %219 = arith.addf %216, %218 : vector<8x32xf32>
      %c0_117 = arith.constant 0 : index
      %c0_118 = arith.constant 0 : index
      %220 = vector.load %arg13[%c0_117, %c0_118] : memref<32x32xf32, #tpu.memory_space<vmem>>, vector<32x32xf32>
      %cst_119 = arith.constant dense<0.000000e+00> : vector<8x32xf32>
      %221 = tpu.matmul %214, %220, %cst_119 {dimension_numbers = #tpu.dot_dimension_numbers<[1], [0], [0], [1], [0, 0, 1, 1], [], []>} : vector<8x32xf32>, vector<32x32xf32>, vector<8x32xf32> -> vector<8x32xf32>
      %c0_120 = arith.constant 0 : index
      %c0_121 = arith.constant 0 : index
      %222 = vector.load %arg14[%c0_120, %c0_121] : memref<1x32xf32, #tpu.memory_space<vmem>>, vector<1x32xf32>
      %223 = vector.broadcast %222 : vector<1x32xf32> to vector<8x32xf32>
      %224 = arith.addf %221, %223 : vector<8x32xf32>
      %225 = vector.shape_cast %219 : vector<8x32xf32> to vector<8x4x8xf32>
      %226 = tpu.transpose %225, [1, 0, 2] : vector<8x4x8xf32> -> vector<4x8x8xf32>
      %c0_122 = arith.constant 0 : index
      %c0_123 = arith.constant 0 : index
      %c0_124 = arith.constant 0 : index
      %227 = vector.load %arg35[%c0_122, %c0_123, %c0_124] : memref<4x8x8xf32, #tpu.memory_space<vmem>>, vector<4x8x8xf32>
      tpu.vector_store %arg35[%c0_122, %c0_123, %c0_124], %226 {strides = array<i32>} : memref<4x8x8xf32, #tpu.memory_space<vmem>>, vector<4x8x8xf32>,
      %228 = vector.shape_cast %224 : vector<8x32xf32> to vector<8x4x8xf32>
      %229 = tpu.transpose %228, [1, 0, 2] : vector<8x4x8xf32> -> vector<4x8x8xf32>
      %c0_125 = arith.constant 0 : index
      %c0_126 = arith.constant 0 : index
      %c0_127 = arith.constant 0 : index
      %230 = vector.load %arg36[%c0_125, %c0_126, %c0_127] : memref<4x8x8xf32, #tpu.memory_space<vmem>>, vector<4x8x8xf32>
      tpu.vector_store %arg36[%c0_125, %c0_126, %c0_127], %229 {strides = array<i32>} : memref<4x8x8xf32, #tpu.memory_space<vmem>>, vector<4x8x8xf32>,
      %c0_128 = arith.constant 0 : index
      %c0_129 = arith.constant 0 : index
      %c0_130 = arith.constant 0 : index
      %231 = vector.load %arg4[%c0_128, %c0_129, %c0_130] : memref<1x8x64xf32, #tpu.memory_space<vmem>>, vector<1x8x64xf32>
      %232 = vector.shape_cast %231 : vector<1x8x64xf32> to vector<8x64xf32>
      %c0_131 = arith.constant 0 : index
      %c0_132 = arith.constant 0 : index
      %233 = vector.load %arg21[%c0_131, %c0_132] : memref<64x32xf32, #tpu.memory_space<vmem>>, vector<64x32xf32>
      %cst_133 = arith.constant dense<0.000000e+00> : vector<8x32xf32>
      %234 = tpu.matmul %232, %233, %cst_133 {dimension_numbers = #tpu.dot_dimension_numbers<[1], [0], [0], [1], [0, 0, 1, 1], [], []>} : vector<8x64xf32>, vector<64x32xf32>, vector<8x32xf32> -> vector<8x32xf32>
      %c0_134 = arith.constant 0 : index
      %c0_135 = arith.constant 0 : index
      %235 = vector.load %arg22[%c0_134, %c0_135] : memref<1x32xf32, #tpu.memory_space<vmem>>, vector<1x32xf32>
      %236 = vector.broadcast %235 : vector<1x32xf32> to vector<8x32xf32>
      %237 = arith.addf %234, %236 : vector<8x32xf32>
      %c0_136 = arith.constant 0 : index
      %c0_137 = arith.constant 0 : index
      %238 = vector.load %arg23[%c0_136, %c0_137] : memref<64x32xf32, #tpu.memory_space<vmem>>, vector<64x32xf32>
      %cst_138 = arith.constant dense<0.000000e+00> : vector<8x32xf32>
      %239 = tpu.matmul %232, %238, %cst_138 {dimension_numbers = #tpu.dot_dimension_numbers<[1], [0], [0], [1], [0, 0, 1, 1], [], []>} : vector<8x64xf32>, vector<64x32xf32>, vector<8x32xf32> -> vector<8x32xf32>
      %c0_139 = arith.constant 0 : index
      %c0_140 = arith.constant 0 : index
      %240 = vector.load %arg24[%c0_139, %c0_140] : memref<1x32xf32, #tpu.memory_space<vmem>>, vector<1x32xf32>
      %241 = vector.broadcast %240 : vector<1x32xf32> to vector<8x32xf32>
      %242 = arith.addf %239, %241 : vector<8x32xf32>
      %243 = vector.shape_cast %237 : vector<8x32xf32> to vector<8x4x8xf32>
      %244 = tpu.transpose %243, [1, 0, 2] : vector<8x4x8xf32> -> vector<4x8x8xf32>
      %c0_141 = arith.constant 0 : index
      %c0_142 = arith.constant 0 : index
      %c0_143 = arith.constant 0 : index
      %245 = vector.load %arg37[%c0_141, %c0_142, %c0_143] : memref<4x8x8xf32, #tpu.memory_space<vmem>>, vector<4x8x8xf32>
      tpu.vector_store %arg37[%c0_141, %c0_142, %c0_143], %244 {strides = array<i32>} : memref<4x8x8xf32, #tpu.memory_space<vmem>>, vector<4x8x8xf32>,
      %246 = vector.shape_cast %242 : vector<8x32xf32> to vector<8x4x8xf32>
      %247 = tpu.transpose %246, [1, 0, 2] : vector<8x4x8xf32> -> vector<4x8x8xf32>
      %c0_144 = arith.constant 0 : index
      %c0_145 = arith.constant 0 : index
      %c0_146 = arith.constant 0 : index
      %248 = vector.load %arg38[%c0_144, %c0_145, %c0_146] : memref<4x8x8xf32, #tpu.memory_space<vmem>>, vector<4x8x8xf32>
      tpu.vector_store %arg38[%c0_144, %c0_145, %c0_146], %247 {strides = array<i32>} : memref<4x8x8xf32, #tpu.memory_space<vmem>>, vector<4x8x8xf32>,
    } else {
    }
    %c8_i32 = arith.constant 8 : i32
    %3 = arith.muli %arg1, %c8_i32 : i32
    %4 = tpu.assume_multiple %3, 8 : i32
    %c0 = arith.constant 0 : index
    %5 = arith.index_cast %4 : i32 to index
    %c0_1 = arith.constant 0 : index
    %6 = vector.load %arg2[%c0, %5, %c0_1] : memref<1x8x32xf32, #tpu.memory_space<vmem>>, vector<1x8x32xf32>
    %7 = vector.shape_cast %6 : vector<1x8x32xf32> to vector<8x32xf32>
    %c0_2 = arith.constant 0 : index
    %c0_3 = arith.constant 0 : index
    %8 = vector.load %arg34[%c0_2, %c0_3] : memref<1x32xf32, #tpu.memory_space<vmem>>, vector<1x32xf32>
    %c0_4 = arith.constant 0 : index
    %c0_5 = arith.constant 0 : index
    %9 = vector.load %arg7[%c0_4, %c0_5] : memref<1x32xf32, #tpu.memory_space<vmem>>, vector<1x32xf32>
    %c0_6 = arith.constant 0 : index
    %c0_7 = arith.constant 0 : index
    %10 = vector.load %arg8[%c0_6, %c0_7] : memref<1x32xf32, #tpu.memory_space<vmem>>, vector<1x32xf32>
    %cst = arith.constant dense<0.000000e+00> : vector<8xf32>
    %11 = vector.multi_reduction <add>, %7, %cst [1] : vector<8x32xf32> to vector<8xf32>
    %12 = vector.shape_cast %11 : vector<8xf32> to vector<8x1xf32>
    %cst_8 = arith.constant 3.200000e+01 : f32
    %13 = vector.broadcast %cst_8 : f32 to vector<8x1xf32>
    %14 = arith.divf %12, %13 : vector<8x1xf32>
    %15 = vector.broadcast %14 : vector<8x1xf32> to vector<8x32xf32>
    %16 = arith.subf %7, %15 : vector<8x32xf32>
    %17 = arith.mulf %16, %16 : vector<8x32xf32>
    %cst_9 = arith.constant dense<0.000000e+00> : vector<8xf32>
    %18 = vector.multi_reduction <add>, %17, %cst_9 [1] : vector<8x32xf32> to vector<8xf32>
    %19 = vector.shape_cast %18 : vector<8xf32> to vector<8x1xf32>
    %cst_10 = arith.constant 3.200000e+01 : f32
    %20 = vector.broadcast %cst_10 : f32 to vector<8x1xf32>
    %21 = arith.divf %19, %20 : vector<8x1xf32>
    %22 = vector.broadcast %14 : vector<8x1xf32> to vector<8x32xf32>
    %23 = arith.subf %7, %22 : vector<8x32xf32>
    %cst_11 = arith.constant 9.99999974E-6 : f32
    %24 = vector.broadcast %cst_11 : f32 to vector<8x1xf32>
    %25 = arith.addf %21, %24 : vector<8x1xf32>
    %26 = math.rsqrt %25 : vector<8x1xf32>
    %27 = vector.broadcast %26 : vector<8x1xf32> to vector<8x32xf32>
    %28 = arith.mulf %23, %27 : vector<8x32xf32>
    %29 = vector.broadcast %9 : vector<1x32xf32> to vector<8x32xf32>
    %30 = arith.mulf %28, %29 : vector<8x32xf32>
    %31 = vector.broadcast %10 : vector<1x32xf32> to vector<8x32xf32>
    %32 = arith.addf %30, %31 : vector<8x32xf32>
    %33 = vector.broadcast %8 : vector<1x32xf32> to vector<8x32xf32>
    %34 = arith.addf %32, %33 : vector<8x32xf32>
    %c0_12 = arith.constant 0 : index
    %c0_13 = arith.constant 0 : index
    %35 = vector.load %arg9[%c0_12, %c0_13] : memref<32x32xf32, #tpu.memory_space<vmem>>, vector<32x32xf32>
    %cst_14 = arith.constant dense<0.000000e+00> : vector<8x32xf32>
    %36 = tpu.matmul %34, %35, %cst_14 {dimension_numbers = #tpu.dot_dimension_numbers<[1], [0], [0], [1], [0, 0, 1, 1], [], []>} : vector<8x32xf32>, vector<32x32xf32>, vector<8x32xf32> -> vector<8x32xf32>
    %c0_15 = arith.constant 0 : index
    %c0_16 = arith.constant 0 : index
    %37 = vector.load %arg10[%c0_15, %c0_16] : memref<1x32xf32, #tpu.memory_space<vmem>>, vector<1x32xf32>
    %38 = vector.broadcast %37 : vector<1x32xf32> to vector<8x32xf32>
    %39 = arith.addf %36, %38 : vector<8x32xf32>
    %40 = vector.shape_cast %39 : vector<8x32xf32> to vector<8x4x8xf32>
    %41 = tpu.transpose %40, [1, 0, 2] : vector<8x4x8xf32> -> vector<4x8x8xf32>
    %cst_17 = arith.constant -1.000000e+30 : f32
    %42 = vector.broadcast %cst_17 : f32 to vector<4x8x1xf32>
    %cst_18 = arith.constant 0.000000e+00 : f32
    %43 = vector.broadcast %cst_18 : f32 to vector<4x8x1xf32>
    %cst_19 = arith.constant 0.000000e+00 : f32
    %44 = vector.broadcast %cst_19 : f32 to vector<4x8x8xf32>
    %c0_20 = arith.constant 0 : index
    %c0_21 = arith.constant 0 : index
    %c0_22 = arith.constant 0 : index
    %45 = vector.load %arg35[%c0_20, %c0_21, %c0_22] : memref<4x8x8xf32, #tpu.memory_space<vmem>>, vector<4x8x8xf32>
    %c0_23 = arith.constant 0 : index
    %c0_24 = arith.constant 0 : index
    %c0_25 = arith.constant 0 : index
    %46 = vector.load %arg36[%c0_23, %c0_24, %c0_25] : memref<4x8x8xf32, #tpu.memory_space<vmem>>, vector<4x8x8xf32>
    "tpu.trace_start"() <{level = 10 : i32, message = "hqd,hkd->hqk"}> : () -> ()
    %cst_26 = arith.constant dense<0.000000e+00> : vector<4x8x8xf32>
    %47 = tpu.matmul %41, %45, %cst_26 {dimension_numbers = #tpu.dot_dimension_numbers<[2], [2], [1], [1], [0, 0, 0, 1, 1, 1], [0], [0]>} : vector<4x8x8xf32>, vector<4x8x8xf32>, vector<4x8x8xf32> -> vector<4x8x8xf32>
    "tpu.trace_stop"() : () -> ()
    %cst_27 = arith.constant dense<0xFF800000> : vector<4x8xf32>
    %48 = vector.multi_reduction <maximumf>, %47, %cst_27 [2] : vector<4x8x8xf32> to vector<4x8xf32>
    %49 = vector.shape_cast %48 : vector<4x8xf32> to vector<4x8x1xf32>
    %50 = arith.maximumf %42, %49 : vector<4x8x1xf32>
    %51 = arith.subf %42, %50 : vector<4x8x1xf32>
    %52 = math.exp %51 : vector<4x8x1xf32>
    %53 = vector.broadcast %50 : vector<4x8x1xf32> to vector<4x8x8xf32>
    %54 = arith.subf %47, %53 : vector<4x8x8xf32>
    %55 = math.exp %54 : vector<4x8x8xf32>
    %56 = arith.mulf %52, %43 : vector<4x8x1xf32>
    %cst_28 = arith.constant dense<0.000000e+00> : vector<4x8xf32>
    %57 = vector.multi_reduction <add>, %55, %cst_28 [2] : vector<4x8x8xf32> to vector<4x8xf32>
    %58 = vector.shape_cast %57 : vector<4x8xf32> to vector<4x8x1xf32>
    %59 = arith.addf %56, %58 : vector<4x8x1xf32>
    %60 = vector.broadcast %52 : vector<4x8x1xf32> to vector<4x8x8xf32>
    %61 = arith.mulf %60, %44 : vector<4x8x8xf32>
    "tpu.trace_start"() <{level = 10 : i32, message = "hqk,hkd->hqd"}> : () -> ()
    %cst_29 = arith.constant dense<0.000000e+00> : vector<4x8x8xf32>
    %62 = tpu.matmul %55, %46, %cst_29 {dimension_numbers = #tpu.dot_dimension_numbers<[2], [1], [1], [2], [0, 0, 0, 1, 1, 2], [0], [0]>} : vector<4x8x8xf32>, vector<4x8x8xf32>, vector<4x8x8xf32> -> vector<4x8x8xf32>
    "tpu.trace_stop"() : () -> ()
    %63 = arith.addf %61, %62 : vector<4x8x8xf32>
    %64 = tpu.reciprocal %59 {approx = true} : vector<4x8x1xf32> -> vector<4x8x1xf32>
    %65 = vector.broadcast %64 : vector<4x8x1xf32> to vector<4x8x8xf32>
    %66 = arith.mulf %63, %65 : vector<4x8x8xf32>
    %67 = tpu.transpose %66, [1, 0, 2] : vector<4x8x8xf32> -> vector<8x4x8xf32>
    %68 = vector.shape_cast %67 : vector<8x4x8xf32> to vector<8x32xf32>
    %c0_30 = arith.constant 0 : index
    %c0_31 = arith.constant 0 : index
    %69 = vector.load %arg15[%c0_30, %c0_31] : memref<32x32xf32, #tpu.memory_space<vmem>>, vector<32x32xf32>
    %cst_32 = arith.constant dense<0.000000e+00> : vector<8x32xf32>
    %70 = tpu.matmul %68, %69, %cst_32 {dimension_numbers = #tpu.dot_dimension_numbers<[1], [0], [0], [1], [0, 0, 1, 1], [], []>} : vector<8x32xf32>, vector<32x32xf32>, vector<8x32xf32> -> vector<8x32xf32>
    %c0_33 = arith.constant 0 : index
    %c0_34 = arith.constant 0 : index
    %71 = vector.load %arg16[%c0_33, %c0_34] : memref<1x32xf32, #tpu.memory_space<vmem>>, vector<1x32xf32>
    %72 = vector.broadcast %71 : vector<1x32xf32> to vector<8x32xf32>
    %73 = arith.addf %70, %72 : vector<8x32xf32>
    %74 = arith.addf %7, %73 : vector<8x32xf32>
    %c0_35 = arith.constant 0 : index
    %c0_36 = arith.constant 0 : index
    %75 = vector.load %arg17[%c0_35, %c0_36] : memref<1x32xf32, #tpu.memory_space<vmem>>, vector<1x32xf32>
    %c0_37 = arith.constant 0 : index
    %c0_38 = arith.constant 0 : index
    %76 = vector.load %arg18[%c0_37, %c0_38] : memref<1x32xf32, #tpu.memory_space<vmem>>, vector<1x32xf32>
    %cst_39 = arith.constant dense<0.000000e+00> : vector<8xf32>
    %77 = vector.multi_reduction <add>, %74, %cst_39 [1] : vector<8x32xf32> to vector<8xf32>
    %78 = vector.shape_cast %77 : vector<8xf32> to vector<8x1xf32>
    %cst_40 = arith.constant 3.200000e+01 : f32
    %79 = vector.broadcast %cst_40 : f32 to vector<8x1xf32>
    %80 = arith.divf %78, %79 : vector<8x1xf32>
    %81 = vector.broadcast %80 : vector<8x1xf32> to vector<8x32xf32>
    %82 = arith.subf %74, %81 : vector<8x32xf32>
    %83 = arith.mulf %82, %82 : vector<8x32xf32>
    %cst_41 = arith.constant dense<0.000000e+00> : vector<8xf32>
    %84 = vector.multi_reduction <add>, %83, %cst_41 [1] : vector<8x32xf32> to vector<8xf32>
    %85 = vector.shape_cast %84 : vector<8xf32> to vector<8x1xf32>
    %cst_42 = arith.constant 3.200000e+01 : f32
    %86 = vector.broadcast %cst_42 : f32 to vector<8x1xf32>
    %87 = arith.divf %85, %86 : vector<8x1xf32>
    %88 = vector.broadcast %80 : vector<8x1xf32> to vector<8x32xf32>
    %89 = arith.subf %74, %88 : vector<8x32xf32>
    %cst_43 = arith.constant 9.99999974E-6 : f32
    %90 = vector.broadcast %cst_43 : f32 to vector<8x1xf32>
    %91 = arith.addf %87, %90 : vector<8x1xf32>
    %92 = math.rsqrt %91 : vector<8x1xf32>
    %93 = vector.broadcast %92 : vector<8x1xf32> to vector<8x32xf32>
    %94 = arith.mulf %89, %93 : vector<8x32xf32>
    %95 = vector.broadcast %75 : vector<1x32xf32> to vector<8x32xf32>
    %96 = arith.mulf %94, %95 : vector<8x32xf32>
    %97 = vector.broadcast %76 : vector<1x32xf32> to vector<8x32xf32>
    %98 = arith.addf %96, %97 : vector<8x32xf32>
    %c0_44 = arith.constant 0 : index
    %c0_45 = arith.constant 0 : index
    %99 = vector.load %arg19[%c0_44, %c0_45] : memref<32x32xf32, #tpu.memory_space<vmem>>, vector<32x32xf32>
    %cst_46 = arith.constant dense<0.000000e+00> : vector<8x32xf32>
    %100 = tpu.matmul %98, %99, %cst_46 {dimension_numbers = #tpu.dot_dimension_numbers<[1], [0], [0], [1], [0, 0, 1, 1], [], []>} : vector<8x32xf32>, vector<32x32xf32>, vector<8x32xf32> -> vector<8x32xf32>
    %c0_47 = arith.constant 0 : index
    %c0_48 = arith.constant 0 : index
    %101 = vector.load %arg20[%c0_47, %c0_48] : memref<1x32xf32, #tpu.memory_space<vmem>>, vector<1x32xf32>
    %102 = vector.broadcast %101 : vector<1x32xf32> to vector<8x32xf32>
    %103 = arith.addf %100, %102 : vector<8x32xf32>
    %104 = vector.shape_cast %103 : vector<8x32xf32> to vector<8x4x8xf32>
    %105 = tpu.transpose %104, [1, 0, 2] : vector<8x4x8xf32> -> vector<4x8x8xf32>
    %c0_49 = arith.constant 0 : index
    %c0_50 = arith.constant 0 : index
    %c0_51 = arith.constant 0 : index
    %106 = vector.load %arg37[%c0_49, %c0_50, %c0_51] : memref<4x8x8xf32, #tpu.memory_space<vmem>>, vector<4x8x8xf32>
    %c0_52 = arith.constant 0 : index
    %c0_53 = arith.constant 0 : index
    %c0_54 = arith.constant 0 : index
    %107 = vector.load %arg38[%c0_52, %c0_53, %c0_54] : memref<4x8x8xf32, #tpu.memory_space<vmem>>, vector<4x8x8xf32>
    "tpu.trace_start"() <{level = 10 : i32, message = "hqd,hkd->hqk"}> : () -> ()
    %cst_55 = arith.constant dense<0.000000e+00> : vector<4x8x8xf32>
    %108 = tpu.matmul %105, %106, %cst_55 {dimension_numbers = #tpu.dot_dimension_numbers<[2], [2], [1], [1], [0, 0, 0, 1, 1, 1], [0], [0]>} : vector<4x8x8xf32>, vector<4x8x8xf32>, vector<4x8x8xf32> -> vector<4x8x8xf32>
    "tpu.trace_stop"() : () -> ()
    %cst_56 = arith.constant dense<0xFF800000> : vector<4x8xf32>
    %109 = vector.multi_reduction <maximumf>, %108, %cst_56 [2] : vector<4x8x8xf32> to vector<4x8xf32>
    %110 = vector.shape_cast %109 : vector<4x8xf32> to vector<4x8x1xf32>
    %111 = vector.broadcast %110 : vector<4x8x1xf32> to vector<4x8x8xf32>
    %112 = arith.subf %108, %111 : vector<4x8x8xf32>
    %113 = math.exp %112 : vector<4x8x8xf32>
    %cst_57 = arith.constant dense<0.000000e+00> : vector<4x8xf32>
    %114 = vector.multi_reduction <add>, %113, %cst_57 [2] : vector<4x8x8xf32> to vector<4x8xf32>
    %115 = vector.shape_cast %114 : vector<4x8xf32> to vector<4x8x1xf32>
    %116 = tpu.reciprocal %115 {approx = true} : vector<4x8x1xf32> -> vector<4x8x1xf32>
    %117 = vector.broadcast %116 : vector<4x8x1xf32> to vector<4x8x8xf32>
    %118 = arith.mulf %113, %117 : vector<4x8x8xf32>
    "tpu.trace_start"() <{level = 10 : i32, message = "hqk,hkd->hqd"}> : () -> ()
    %cst_58 = arith.constant dense<0.000000e+00> : vector<4x8x8xf32>
    %119 = tpu.matmul %118, %107, %cst_58 {dimension_numbers = #tpu.dot_dimension_numbers<[2], [1], [1], [2], [0, 0, 0, 1, 1, 2], [0], [0]>} : vector<4x8x8xf32>, vector<4x8x8xf32>, vector<4x8x8xf32> -> vector<4x8x8xf32>
    "tpu.trace_stop"() : () -> ()
    %120 = tpu.transpose %119, [1, 0, 2] : vector<4x8x8xf32> -> vector<8x4x8xf32>
    %121 = vector.shape_cast %120 : vector<8x4x8xf32> to vector<8x32xf32>
    %c0_59 = arith.constant 0 : index
    %c0_60 = arith.constant 0 : index
    %122 = vector.load %arg25[%c0_59, %c0_60] : memref<32x32xf32, #tpu.memory_space<vmem>>, vector<32x32xf32>
    %cst_61 = arith.constant dense<0.000000e+00> : vector<8x32xf32>
    %123 = tpu.matmul %121, %122, %cst_61 {dimension_numbers = #tpu.dot_dimension_numbers<[1], [0], [0], [1], [0, 0, 1, 1], [], []>} : vector<8x32xf32>, vector<32x32xf32>, vector<8x32xf32> -> vector<8x32xf32>
    %c0_62 = arith.constant 0 : index
    %c0_63 = arith.constant 0 : index
    %124 = vector.load %arg26[%c0_62, %c0_63] : memref<1x32xf32, #tpu.memory_space<vmem>>, vector<1x32xf32>
    %125 = vector.broadcast %124 : vector<1x32xf32> to vector<8x32xf32>
    %126 = arith.addf %123, %125 : vector<8x32xf32>
    %127 = arith.addf %74, %126 : vector<8x32xf32>
    %c0_64 = arith.constant 0 : index
    %c0_65 = arith.constant 0 : index
    %128 = vector.load %arg27[%c0_64, %c0_65] : memref<1x32xf32, #tpu.memory_space<vmem>>, vector<1x32xf32>
    %c0_66 = arith.constant 0 : index
    %c0_67 = arith.constant 0 : index
    %129 = vector.load %arg28[%c0_66, %c0_67] : memref<1x32xf32, #tpu.memory_space<vmem>>, vector<1x32xf32>
    %cst_68 = arith.constant dense<0.000000e+00> : vector<8xf32>
    %130 = vector.multi_reduction <add>, %127, %cst_68 [1] : vector<8x32xf32> to vector<8xf32>
    %131 = vector.shape_cast %130 : vector<8xf32> to vector<8x1xf32>
    %cst_69 = arith.constant 3.200000e+01 : f32
    %132 = vector.broadcast %cst_69 : f32 to vector<8x1xf32>
    %133 = arith.divf %131, %132 : vector<8x1xf32>
    %134 = vector.broadcast %133 : vector<8x1xf32> to vector<8x32xf32>
    %135 = arith.subf %127, %134 : vector<8x32xf32>
    %136 = arith.mulf %135, %135 : vector<8x32xf32>
    %cst_70 = arith.constant dense<0.000000e+00> : vector<8xf32>
    %137 = vector.multi_reduction <add>, %136, %cst_70 [1] : vector<8x32xf32> to vector<8xf32>
    %138 = vector.shape_cast %137 : vector<8xf32> to vector<8x1xf32>
    %cst_71 = arith.constant 3.200000e+01 : f32
    %139 = vector.broadcast %cst_71 : f32 to vector<8x1xf32>
    %140 = arith.divf %138, %139 : vector<8x1xf32>
    %141 = vector.broadcast %133 : vector<8x1xf32> to vector<8x32xf32>
    %142 = arith.subf %127, %141 : vector<8x32xf32>
    %cst_72 = arith.constant 9.99999974E-6 : f32
    %143 = vector.broadcast %cst_72 : f32 to vector<8x1xf32>
    %144 = arith.addf %140, %143 : vector<8x1xf32>
    %145 = math.rsqrt %144 : vector<8x1xf32>
    %146 = vector.broadcast %145 : vector<8x1xf32> to vector<8x32xf32>
    %147 = arith.mulf %142, %146 : vector<8x32xf32>
    %148 = vector.broadcast %128 : vector<1x32xf32> to vector<8x32xf32>
    %149 = arith.mulf %147, %148 : vector<8x32xf32>
    %150 = vector.broadcast %129 : vector<1x32xf32> to vector<8x32xf32>
    %151 = arith.addf %149, %150 : vector<8x32xf32>
    %c0_73 = arith.constant 0 : index
    %c0_74 = arith.constant 0 : index
    %152 = vector.load %arg29[%c0_73, %c0_74] : memref<32x128xf32, #tpu.memory_space<vmem>>, vector<32x128xf32>
    %cst_75 = arith.constant dense<0.000000e+00> : vector<8x128xf32>
    %153 = tpu.matmul %151, %152, %cst_75 {dimension_numbers = #tpu.dot_dimension_numbers<[1], [0], [0], [1], [0, 0, 1, 1], [], []>} : vector<8x32xf32>, vector<32x128xf32>, vector<8x128xf32> -> vector<8x128xf32>
    %c0_76 = arith.constant 0 : index
    %c0_77 = arith.constant 0 : index
    %154 = vector.load %arg30[%c0_76, %c0_77] : memref<1x128xf32, #tpu.memory_space<vmem>>, vector<1x128xf32>
    %155 = vector.broadcast %154 : vector<1x128xf32> to vector<8x128xf32>
    %156 = arith.addf %153, %155 : vector<8x128xf32>
    %cst_78 = arith.constant 0.000000e+00 : f32
    %157 = vector.broadcast %cst_78 : f32 to vector<8x128xf32>
    %158 = arith.subf %157, %156 : vector<8x128xf32>
    %159 = math.exp %158 : vector<8x128xf32>
    %cst_79 = arith.constant 1.000000e+00 : f32
    %160 = vector.broadcast %cst_79 : f32 to vector<8x128xf32>
    %161 = arith.addf %160, %159 : vector<8x128xf32>
    %162 = tpu.reciprocal %161 {approx = true} : vector<8x128xf32> -> vector<8x128xf32>
    %163 = arith.mulf %156, %162 : vector<8x128xf32>
    %c0_80 = arith.constant 0 : index
    %c0_81 = arith.constant 0 : index
    %164 = vector.load %arg31[%c0_80, %c0_81] : memref<128x32xf32, #tpu.memory_space<vmem>>, vector<128x32xf32>
    %cst_82 = arith.constant dense<0.000000e+00> : vector<8x32xf32>
    %165 = tpu.matmul %163, %164, %cst_82 {dimension_numbers = #tpu.dot_dimension_numbers<[1], [0], [0], [1], [0, 0, 1, 1], [], []>} : vector<8x128xf32>, vector<128x32xf32>, vector<8x32xf32> -> vector<8x32xf32>
    %c0_83 = arith.constant 0 : index
    %c0_84 = arith.constant 0 : index
    %166 = vector.load %arg32[%c0_83, %c0_84] : memref<1x32xf32, #tpu.memory_space<vmem>>, vector<1x32xf32>
    %167 = vector.broadcast %166 : vector<1x32xf32> to vector<8x32xf32>
    %168 = arith.addf %165, %167 : vector<8x32xf32>
    %169 = arith.addf %127, %168 : vector<8x32xf32>
    %c0_85 = arith.constant 0 : index
    %c0_86 = arith.constant 0 : index
    %c0_87 = arith.constant 0 : index
    %170 = vector.load %arg33[%c0_85, %c0_86, %c0_87] : memref<1x8x32xf32, #tpu.memory_space<vmem>>, vector<1x8x32xf32>
    %171 = vector.shape_cast %170 : vector<1x8x32xf32> to vector<8x32xf32>
    %172 = vector.shape_cast %169 : vector<8x32xf32> to vector<1x8x32xf32>
    tpu.vector_store %arg33[%c0_85, %c0_86, %c0_87], %172 {strides = array<i32>} : memref<1x8x32xf32, #tpu.memory_space<vmem>>, vector<1x8x32xf32>,
    return
  }
  func.func @transform_0(%arg0: i32, %arg1: i32) -> (i32, i32, i32) {
    %c0_i32 = arith.constant 0 : i32
    %c0_i32_0 = arith.constant 0 : i32
    %c0_i32_1 = arith.constant 0 : i32
    return %arg0, %c0_i32, %c0_i32_0 : i32, i32, i32
  }
  func.func @transform_1(%arg0: i32, %arg1: i32) -> (i32, i32, i32) {
    %c0_i32 = arith.constant 0 : i32
    %c0_i32_0 = arith.constant 0 : i32
    %c0_i32_1 = arith.constant 0 : i32
    return %arg0, %c0_i32, %c0_i32_0 : i32, i32, i32
  }
  func.func @transform_2(%arg0: i32, %arg1: i32) -> (i32, i32, i32) {
    %c0_i32 = arith.constant 0 : i32
    %c0_i32_0 = arith.constant 0 : i32
    %c0_i32_1 = arith.constant 0 : i32
    return %arg0, %c0_i32, %c0_i32_0 : i32, i32, i32
  }
  func.func @transform_3(%arg0: i32, %arg1: i32) -> (i32, i32) {
    %c0_i32 = arith.constant 0 : i32
    %c0_i32_0 = arith.constant 0 : i32
    %c0_i32_1 = arith.constant 0 : i32
    return %c0_i32, %c0_i32_0 : i32, i32
  }
  func.func @transform_4(%arg0: i32, %arg1: i32) -> (i32, i32) {
    %c0_i32 = arith.constant 0 : i32
    %c0_i32_0 = arith.constant 0 : i32
    %c0_i32_1 = arith.constant 0 : i32
    return %c0_i32, %c0_i32_0 : i32, i32
  }
  func.func @transform_5(%arg0: i32, %arg1: i32) -> (i32, i32) {
    %c0_i32 = arith.constant 0 : i32
    %c0_i32_0 = arith.constant 0 : i32
    %c0_i32_1 = arith.constant 0 : i32
    return %c0_i32, %c0_i32_0 : i32, i32
  }
  func.func @transform_6(%arg0: i32, %arg1: i32) -> (i32, i32) {
    %c0_i32 = arith.constant 0 : i32
    %c0_i32_0 = arith.constant 0 : i32
    %c0_i32_1 = arith.constant 0 : i32
    return %c0_i32, %c0_i32_0 : i32, i32
  }
  func.func @transform_7(%arg0: i32, %arg1: i32) -> (i32, i32) {
    %c0_i32 = arith.constant 0 : i32
    %c0_i32_0 = arith.constant 0 : i32
    %c0_i32_1 = arith.constant 0 : i32
    return %c0_i32, %c0_i32_0 : i32, i32
  }
  func.func @transform_8(%arg0: i32, %arg1: i32) -> (i32, i32) {
    %c0_i32 = arith.constant 0 : i32
    %c0_i32_0 = arith.constant 0 : i32
    %c0_i32_1 = arith.constant 0 : i32
    return %c0_i32, %c0_i32_0 : i32, i32
  }
  func.func @transform_9(%arg0: i32, %arg1: i32) -> (i32, i32) {
    %c0_i32 = arith.constant 0 : i32
    %c0_i32_0 = arith.constant 0 : i32
    %c0_i32_1 = arith.constant 0 : i32
    return %c0_i32, %c0_i32_0 : i32, i32
  }
  func.func @transform_10(%arg0: i32, %arg1: i32) -> (i32, i32) {
    %c0_i32 = arith.constant 0 : i32
    %c0_i32_0 = arith.constant 0 : i32
    %c0_i32_1 = arith.constant 0 : i32
    return %c0_i32, %c0_i32_0 : i32, i32
  }
  func.func @transform_11(%arg0: i32, %arg1: i32) -> (i32, i32) {
    %c0_i32 = arith.constant 0 : i32
    %c0_i32_0 = arith.constant 0 : i32
    %c0_i32_1 = arith.constant 0 : i32
    return %c0_i32, %c0_i32_0 : i32, i32
  }
  func.func @transform_12(%arg0: i32, %arg1: i32) -> (i32, i32) {
    %c0_i32 = arith.constant 0 : i32
    %c0_i32_0 = arith.constant 0 : i32
    %c0_i32_1 = arith.constant 0 : i32
    return %c0_i32, %c0_i32_0 : i32, i32
  }
  func.func @transform_13(%arg0: i32, %arg1: i32) -> (i32, i32) {
    %c0_i32 = arith.constant 0 : i32
    %c0_i32_0 = arith.constant 0 : i32
    %c0_i32_1 = arith.constant 0 : i32
    return %c0_i32, %c0_i32_0 : i32, i32
  }
  func.func @transform_14(%arg0: i32, %arg1: i32) -> (i32, i32) {
    %c0_i32 = arith.constant 0 : i32
    %c0_i32_0 = arith.constant 0 : i32
    %c0_i32_1 = arith.constant 0 : i32
    return %c0_i32, %c0_i32_0 : i32, i32
  }
  func.func @transform_15(%arg0: i32, %arg1: i32) -> (i32, i32) {
    %c0_i32 = arith.constant 0 : i32
    %c0_i32_0 = arith.constant 0 : i32
    %c0_i32_1 = arith.constant 0 : i32
    return %c0_i32, %c0_i32_0 : i32, i32
  }
  func.func @transform_16(%arg0: i32, %arg1: i32) -> (i32, i32) {
    %c0_i32 = arith.constant 0 : i32
    %c0_i32_0 = arith.constant 0 : i32
    %c0_i32_1 = arith.constant 0 : i32
    return %c0_i32, %c0_i32_0 : i32, i32
  }
  func.func @transform_17(%arg0: i32, %arg1: i32) -> (i32, i32) {
    %c0_i32 = arith.constant 0 : i32
    %c0_i32_0 = arith.constant 0 : i32
    %c0_i32_1 = arith.constant 0 : i32
    return %c0_i32, %c0_i32_0 : i32, i32
  }
  func.func @transform_18(%arg0: i32, %arg1: i32) -> (i32, i32) {
    %c0_i32 = arith.constant 0 : i32
    %c0_i32_0 = arith.constant 0 : i32
    %c0_i32_1 = arith.constant 0 : i32
    return %c0_i32, %c0_i32_0 : i32, i32
  }
  func.func @transform_19(%arg0: i32, %arg1: i32) -> (i32, i32) {
    %c0_i32 = arith.constant 0 : i32
    %c0_i32_0 = arith.constant 0 : i32
    %c0_i32_1 = arith.constant 0 : i32
    return %c0_i32, %c0_i32_0 : i32, i32
  }
  func.func @transform_20(%arg0: i32, %arg1: i32) -> (i32, i32) {
    %c0_i32 = arith.constant 0 : i32
    %c0_i32_0 = arith.constant 0 : i32
    %c0_i32_1 = arith.constant 0 : i32
    return %c0_i32, %c0_i32_0 : i32, i32
  }
  func.func @transform_21(%arg0: i32, %arg1: i32) -> (i32, i32) {
    %c0_i32 = arith.constant 0 : i32
    %c0_i32_0 = arith.constant 0 : i32
    %c0_i32_1 = arith.constant 0 : i32
    return %c0_i32, %c0_i32_0 : i32, i32
  }
  func.func @transform_22(%arg0: i32, %arg1: i32) -> (i32, i32) {
    %c0_i32 = arith.constant 0 : i32
    %c0_i32_0 = arith.constant 0 : i32
    %c0_i32_1 = arith.constant 0 : i32
    return %c0_i32, %c0_i32_0 : i32, i32
  }
  func.func @transform_23(%arg0: i32, %arg1: i32) -> (i32, i32) {
    %c0_i32 = arith.constant 0 : i32
    %c0_i32_0 = arith.constant 0 : i32
    %c0_i32_1 = arith.constant 0 : i32
    return %c0_i32, %c0_i32_0 : i32, i32
  }
  func.func @transform_24(%arg0: i32, %arg1: i32) -> (i32, i32) {
    %c0_i32 = arith.constant 0 : i32
    %c0_i32_0 = arith.constant 0 : i32
    %c0_i32_1 = arith.constant 0 : i32
    return %c0_i32, %c0_i32_0 : i32, i32
  }
  func.func @transform_25(%arg0: i32, %arg1: i32) -> (i32, i32) {
    %c0_i32 = arith.constant 0 : i32
    %c0_i32_0 = arith.constant 0 : i32
    %c0_i32_1 = arith.constant 0 : i32
    return %c0_i32, %c0_i32_0 : i32, i32
  }
  func.func @transform_26(%arg0: i32, %arg1: i32) -> (i32, i32) {
    %c0_i32 = arith.constant 0 : i32
    %c0_i32_0 = arith.constant 0 : i32
    %c0_i32_1 = arith.constant 0 : i32
    return %c0_i32, %c0_i32_0 : i32, i32
  }
  func.func @transform_27(%arg0: i32, %arg1: i32) -> (i32, i32) {
    %c0_i32 = arith.constant 0 : i32
    %c0_i32_0 = arith.constant 0 : i32
    %c0_i32_1 = arith.constant 0 : i32
    return %c0_i32, %c0_i32_0 : i32, i32
  }
  func.func @transform_28(%arg0: i32, %arg1: i32) -> (i32, i32) {
    %c0_i32 = arith.constant 0 : i32
    %c0_i32_0 = arith.constant 0 : i32
    %c0_i32_1 = arith.constant 0 : i32
    return %c0_i32, %c0_i32_0 : i32, i32
  }
  func.func @transform_29(%arg0: i32, %arg1: i32) -> (i32, i32) {
    %c0_i32 = arith.constant 0 : i32
    %c0_i32_0 = arith.constant 0 : i32
    %c0_i32_1 = arith.constant 0 : i32
    return %c0_i32, %c0_i32_0 : i32, i32
  }
  func.func @transform_30(%arg0: i32, %arg1: i32) -> (i32, i32) {
    %c0_i32 = arith.constant 0 : i32
    %c0_i32_0 = arith.constant 0 : i32
    %c0_i32_1 = arith.constant 0 : i32
    return %c0_i32, %c0_i32_0 : i32, i32
  }
  func.func @transform_31(%arg0: i32, %arg1: i32) -> (i32, i32, i32) {
    %c0_i32 = arith.constant 0 : i32
    %c0_i32_0 = arith.constant 0 : i32
    return %arg0, %arg1, %c0_i32 : i32, i32, i32
  }
}

</mosaic_0001>

<llo_original>
// kernel: tpu_custom_call.1
$region0: #{tpu_custom_call.1}
  #allocation0 [shape = 'u32[]', space=smem, size = 0x4, offset = 0x4, fixed_abs, tag = 'smem constant byte address 0x4 - core index']
  #allocation1 [shape = 'u32[144,128]{1,0:T(1,128)}', space=vmem, size = 0x12000, scoped, tag = 'internal scratch']
  #allocation2 [shape = 'f32[1,32]{1,0:T(1,128)}', space=vmem, size = 0x200, scoped, tag = 'scratch operand']
  #allocation3 [shape = 'f32[4,8,8]{2,1,0:T(8,128)}', space=vmem, size = 0x4000, scoped, tag = 'scratch operand']
  #allocation4 [shape = 'f32[4,8,8]{2,1,0:T(8,128)}', space=vmem, size = 0x4000, scoped, tag = 'scratch operand']
  #allocation5 [shape = 'f32[4,8,8]{2,1,0:T(8,128)}', space=vmem, size = 0x4000, scoped, tag = 'scratch operand']
  #allocation6 [shape = 'f32[4,8,8]{2,1,0:T(8,128)}', space=vmem, size = 0x4000, scoped, tag = 'scratch operand']
  %s0 = inlined_call_operand.smem [shape: u32[32], index: -1, kind: input, shape index: {}]
  %s1 = sld [smem:[%s0]]
  %s2 = scalar_lea.smem %s0, 1
  %s3 = sld [smem:[%s2]]
  %s4 = scalar_lea.smem %s0, 2
  %s5 = sld [smem:[%s4]]
  %s6 = scalar_lea.smem %s0, 3
  %s7 = sld [smem:[%s6]]
  %s8 = scalar_lea.smem %s0, 4
  %s9 = sld [smem:[%s8]]
  %s10 = scalar_lea.smem %s0, 5
  %s11 = sld [smem:[%s10]]
  %s12 = scalar_lea.smem %s0, 6
  %s13 = sld [smem:[%s12]]
  %s14 = scalar_lea.smem %s0, 7
  %s15 = sld [smem:[%s14]]
  %s16 = scalar_lea.smem %s0, 8
  %s17 = sld [smem:[%s16]]
  %s18 = scalar_lea.smem %s0, 9
  %s19 = sld [smem:[%s18]]
  %s20 = scalar_lea.smem %s0, 10
  %s21 = sld [smem:[%s20]]
  %s22 = scalar_lea.smem %s0, 11
  %s23 = sld [smem:[%s22]]
  %s24 = scalar_lea.smem %s0, 12
  %s25 = sld [smem:[%s24]]
  %s26 = scalar_lea.smem %s0, 13
  %s27 = sld [smem:[%s26]]
  %s28 = scalar_lea.smem %s0, 14
  %s29 = sld [smem:[%s28]]
  %s30 = scalar_lea.smem %s0, 15
  %s31 = sld [smem:[%s30]]
  %s32 = scalar_lea.smem %s0, 16
  %s33 = sld [smem:[%s32]]
  %s34 = scalar_lea.smem %s0, 17
  %s35 = sld [smem:[%s34]]
  %s36 = scalar_lea.smem %s0, 18
  %s37 = sld [smem:[%s36]]
  %s38 = scalar_lea.smem %s0, 19
  %s39 = sld [smem:[%s38]]
  %s40 = scalar_lea.smem %s0, 20
  %s41 = sld [smem:[%s40]]
  %s42 = scalar_lea.smem %s0, 21
  %s43 = sld [smem:[%s42]]
  %s44 = scalar_lea.smem %s0, 22
  %s45 = sld [smem:[%s44]]
  %s46 = scalar_lea.smem %s0, 23
  %s47 = sld [smem:[%s46]]
  %s48 = scalar_lea.smem %s0, 24
  %s49 = sld [smem:[%s48]]
  %s50 = scalar_lea.smem %s0, 25
  %s51 = sld [smem:[%s50]]
  %s52 = scalar_lea.smem %s0, 26
  %s53 = sld [smem:[%s52]]
  %s54 = scalar_lea.smem %s0, 27
  %s55 = sld [smem:[%s54]]
  %s56 = scalar_lea.smem %s0, 28
  %s57 = sld [smem:[%s56]]
  %s58 = scalar_lea.smem %s0, 29
  %s59 = sld [smem:[%s58]]
  %s60 = scalar_lea.smem %s0, 30
  %s61 = sld [smem:[%s60]]
  %s62 = scalar_lea.smem %s0, 31
  %s63 = sld [smem:[%s62]]
  %s64 = sld [smem:[#allocation0]]
  $region161: #{tpu_custom_call.1} parent=0
    _
  %s66 = ssub.s32 1, %s64
  %s67 = scalar_select 0, %s66, %s64
  $region1: #{tpu_custom_call.1} parent=0
    #allocation7 [shape = 'u8[8192]{0}', space=vmem, size = 0x2000, scoped, tag = 'output window, operand 0']
    #allocation8 [shape = 's32[2]{0}', space=sflag, size = 0x8, scoped, tag = 'scoped memory for tpu_custom_call.1']
    %68 = vsyncpa [#allocation8], 0
    %s69 = scalar_lea.sflag [#allocation8], 1
    %70 = vsyncpa %s69, 0
    loop: start=0, step=1, limit=4
    $region2: #{tpu_custom_call.1} parent=1 // loop_pre_header
      _
    $region3: #{tpu_custom_call.1} parent=1 // loop_header
      %s72 = sphi 0, %s76
      %p73 = scmp.ge.s32.totalorder %s72, 4
      %s79 = sphi 0, %s91
      %s80 = sphi 0, %s87
      %s81 = sphi 0, %s79
      %s82 = sphi 0, %s80
      %s83 = sphi 0, %s81
      %s84 = sphi 0, %s82
      %s94 = sphi 0, %s96
      %s97 = sphi 0, %s94
      %s98 = sphi 0, %s97
      %s114 = sphi 0, %s98
      %s120 = sphi 0, %s122
      %s123 = sphi 0, %s120
      %s124 = sphi 0, %s123
      %s140 = sphi 0, %s124
      %s146 = sphi 0, %s148
      %s149 = sphi 0, %s146
      %s150 = sphi 0, %s149
      %s166 = sphi 0, %s150
      %s170 = sphi 0, %s170
      %s172 = sphi 0, %s170
      %s173 = sphi 0, %s172
      %s187 = sphi 0, %s173
      %s191 = sphi 0, %s191
      %s193 = sphi 0, %s191
      %s194 = sphi 0, %s193
      %s208 = sphi 0, %s194
      %s212 = sphi 0, %s212
      %s214 = sphi 0, %s212
      %s215 = sphi 0, %s214
      %s229 = sphi 0, %s215
      %s233 = sphi 0, %s233
      %s235 = sphi 0, %s233
      %s236 = sphi 0, %s235
      %s250 = sphi 0, %s236
      %s254 = sphi 0, %s254
      %s256 = sphi 0, %s254
      %s257 = sphi 0, %s256
      %s271 = sphi 0, %s257
      %s275 = sphi 0, %s275
      %s277 = sphi 0, %s275
      %s278 = sphi 0, %s277
      %s292 = sphi 0, %s278
      %s296 = sphi 0, %s296
      %s298 = sphi 0, %s296
      %s299 = sphi 0, %s298
      %s313 = sphi 0, %s299
      %s317 = sphi 0, %s317
      %s319 = sphi 0, %s317
      %s320 = sphi 0, %s319
      %s334 = sphi 0, %s320
      %s338 = sphi 0, %s338
      %s340 = sphi 0, %s338
      %s341 = sphi 0, %s340
      %s355 = sphi 0, %s341
      %s359 = sphi 0, %s359
      %s361 = sphi 0, %s359
      %s362 = sphi 0, %s361
      %s376 = sphi 0, %s362
      %s380 = sphi 0, %s380
      %s382 = sphi 0, %s380
      %s383 = sphi 0, %s382
      %s397 = sphi 0, %s383
      %s401 = sphi 0, %s401
      %s403 = sphi 0, %s401
      %s404 = sphi 0, %s403
      %s418 = sphi 0, %s404
      %s422 = sphi 0, %s422
      %s424 = sphi 0, %s422
      %s425 = sphi 0, %s424
      %s439 = sphi 0, %s425
      %s443 = sphi 0, %s443
      %s445 = sphi 0, %s443
      %s446 = sphi 0, %s445
      %s460 = sphi 0, %s446
      %s464 = sphi 0, %s464
      %s466 = sphi 0, %s464
      %s467 = sphi 0, %s466
      %s481 = sphi 0, %s467
      %s485 = sphi 0, %s485
      %s487 = sphi 0, %s485
      %s488 = sphi 0, %s487
      %s502 = sphi 0, %s488
      %s506 = sphi 0, %s506
      %s508 = sphi 0, %s506
      %s509 = sphi 0, %s508
      %s523 = sphi 0, %s509
      %s527 = sphi 0, %s527
      %s529 = sphi 0, %s527
      %s530 = sphi 0, %s529
      %s544 = sphi 0, %s530
      %s548 = sphi 0, %s548
      %s550 = sphi 0, %s548
      %s551 = sphi 0, %s550
      %s565 = sphi 0, %s551
      %s569 = sphi 0, %s569
      %s571 = sphi 0, %s569
      %s572 = sphi 0, %s571
      %s586 = sphi 0, %s572
      %s590 = sphi 0, %s590
      %s592 = sphi 0, %s590
      %s593 = sphi 0, %s592
      %s607 = sphi 0, %s593
      %s611 = sphi 0, %s611
      %s613 = sphi 0, %s611
      %s614 = sphi 0, %s613
      %s628 = sphi 0, %s614
      %s632 = sphi 0, %s632
      %s634 = sphi 0, %s632
      %s635 = sphi 0, %s634
      %s649 = sphi 0, %s635
      %s653 = sphi 0, %s653
      %s655 = sphi 0, %s653
      %s656 = sphi 0, %s655
      %s670 = sphi 0, %s656
      %s674 = sphi 0, %s674
      %s676 = sphi 0, %s674
      %s677 = sphi 0, %s676
      %s691 = sphi 0, %s677
      %s695 = sphi 0, %s695
      %s697 = sphi 0, %s695
      %s698 = sphi 0, %s697
      %s712 = sphi 0, %s698
      %s716 = sphi 0, %s716
      %s718 = sphi 0, %s716
      %s719 = sphi 0, %s718
      %s733 = sphi 0, %s719
      %s737 = sphi 0, %s737
      %s739 = sphi 0, %s737
      %s740 = sphi 0, %s739
      %s754 = sphi 0, %s740
      %s762 = sphi 0, %s764
      %s765 = sphi 0, %s762
      %s766 = sphi 0, %s765
      %s782 = sphi 0, %s766
    $region4: #{tpu_custom_call.1} parent=1 // loop_header_branch
      %75 = sbr.rel (%p73) target = $region8
    $region5: #{tpu_custom_call.1} parent=1 // loop_body
      %s77 = ssub.s32 %s72, 1
      %s78 = ssub.s32 %s72, 2
      %s85 = sadd.s32 1, %s80
      %p86 = scmp.ge.s32.totalorder %s85, 1
      %s87 = scalar_select %p86, 0, %s85
      %s88 = sadd.s32 1, %s79
      %s89 = scalar_select %p86, %s88, %s79
      %p90 = scmp.ge.s32.totalorder %s89, 2
      %s91 = scalar_select %p90, 0, %s89
      %s92 = ssub.s32 %s79, %s91
      %p93 = scmp.eq.s32.totalorder %s92, 0
      %s95 = sadd.s32 %s94, 1
      %s96 = scalar_select %p93, %s94, %s95
      %p99 = pneg %p93
      %p100 = scmp.eq.s32.totalorder %s72, 1
      %p101 = por %p99, %p100
      %p102 = scmp.ne.s32.totalorder %s94, %s97
      %p103 = scmp.eq.s32.totalorder %s72, 0
      %p104 = por %p102, %p103
      %p105 = scmp.ne.s32.totalorder %s94, %s97
      %p106 = scmp.eq.s32.totalorder %s77, 1
      %p107 = por %p105, %p106
      %p108 = scmp.ne.s32.totalorder %s97, %s98
      %p109 = scmp.eq.s32.totalorder %s77, 0
      %p110 = por %p108, %p109
      %p111 = scmp.ne.s32.totalorder %s97, %s98
      %p112 = scmp.eq.s32.totalorder %s78, 1
      %p113 = por %p111, %p112
      %p115 = scmp.ne.s32.totalorder %s98, %s114
      %p116 = scmp.eq.s32.totalorder %s78, 0
      %p117 = por %p115, %p116
      %s118 = ssub.s32 %s79, %s91
      %p119 = scmp.eq.s32.totalorder %s118, 0
      %s121 = sadd.s32 %s120, 1
      %s122 = scalar_select %p119, %s120, %s121
      %p125 = pneg %p119
      %p126 = scmp.eq.s32.totalorder %s72, 1
      %p127 = por %p125, %p126
      %p128 = scmp.ne.s32.totalorder %s120, %s123
      %p129 = scmp.eq.s32.totalorder %s72, 0
      %p130 = por %p128, %p129
      %p131 = scmp.ne.s32.totalorder %s120, %s123
      %p132 = scmp.eq.s32.totalorder %s77, 1
      %p133 = por %p131, %p132
      %p134 = scmp.ne.s32.totalorder %s123, %s124
      %p135 = scmp.eq.s32.totalorder %s77, 0
      %p136 = por %p134, %p135
      %p137 = scmp.ne.s32.totalorder %s123, %s124
      %p138 = scmp.eq.s32.totalorder %s78, 1
      %p139 = por %p137, %p138
      %p141 = scmp.ne.s32.totalorder %s124, %s140
      %p142 = scmp.eq.s32.totalorder %s78, 0
      %p143 = por %p141, %p142
      %s144 = ssub.s32 %s79, %s91
      %p145 = scmp.eq.s32.totalorder %s144, 0
      %s147 = sadd.s32 %s146, 1
      %s148 = scalar_select %p145, %s146, %s147
      %p151 = pneg %p145
      %p152 = scmp.eq.s32.totalorder %s72, 1
      %p153 = por %p151, %p152
      %p154 = scmp.ne.s32.totalorder %s146, %s149
      %p155 = scmp.eq.s32.totalorder %s72, 0
      %p156 = por %p154, %p155
      %p157 = scmp.ne.s32.totalorder %s146, %s149
      %p158 = scmp.eq.s32.totalorder %s77, 1
      %p159 = por %p157, %p158
      %p160 = scmp.ne.s32.totalorder %s149, %s150
      %p161 = scmp.eq.s32.totalorder %s77, 0
      %p162 = por %p160, %p161
      %p163 = scmp.ne.s32.totalorder %s149, %s150
      %p164 = scmp.eq.s32.totalorder %s78, 1
      %p165 = por %p163, %p164
      %p167 = scmp.ne.s32.totalorder %s150, %s166
      %p168 = scmp.eq.s32.totalorder %s78, 0
      %p169 = por %p167, %p168
      %s171 = sadd.s32 %s170, 1
      %p174 = scmp.eq.s32.totalorder %s72, 1
      %p175 = scmp.ne.s32.totalorder %s170, %s172
      %p176 = scmp.eq.s32.totalorder %s72, 0
      %p177 = por %p175, %p176
      %p178 = scmp.ne.s32.totalorder %s170, %s172
      %p179 = scmp.eq.s32.totalorder %s77, 1
      %p180 = por %p178, %p179
      %p181 = scmp.ne.s32.totalorder %s172, %s173
      %p182 = scmp.eq.s32.totalorder %s77, 0
      %p183 = por %p181, %p182
      %p184 = scmp.ne.s32.totalorder %s172, %s173
      %p185 = scmp.eq.s32.totalorder %s78, 1
      %p186 = por %p184, %p185
      %p188 = scmp.ne.s32.totalorder %s173, %s187
      %p189 = scmp.eq.s32.totalorder %s78, 0
      %p190 = por %p188, %p189
      %s192 = sadd.s32 %s191, 1
      %p195 = scmp.eq.s32.totalorder %s72, 1
      %p196 = scmp.ne.s32.totalorder %s191, %s193
      %p197 = scmp.eq.s32.totalorder %s72, 0
      %p198 = por %p196, %p197
      %p199 = scmp.ne.s32.totalorder %s191, %s193
      %p200 = scmp.eq.s32.totalorder %s77, 1
      %p201 = por %p199, %p200
      %p202 = scmp.ne.s32.totalorder %s193, %s194
      %p203 = scmp.eq.s32.totalorder %s77, 0
      %p204 = por %p202, %p203
      %p205 = scmp.ne.s32.totalorder %s193, %s194
      %p206 = scmp.eq.s32.totalorder %s78, 1
      %p207 = por %p205, %p206
      %p209 = scmp.ne.s32.totalorder %s194, %s208
      %p210 = scmp.eq.s32.totalorder %s78, 0
      %p211 = por %p209, %p210
      %s213 = sadd.s32 %s212, 1
      %p216 = scmp.eq.s32.totalorder %s72, 1
      %p217 = scmp.ne.s32.totalorder %s212, %s214
      %p218 = scmp.eq.s32.totalorder %s72, 0
      %p219 = por %p217, %p218
      %p220 = scmp.ne.s32.totalorder %s212, %s214
      %p221 = scmp.eq.s32.totalorder %s77, 1
      %p222 = por %p220, %p221
      %p223 = scmp.ne.s32.totalorder %s214, %s215
      %p224 = scmp.eq.s32.totalorder %s77, 0
      %p225 = por %p223, %p224
      %p226 = scmp.ne.s32.totalorder %s214, %s215
      %p227 = scmp.eq.s32.totalorder %s78, 1
      %p228 = por %p226, %p227
      %p230 = scmp.ne.s32.totalorder %s215, %s229
      %p231 = scmp.eq.s32.totalorder %s78, 0
      %p232 = por %p230, %p231
      %s234 = sadd.s32 %s233, 1
      %p237 = scmp.eq.s32.totalorder %s72, 1
      %p238 = scmp.ne.s32.totalorder %s233, %s235
      %p239 = scmp.eq.s32.totalorder %s72, 0
      %p240 = por %p238, %p239
      %p241 = scmp.ne.s32.totalorder %s233, %s235
      %p242 = scmp.eq.s32.totalorder %s77, 1
      %p243 = por %p241, %p242
      %p244 = scmp.ne.s32.totalorder %s235, %s236
      %p245 = scmp.eq.s32.totalorder %s77, 0
      %p246 = por %p244, %p245
      %p247 = scmp.ne.s32.totalorder %s235, %s236
      %p248 = scmp.eq.s32.totalorder %s78, 1
      %p249 = por %p247, %p248
      %p251 = scmp.ne.s32.totalorder %s236, %s250
      %p252 = scmp.eq.s32.totalorder %s78, 0
      %p253 = por %p251, %p252
      %s255 = sadd.s32 %s254, 1
      %p258 = scmp.eq.s32.totalorder %s72, 1
      %p259 = scmp.ne.s32.totalorder %s254, %s256
      %p260 = scmp.eq.s32.totalorder %s72, 0
      %p261 = por %p259, %p260
      %p262 = scmp.ne.s32.totalorder %s254, %s256
      %p263 = scmp.eq.s32.totalorder %s77, 1
      %p264 = por %p262, %p263
      %p265 = scmp.ne.s32.totalorder %s256, %s257
      %p266 = scmp.eq.s32.totalorder %s77, 0
      %p267 = por %p265, %p266
      %p268 = scmp.ne.s32.totalorder %s256, %s257
      %p269 = scmp.eq.s32.totalorder %s78, 1
      %p270 = por %p268, %p269
      %p272 = scmp.ne.s32.totalorder %s257, %s271
      %p273 = scmp.eq.s32.totalorder %s78, 0
      %p274 = por %p272, %p273
      %s276 = sadd.s32 %s275, 1
      %p279 = scmp.eq.s32.totalorder %s72, 1
      %p280 = scmp.ne.s32.totalorder %s275, %s277
      %p281 = scmp.eq.s32.totalorder %s72, 0
      %p282 = por %p280, %p281
      %p283 = scmp.ne.s32.totalorder %s275, %s277
      %p284 = scmp.eq.s32.totalorder %s77, 1
      %p285 = por %p283, %p284
      %p286 = scmp.ne.s32.totalorder %s277, %s278
      %p287 = scmp.eq.s32.totalorder %s77, 0
      %p288 = por %p286, %p287
      %p289 = scmp.ne.s32.totalorder %s277, %s278
      %p290 = scmp.eq.s32.totalorder %s78, 1
      %p291 = por %p289, %p290
      %p293 = scmp.ne.s32.totalorder %s278, %s292
      %p294 = scmp.eq.s32.totalorder %s78, 0
      %p295 = por %p293, %p294
      %s297 = sadd.s32 %s296, 1
      %p300 = scmp.eq.s32.totalorder %s72, 1
      %p301 = scmp.ne.s32.totalorder %s296, %s298
      %p302 = scmp.eq.s32.totalorder %s72, 0
      %p303 = por %p301, %p302
      %p304 = scmp.ne.s32.totalorder %s296, %s298
      %p305 = scmp.eq.s32.totalorder %s77, 1
      %p306 = por %p304, %p305
      %p307 = scmp.ne.s32.totalorder %s298, %s299
      %p308 = scmp.eq.s32.totalorder %s77, 0
      %p309 = por %p307, %p308
      %p310 = scmp.ne.s32.totalorder %s298, %s299
      %p311 = scmp.eq.s32.totalorder %s78, 1
      %p312 = por %p310, %p311
      %p314 = scmp.ne.s32.totalorder %s299, %s313
      %p315 = scmp.eq.s32.totalorder %s78, 0
      %p316 = por %p314, %p315
      %s318 = sadd.s32 %s317, 1
      %p321 = scmp.eq.s32.totalorder %s72, 1
      %p322 = scmp.ne.s32.totalorder %s317, %s319
      %p323 = scmp.eq.s32.totalorder %s72, 0
      %p324 = por %p322, %p323
      %p325 = scmp.ne.s32.totalorder %s317, %s319
      %p326 = scmp.eq.s32.totalorder %s77, 1
      %p327 = por %p325, %p326
      %p328 = scmp.ne.s32.totalorder %s319, %s320
      %p329 = scmp.eq.s32.totalorder %s77, 0
      %p330 = por %p328, %p329
      %p331 = scmp.ne.s32.totalorder %s319, %s320
      %p332 = scmp.eq.s32.totalorder %s78, 1
      %p333 = por %p331, %p332
      %p335 = scmp.ne.s32.totalorder %s320, %s334
      %p336 = scmp.eq.s32.totalorder %s78, 0
      %p337 = por %p335, %p336
      %s339 = sadd.s32 %s338, 1
      %p342 = scmp.eq.s32.totalorder %s72, 1
      %p343 = scmp.ne.s32.totalorder %s338, %s340
      %p344 = scmp.eq.s32.totalorder %s72, 0
      %p345 = por %p343, %p344
      %p346 = scmp.ne.s32.totalorder %s338, %s340
      %p347 = scmp.eq.s32.totalorder %s77, 1
      %p348 = por %p346, %p347
      %p349 = scmp.ne.s32.totalorder %s340, %s341
      %p350 = scmp.eq.s32.totalorder %s77, 0
      %p351 = por %p349, %p350
      %p352 = scmp.ne.s32.totalorder %s340, %s341
      %p353 = scmp.eq.s32.totalorder %s78, 1
      %p354 = por %p352, %p353
      %p356 = scmp.ne.s32.totalorder %s341, %s355
      %p357 = scmp.eq.s32.totalorder %s78, 0
      %p358 = por %p356, %p357
      %s360 = sadd.s32 %s359, 1
      %p363 = scmp.eq.s32.totalorder %s72, 1
      %p364 = scmp.ne.s32.totalorder %s359, %s361
      %p365 = scmp.eq.s32.totalorder %s72, 0
      %p366 = por %p364, %p365
      %p367 = scmp.ne.s32.totalorder %s359, %s361
      %p368 = scmp.eq.s32.totalorder %s77, 1
      %p369 = por %p367, %p368
      %p370 = scmp.ne.s32.totalorder %s361, %s362
      %p371 = scmp.eq.s32.totalorder %s77, 0
      %p372 = por %p370, %p371
      %p373 = scmp.ne.s32.totalorder %s361, %s362
      %p374 = scmp.eq.s32.totalorder %s78, 1
      %p375 = por %p373, %p374
      %p377 = scmp.ne.s32.totalorder %s362, %s376
      %p378 = scmp.eq.s32.totalorder %s78, 0
      %p379 = por %p377, %p378
      %s381 = sadd.s32 %s380, 1
      %p384 = scmp.eq.s32.totalorder %s72, 1
      %p385 = scmp.ne.s32.totalorder %s380, %s382
      %p386 = scmp.eq.s32.totalorder %s72, 0
      %p387 = por %p385, %p386
      %p388 = scmp.ne.s32.totalorder %s380, %s382
      %p389 = scmp.eq.s32.totalorder %s77, 1
      %p390 = por %p388, %p389
      %p391 = scmp.ne.s32.totalorder %s382, %s383
      %p392 = scmp.eq.s32.totalorder %s77, 0
      %p393 = por %p391, %p392
      %p394 = scmp.ne.s32.totalorder %s382, %s383
      %p395 = scmp.eq.s32.totalorder %s78, 1
      %p396 = por %p394, %p395
      %p398 = scmp.ne.s32.totalorder %s383, %s397
      %p399 = scmp.eq.s32.totalorder %s78, 0
      %p400 = por %p398, %p399
      %s402 = sadd.s32 %s401, 1
      %p405 = scmp.eq.s32.totalorder %s72, 1
      %p406 = scmp.ne.s32.totalorder %s401, %s403
      %p407 = scmp.eq.s32.totalorder %s72, 0
      %p408 = por %p406, %p407
      %p409 = scmp.ne.s32.totalorder %s401, %s403
      %p410 = scmp.eq.s32.totalorder %s77, 1
      %p411 = por %p409, %p410
      %p412 = scmp.ne.s32.totalorder %s403, %s404
      %p413 = scmp.eq.s32.totalorder %s77, 0
      %p414 = por %p412, %p413
      %p415 = scmp.ne.s32.totalorder %s403, %s404
      %p416 = scmp.eq.s32.totalorder %s78, 1
      %p417 = por %p415, %p416
      %p419 = scmp.ne.s32.totalorder %s404, %s418
      %p420 = scmp.eq.s32.totalorder %s78, 0
      %p421 = por %p419, %p420
      %s423 = sadd.s32 %s422, 1
      %p426 = scmp.eq.s32.totalorder %s72, 1
      %p427 = scmp.ne.s32.totalorder %s422, %s424
      %p428 = scmp.eq.s32.totalorder %s72, 0
      %p429 = por %p427, %p428
      %p430 = scmp.ne.s32.totalorder %s422, %s424
      %p431 = scmp.eq.s32.totalorder %s77, 1
      %p432 = por %p430, %p431
      %p433 = scmp.ne.s32.totalorder %s424, %s425
      %p434 = scmp.eq.s32.totalorder %s77, 0
      %p435 = por %p433, %p434
      %p436 = scmp.ne.s32.totalorder %s424, %s425
      %p437 = scmp.eq.s32.totalorder %s78, 1
      %p438 = por %p436, %p437
      %p440 = scmp.ne.s32.totalorder %s425, %s439
      %p441 = scmp.eq.s32.totalorder %s78, 0
      %p442 = por %p440, %p441
      %s444 = sadd.s32 %s443, 1
      %p447 = scmp.eq.s32.totalorder %s72, 1
      %p448 = scmp.ne.s32.totalorder %s443, %s445
      %p449 = scmp.eq.s32.totalorder %s72, 0
      %p450 = por %p448, %p449
      %p451 = scmp.ne.s32.totalorder %s443, %s445
      %p452 = scmp.eq.s32.totalorder %s77, 1
      %p453 = por %p451, %p452
      %p454 = scmp.ne.s32.totalorder %s445, %s446
      %p455 = scmp.eq.s32.totalorder %s77, 0
      %p456 = por %p454, %p455
      %p457 = scmp.ne.s32.totalorder %s445, %s446
      %p458 = scmp.eq.s32.totalorder %s78, 1
      %p459 = por %p457, %p458
      %p461 = scmp.ne.s32.totalorder %s446, %s460
      %p462 = scmp.eq.s32.totalorder %s78, 0
      %p463 = por %p461, %p462
      %s465 = sadd.s32 %s464, 1
      %p468 = scmp.eq.s32.totalorder %s72, 1
      %p469 = scmp.ne.s32.totalorder %s464, %s466
      %p470 = scmp.eq.s32.totalorder %s72, 0
      %p471 = por %p469, %p470
      %p472 = scmp.ne.s32.totalorder %s464, %s466
      %p473 = scmp.eq.s32.totalorder %s77, 1
      %p474 = por %p472, %p473
      %p475 = scmp.ne.s32.totalorder %s466, %s467
      %p476 = scmp.eq.s32.totalorder %s77, 0
      %p477 = por %p475, %p476
      %p478 = scmp.ne.s32.totalorder %s466, %s467
      %p479 = scmp.eq.s32.totalorder %s78, 1
      %p480 = por %p478, %p479
      %p482 = scmp.ne.s32.totalorder %s467, %s481
      %p483 = scmp.eq.s32.totalorder %s78, 0
      %p484 = por %p482, %p483
      %s486 = sadd.s32 %s485, 1
      %p489 = scmp.eq.s32.totalorder %s72, 1
      %p490 = scmp.ne.s32.totalorder %s485, %s487
      %p491 = scmp.eq.s32.totalorder %s72, 0
      %p492 = por %p490, %p491
      %p493 = scmp.ne.s32.totalorder %s485, %s487
      %p494 = scmp.eq.s32.totalorder %s77, 1
      %p495 = por %p493, %p494
      %p496 = scmp.ne.s32.totalorder %s487, %s488
      %p497 = scmp.eq.s32.totalorder %s77, 0
      %p498 = por %p496, %p497
      %p499 = scmp.ne.s32.totalorder %s487, %s488
      %p500 = scmp.eq.s32.totalorder %s78, 1
      %p501 = por %p499, %p500
      %p503 = scmp.ne.s32.totalorder %s488, %s502
      %p504 = scmp.eq.s32.totalorder %s78, 0
      %p505 = por %p503, %p504
      %s507 = sadd.s32 %s506, 1
      %p510 = scmp.eq.s32.totalorder %s72, 1
      %p511 = scmp.ne.s32.totalorder %s506, %s508
      %p512 = scmp.eq.s32.totalorder %s72, 0
      %p513 = por %p511, %p512
      %p514 = scmp.ne.s32.totalorder %s506, %s508
      %p515 = scmp.eq.s32.totalorder %s77, 1
      %p516 = por %p514, %p515
      %p517 = scmp.ne.s32.totalorder %s508, %s509
      %p518 = scmp.eq.s32.totalorder %s77, 0
      %p519 = por %p517, %p518
      %p520 = scmp.ne.s32.totalorder %s508, %s509
      %p521 = scmp.eq.s32.totalorder %s78, 1
      %p522 = por %p520, %p521
      %p524 = scmp.ne.s32.totalorder %s509, %s523
      %p525 = scmp.eq.s32.totalorder %s78, 0
      %p526 = por %p524, %p525
      %s528 = sadd.s32 %s527, 1
      %p531 = scmp.eq.s32.totalorder %s72, 1
      %p532 = scmp.ne.s32.totalorder %s527, %s529
      %p533 = scmp.eq.s32.totalorder %s72, 0
      %p534 = por %p532, %p533
      %p535 = scmp.ne.s32.totalorder %s527, %s529
      %p536 = scmp.eq.s32.totalorder %s77, 1
      %p537 = por %p535, %p536
      %p538 = scmp.ne.s32.totalorder %s529, %s530
      %p539 = scmp.eq.s32.totalorder %s77, 0
      %p540 = por %p538, %p539
      %p541 = scmp.ne.s32.totalorder %s529, %s530
      %p542 = scmp.eq.s32.totalorder %s78, 1
      %p543 = por %p541, %p542
      %p545 = scmp.ne.s32.totalorder %s530, %s544
      %p546 = scmp.eq.s32.totalorder %s78, 0
      %p547 = por %p545, %p546
      %s549 = sadd.s32 %s548, 1
      %p552 = scmp.eq.s32.totalorder %s72, 1
      %p553 = scmp.ne.s32.totalorder %s548, %s550
      %p554 = scmp.eq.s32.totalorder %s72, 0
      %p555 = por %p553, %p554
      %p556 = scmp.ne.s32.totalorder %s548, %s550
      %p557 = scmp.eq.s32.totalorder %s77, 1
      %p558 = por %p556, %p557
      %p559 = scmp.ne.s32.totalorder %s550, %s551
      %p560 = scmp.eq.s32.totalorder %s77, 0
      %p561 = por %p559, %p560
      %p562 = scmp.ne.s32.totalorder %s550, %s551
      %p563 = scmp.eq.s32.totalorder %s78, 1
      %p564 = por %p562, %p563
      %p566 = scmp.ne.s32.totalorder %s551, %s565
      %p567 = scmp.eq.s32.totalorder %s78, 0
      %p568 = por %p566, %p567
      %s570 = sadd.s32 %s569, 1
      %p573 = scmp.eq.s32.totalorder %s72, 1
      %p574 = scmp.ne.s32.totalorder %s569, %s571
      %p575 = scmp.eq.s32.totalorder %s72, 0
      %p576 = por %p574, %p575
      %p577 = scmp.ne.s32.totalorder %s569, %s571
      %p578 = scmp.eq.s32.totalorder %s77, 1
      %p579 = por %p577, %p578
      %p580 = scmp.ne.s32.totalorder %s571, %s572
      %p581 = scmp.eq.s32.totalorder %s77, 0
      %p582 = por %p580, %p581
      %p583 = scmp.ne.s32.totalorder %s571, %s572
      %p584 = scmp.eq.s32.totalorder %s78, 1
      %p585 = por %p583, %p584
      %p587 = scmp.ne.s32.totalorder %s572, %s586
      %p588 = scmp.eq.s32.totalorder %s78, 0
      %p589 = por %p587, %p588
      %s591 = sadd.s32 %s590, 1
      %p594 = scmp.eq.s32.totalorder %s72, 1
      %p595 = scmp.ne.s32.totalorder %s590, %s592
      %p596 = scmp.eq.s32.totalorder %s72, 0
      %p597 = por %p595, %p596
      %p598 = scmp.ne.s32.totalorder %s590, %s592
      %p599 = scmp.eq.s32.totalorder %s77, 1
      %p600 = por %p598, %p599
      %p601 = scmp.ne.s32.totalorder %s592, %s593
      %p602 = scmp.eq.s32.totalorder %s77, 0
      %p603 = por %p601, %p602
      %p604 = scmp.ne.s32.totalorder %s592, %s593
      %p605 = scmp.eq.s32.totalorder %s78, 1
      %p606 = por %p604, %p605
      %p608 = scmp.ne.s32.totalorder %s593, %s607
      %p609 = scmp.eq.s32.totalorder %s78, 0
      %p610 = por %p608, %p609
      %s612 = sadd.s32 %s611, 1
      %p615 = scmp.eq.s32.totalorder %s72, 1
      %p616 = scmp.ne.s32.totalorder %s611, %s613
      %p617 = scmp.eq.s32.totalorder %s72, 0
      %p618 = por %p616, %p617
      %p619 = scmp.ne.s32.totalorder %s611, %s613
      %p620 = scmp.eq.s32.totalorder %s77, 1
      %p621 = por %p619, %p620
      %p622 = scmp.ne.s32.totalorder %s613, %s614
      %p623 = scmp.eq.s32.totalorder %s77, 0
      %p624 = por %p622, %p623
      %p625 = scmp.ne.s32.totalorder %s613, %s614
      %p626 = scmp.eq.s32.totalorder %s78, 1
      %p627 = por %p625, %p626
      %p629 = scmp.ne.s32.totalorder %s614, %s628
      %p630 = scmp.eq.s32.totalorder %s78, 0
      %p631 = por %p629, %p630
      %s633 = sadd.s32 %s632, 1
      %p636 = scmp.eq.s32.totalorder %s72, 1
      %p637 = scmp.ne.s32.totalorder %s632, %s634
      %p638 = scmp.eq.s32.totalorder %s72, 0
      %p639 = por %p637, %p638
      %p640 = scmp.ne.s32.totalorder %s632, %s634
      %p641 = scmp.eq.s32.totalorder %s77, 1
      %p642 = por %p640, %p641
      %p643 = scmp.ne.s32.totalorder %s634, %s635
      %p644 = scmp.eq.s32.totalorder %s77, 0
      %p645 = por %p643, %p644
      %p646 = scmp.ne.s32.totalorder %s634, %s635
      %p647 = scmp.eq.s32.totalorder %s78, 1
      %p648 = por %p646, %p647
      %p650 = scmp.ne.s32.totalorder %s635, %s649
      %p651 = scmp.eq.s32.totalorder %s78, 0
      %p652 = por %p650, %p651
      %s654 = sadd.s32 %s653, 1
      %p657 = scmp.eq.s32.totalorder %s72, 1
      %p658 = scmp.ne.s32.totalorder %s653, %s655
      %p659 = scmp.eq.s32.totalorder %s72, 0
      %p660 = por %p658, %p659
      %p661 = scmp.ne.s32.totalorder %s653, %s655
      %p662 = scmp.eq.s32.totalorder %s77, 1
      %p663 = por %p661, %p662
      %p664 = scmp.ne.s32.totalorder %s655, %s656
      %p665 = scmp.eq.s32.totalorder %s77, 0
      %p666 = por %p664, %p665
      %p667 = scmp.ne.s32.totalorder %s655, %s656
      %p668 = scmp.eq.s32.totalorder %s78, 1
      %p669 = por %p667, %p668
      %p671 = scmp.ne.s32.totalorder %s656, %s670
      %p672 = scmp.eq.s32.totalorder %s78, 0
      %p673 = por %p671, %p672
      %s675 = sadd.s32 %s674, 1
      %p678 = scmp.eq.s32.totalorder %s72, 1
      %p679 = scmp.ne.s32.totalorder %s674, %s676
      %p680 = scmp.eq.s32.totalorder %s72, 0
      %p681 = por %p679, %p680
      %p682 = scmp.ne.s32.totalorder %s674, %s676
      %p683 = scmp.eq.s32.totalorder %s77, 1
      %p684 = por %p682, %p683
      %p685 = scmp.ne.s32.totalorder %s676, %s677
      %p686 = scmp.eq.s32.totalorder %s77, 0
      %p687 = por %p685, %p686
      %p688 = scmp.ne.s32.totalorder %s676, %s677
      %p689 = scmp.eq.s32.totalorder %s78, 1
      %p690 = por %p688, %p689
      %p692 = scmp.ne.s32.totalorder %s677, %s691
      %p693 = scmp.eq.s32.totalorder %s78, 0
      %p694 = por %p692, %p693
      %s696 = sadd.s32 %s695, 1
      %p699 = scmp.eq.s32.totalorder %s72, 1
      %p700 = scmp.ne.s32.totalorder %s695, %s697
      %p701 = scmp.eq.s32.totalorder %s72, 0
      %p702 = por %p700, %p701
      %p703 = scmp.ne.s32.totalorder %s695, %s697
      %p704 = scmp.eq.s32.totalorder %s77, 1
      %p705 = por %p703, %p704
      %p706 = scmp.ne.s32.totalorder %s697, %s698
      %p707 = scmp.eq.s32.totalorder %s77, 0
      %p708 = por %p706, %p707
      %p709 = scmp.ne.s32.totalorder %s697, %s698
      %p710 = scmp.eq.s32.totalorder %s78, 1
      %p711 = por %p709, %p710
      %p713 = scmp.ne.s32.totalorder %s698, %s712
      %p714 = scmp.eq.s32.totalorder %s78, 0
      %p715 = por %p713, %p714
      %s717 = sadd.s32 %s716, 1
      %p720 = scmp.eq.s32.totalorder %s72, 1
      %p721 = scmp.ne.s32.totalorder %s716, %s718
      %p722 = scmp.eq.s32.totalorder %s72, 0
      %p723 = por %p721, %p722
      %p724 = scmp.ne.s32.totalorder %s716, %s718
      %p725 = scmp.eq.s32.totalorder %s77, 1
      %p726 = por %p724, %p725
      %p727 = scmp.ne.s32.totalorder %s718, %s719
      %p728 = scmp.eq.s32.totalorder %s77, 0
      %p729 = por %p727, %p728
      %p730 = scmp.ne.s32.totalorder %s718, %s719
      %p731 = scmp.eq.s32.totalorder %s78, 1
      %p732 = por %p730, %p731
      %p734 = scmp.ne.s32.totalorder %s719, %s733
      %p735 = scmp.eq.s32.totalorder %s78, 0
      %p736 = por %p734, %p735
      %s738 = sadd.s32 %s737, 1
      %p741 = scmp.eq.s32.totalorder %s72, 1
      %p742 = scmp.ne.s32.totalorder %s737, %s739
      %p743 = scmp.eq.s32.totalorder %s72, 0
      %p744 = por %p742, %p743
      %p745 = scmp.ne.s32.totalorder %s737, %s739
      %p746 = scmp.eq.s32.totalorder %s77, 1
      %p747 = por %p745, %p746
      %p748 = scmp.ne.s32.totalorder %s739, %s740
      %p749 = scmp.eq.s32.totalorder %s77, 0
      %p750 = por %p748, %p749
      %p751 = scmp.ne.s32.totalorder %s739, %s740
      %p752 = scmp.eq.s32.totalorder %s78, 1
      %p753 = por %p751, %p752
      %p755 = scmp.ne.s32.totalorder %s740, %s754
      %p756 = scmp.eq.s32.totalorder %s78, 0
      %p757 = por %p755, %p756
      %s758 = ssub.s32 %s79, %s91
      %s759 = ssub.s32 %s80, %s87
      %s760 = sor.u32 %s758, %s759
      %p761 = scmp.eq.s32.totalorder %s760, 0
      %s763 = sadd.s32 %s762, 1
      %s764 = scalar_select %p761, %s762, %s763
      %p767 = pneg %p761
      %p768 = scmp.eq.s32.totalorder %s72, 1
      %p769 = por %p767, %p768
      %p770 = scmp.ne.s32.totalorder %s762, %s765
      %p771 = scmp.eq.s32.totalorder %s72, 0
      %p772 = por %p770, %p771
      %p773 = scmp.ne.s32.totalorder %s762, %s765
      %p774 = scmp.eq.s32.totalorder %s77, 1
      %p775 = por %p773, %p774
      %p776 = scmp.ne.s32.totalorder %s765, %s766
      %p777 = scmp.eq.s32.totalorder %s77, 0
      %p778 = por %p776, %p777
      %p779 = scmp.ne.s32.totalorder %s765, %s766
      %p780 = scmp.eq.s32.totalorder %s78, 1
      %p781 = por %p779, %p780
      %p783 = scmp.ne.s32.totalorder %s766, %s782
      %p784 = scmp.eq.s32.totalorder %s78, 0
      %p785 = por %p783, %p784
      %p786 = scmp.le.s32.totalorder 1, %s72
      %p787 = scmp.lt.s32.totalorder %s72, 3
      %p788 = pnand %p786, %p787
      %p789 = pneg %p788
      // Predicated region
      $region9: #{tpu_custom_call.1} parent=5 // pred_check
        _
      $region10: #{tpu_custom_call.1} parent=5 // pred_check_branch
        %791 = sbr.rel (%p788) target = $region12
      $region11: #{tpu_custom_call.1} parent=5 // pred_region
        %s792 = ssub.s32 %s72, 1
        // Predicated region
        $region13: #{tpu_custom_call.1} parent=11 // pred_check
          %p793 = pneg %p183
        $region14: #{tpu_custom_call.1} parent=11 // pred_check_branch
          %795 = sbr.rel (%p793) target = $region16
        $region15: #{tpu_custom_call.1} parent=11 // pred_region
          _
        $region16: #{tpu_custom_call.1} parent=11 // pred_fallthru
          _
        // Predicated region
        $region17: #{tpu_custom_call.1} parent=11 // pred_check
          %p796 = pneg %p204
        $region18: #{tpu_custom_call.1} parent=11 // pred_check_branch
          %798 = sbr.rel (%p796) target = $region20
        $region19: #{tpu_custom_call.1} parent=11 // pred_region
          _
        $region20: #{tpu_custom_call.1} parent=11 // pred_fallthru
          _
        // Predicated region
        $region21: #{tpu_custom_call.1} parent=11 // pred_check
          %p799 = pneg %p225
        $region22: #{tpu_custom_call.1} parent=11 // pred_check_branch
          %801 = sbr.rel (%p799) target = $region24
        $region23: #{tpu_custom_call.1} parent=11 // pred_region
          _
        $region24: #{tpu_custom_call.1} parent=11 // pred_fallthru
          _
        // Predicated region
        $region25: #{tpu_custom_call.1} parent=11 // pred_check
          %p802 = pneg %p246
        $region26: #{tpu_custom_call.1} parent=11 // pred_check_branch
          %804 = sbr.rel (%p802) target = $region28
        $region27: #{tpu_custom_call.1} parent=11 // pred_region
          _
        $region28: #{tpu_custom_call.1} parent=11 // pred_fallthru
          _
        // Predicated region
        $region29: #{tpu_custom_call.1} parent=11 // pred_check
          %p805 = pneg %p267
        $region30: #{tpu_custom_call.1} parent=11 // pred_check_branch
          %807 = sbr.rel (%p805) target = $region32
        $region31: #{tpu_custom_call.1} parent=11 // pred_region
          _
        $region32: #{tpu_custom_call.1} parent=11 // pred_fallthru
          _
        // Predicated region
        $region33: #{tpu_custom_call.1} parent=11 // pred_check
          %p808 = pneg %p288
        $region34: #{tpu_custom_call.1} parent=11 // pred_check_branch
          %810 = sbr.rel (%p808) target = $region36
        $region35: #{tpu_custom_call.1} parent=11 // pred_region
          _
        $region36: #{tpu_custom_call.1} parent=11 // pred_fallthru
          _
        // Predicated region
        $region37: #{tpu_custom_call.1} parent=11 // pred_check
          %p811 = pneg %p309
        $region38: #{tpu_custom_call.1} parent=11 // pred_check_branch
          %813 = sbr.rel (%p811) target = $region40
        $region39: #{tpu_custom_call.1} parent=11 // pred_region
          _
        $region40: #{tpu_custom_call.1} parent=11 // pred_fallthru
          _
        // Predicated region
        $region41: #{tpu_custom_call.1} parent=11 // pred_check
          %p814 = pneg %p330
        $region42: #{tpu_custom_call.1} parent=11 // pred_check_branch
          %816 = sbr.rel (%p814) target = $region44
        $region43: #{tpu_custom_call.1} parent=11 // pred_region
          _
        $region44: #{tpu_custom_call.1} parent=11 // pred_fallthru
          _
        // Predicated region
        $region45: #{tpu_custom_call.1} parent=11 // pred_check
          %p817 = pneg %p351
        $region46: #{tpu_custom_call.1} parent=11 // pred_check_branch
          %819 = sbr.rel (%p817) target = $region48
        $region47: #{tpu_custom_call.1} parent=11 // pred_region
          _
        $region48: #{tpu_custom_call.1} parent=11 // pred_fallthru
          _
        // Predicated region
        $region49: #{tpu_custom_call.1} parent=11 // pred_check
          %p820 = pneg %p372
        $region50: #{tpu_custom_call.1} parent=11 // pred_check_branch
          %822 = sbr.rel (%p820) target = $region52
        $region51: #{tpu_custom_call.1} parent=11 // pred_region
          _
        $region52: #{tpu_custom_call.1} parent=11 // pred_fallthru
          _
        // Predicated region
        $region53: #{tpu_custom_call.1} parent=11 // pred_check
          %p823 = pneg %p393
        $region54: #{tpu_custom_call.1} parent=11 // pred_check_branch
          %825 = sbr.rel (%p823) target = $region56
        $region55: #{tpu_custom_call.1} parent=11 // pred_region
          _
        $region56: #{tpu_custom_call.1} parent=11 // pred_fallthru
          _
        // Predicated region
        $region57: #{tpu_custom_call.1} parent=11 // pred_check
          %p826 = pneg %p414
        $region58: #{tpu_custom_call.1} parent=11 // pred_check_branch
          %828 = sbr.rel (%p826) target = $region60
        $region59: #{tpu_custom_call.1} parent=11 // pred_region
          _
        $region60: #{tpu_custom_call.1} parent=11 // pred_fallthru
          _
        // Predicated region
        $region61: #{tpu_custom_call.1} parent=11 // pred_check
          %p829 = pneg %p435
        $region62: #{tpu_custom_call.1} parent=11 // pred_check_branch
          %831 = sbr.rel (%p829) target = $region64
        $region63: #{tpu_custom_call.1} parent=11 // pred_region
          _
        $region64: #{tpu_custom_call.1} parent=11 // pred_fallthru
          _
        // Predicated region
        $region65: #{tpu_custom_call.1} parent=11 // pred_check
          %p832 = pneg %p456
        $region66: #{tpu_custom_call.1} parent=11 // pred_check_branch
          %834 = sbr.rel (%p832) target = $region68
        $region67: #{tpu_custom_call.1} parent=11 // pred_region
          _
        $region68: #{tpu_custom_call.1} parent=11 // pred_fallthru
          _
        // Predicated region
        $region69: #{tpu_custom_call.1} parent=11 // pred_check
          %p835 = pneg %p477
        $region70: #{tpu_custom_call.1} parent=11 // pred_check_branch
          %837 = sbr.rel (%p835) target = $region72
        $region71: #{tpu_custom_call.1} parent=11 // pred_region
          _
        $region72: #{tpu_custom_call.1} parent=11 // pred_fallthru
          _
        // Predicated region
        $region73: #{tpu_custom_call.1} parent=11 // pred_check
          %p838 = pneg %p498
        $region74: #{tpu_custom_call.1} parent=11 // pred_check_branch
          %840 = sbr.rel (%p838) target = $region76
        $region75: #{tpu_custom_call.1} parent=11 // pred_region
          _
        $region76: #{tpu_custom_call.1} parent=11 // pred_fallthru
          _
        // Predicated region
        $region77: #{tpu_custom_call.1} parent=11 // pred_check
          %p841 = pneg %p519
        $region78: #{tpu_custom_call.1} parent=11 // pred_check_branch
          %843 = sbr.rel (%p841) target = $region80
        $region79: #{tpu_custom_call.1} parent=11 // pred_region
          _
        $region80: #{tpu_custom_call.1} parent=11 // pred_fallthru
          _
        // Predicated region
        $region81: #{tpu_custom_call.1} parent=11 // pred_check
          %p844 = pneg %p540
        $region82: #{tpu_custom_call.1} parent=11 // pred_check_branch
          %846 = sbr.rel (%p844) target = $region84
        $region83: #{tpu_custom_call.1} parent=11 // pred_region
          _
        $region84: #{tpu_custom_call.1} parent=11 // pred_fallthru
          _
        // Predicated region
        $region85: #{tpu_custom_call.1} parent=11 // pred_check
          %p847 = pneg %p561
        $region86: #{tpu_custom_call.1} parent=11 // pred_check_branch
          %849 = sbr.rel (%p847) target = $region88
        $region87: #{tpu_custom_call.1} parent=11 // pred_region
          _
        $region88: #{tpu_custom_call.1} parent=11 // pred_fallthru
          _
        // Predicated region
        $region89: #{tpu_custom_call.1} parent=11 // pred_check
          %p850 = pneg %p582
        $region90: #{tpu_custom_call.1} parent=11 // pred_check_branch
          %852 = sbr.rel (%p850) target = $region92
        $region91: #{tpu_custom_call.1} parent=11 // pred_region
          _
        $region92: #{tpu_custom_call.1} parent=11 // pred_fallthru
          _
        // Predicated region
        $region93: #{tpu_custom_call.1} parent=11 // pred_check
          %p853 = pneg %p603
        $region94: #{tpu_custom_call.1} parent=11 // pred_check_branch
          %855 = sbr.rel (%p853) target = $region96
        $region95: #{tpu_custom_call.1} parent=11 // pred_region
          _
        $region96: #{tpu_custom_call.1} parent=11 // pred_fallthru
          _
        // Predicated region
        $region97: #{tpu_custom_call.1} parent=11 // pred_check
          %p856 = pneg %p624
        $region98: #{tpu_custom_call.1} parent=11 // pred_check_branch
          %858 = sbr.rel (%p856) target = $region100
        $region99: #{tpu_custom_call.1} parent=11 // pred_region
          _
        $region100: #{tpu_custom_call.1} parent=11 // pred_fallthru
          _
        // Predicated region
        $region101: #{tpu_custom_call.1} parent=11 // pred_check
          %p859 = pneg %p645
        $region102: #{tpu_custom_call.1} parent=11 // pred_check_branch
          %861 = sbr.rel (%p859) target = $region104
        $region103: #{tpu_custom_call.1} parent=11 // pred_region
          _
        $region104: #{tpu_custom_call.1} parent=11 // pred_fallthru
          _
        // Predicated region
        $region105: #{tpu_custom_call.1} parent=11 // pred_check
          %p862 = pneg %p666
        $region106: #{tpu_custom_call.1} parent=11 // pred_check_branch
          %864 = sbr.rel (%p862) target = $region108
        $region107: #{tpu_custom_call.1} parent=11 // pred_region
          _
        $region108: #{tpu_custom_call.1} parent=11 // pred_fallthru
          _
        // Predicated region
        $region109: #{tpu_custom_call.1} parent=11 // pred_check
          %p865 = pneg %p687
        $region110: #{tpu_custom_call.1} parent=11 // pred_check_branch
          %867 = sbr.rel (%p865) target = $region112
        $region111: #{tpu_custom_call.1} parent=11 // pred_region
          _
        $region112: #{tpu_custom_call.1} parent=11 // pred_fallthru
          _
        // Predicated region
        $region113: #{tpu_custom_call.1} parent=11 // pred_check
          %p868 = pneg %p708
        $region114: #{tpu_custom_call.1} parent=11 // pred_check_branch
          %870 = sbr.rel (%p868) target = $region116
        $region115: #{tpu_custom_call.1} parent=11 // pred_region
          _
        $region116: #{tpu_custom_call.1} parent=11 // pred_fallthru
          _
        // Predicated region
        $region117: #{tpu_custom_call.1} parent=11 // pred_check
          %p871 = pneg %p729
        $region118: #{tpu_custom_call.1} parent=11 // pred_check_branch
          %873 = sbr.rel (%p871) target = $region120
        $region119: #{tpu_custom_call.1} parent=11 // pred_region
          _
        $region120: #{tpu_custom_call.1} parent=11 // pred_fallthru
          _
        // Predicated region
        $region121: #{tpu_custom_call.1} parent=11 // pred_check
          %p874 = pneg %p750
        $region122: #{tpu_custom_call.1} parent=11 // pred_check_branch
          %876 = sbr.rel (%p874) target = $region124
        $region123: #{tpu_custom_call.1} parent=11 // pred_region
          _
        $region124: #{tpu_custom_call.1} parent=11 // pred_fallthru
          _
      $region12: #{tpu_custom_call.1} parent=5 // pred_fallthru
        _
      %p877 = scmp.lt.s32.totalorder %s72, 2
      // Predicated region
      $region125: #{tpu_custom_call.1} parent=5 // pred_check
        %p878 = pneg %p877
      $region126: #{tpu_custom_call.1} parent=5 // pred_check_branch
        %880 = sbr.rel (%p878) target = $region128
      $region127: #{tpu_custom_call.1} parent=5 // pred_region
        // Predicated region
        $region129: #{tpu_custom_call.1} parent=127 // pred_check
          %p881 = pneg %p104
        $region130: #{tpu_custom_call.1} parent=127 // pred_check_branch
          %883 = sbr.rel (%p881) target = $region132
        $region131: #{tpu_custom_call.1} parent=127 // pred_region
          %p884 = scmp.lt.s32.totalorder %s79, 1
          %s885 = scalar_select %p884, %s79, 1
          %s886 = smul.addr %s885, 8
          %s887 = scalar_lea.vmem %s1, %s886
        $region132: #{tpu_custom_call.1} parent=127 // pred_fallthru
          _
        // Predicated region
        $region133: #{tpu_custom_call.1} parent=127 // pred_check
          %p888 = pneg %p130
        $region134: #{tpu_custom_call.1} parent=127 // pred_check_branch
          %890 = sbr.rel (%p888) target = $region136
        $region135: #{tpu_custom_call.1} parent=127 // pred_region
          %p891 = scmp.lt.s32.totalorder %s79, 1
          %s892 = scalar_select %p891, %s79, 1
          %s893 = scalar_lea.vmem %s3, %s892
        $region136: #{tpu_custom_call.1} parent=127 // pred_fallthru
          _
        // Predicated region
        $region137: #{tpu_custom_call.1} parent=127 // pred_check
          %p894 = pneg %p156
        $region138: #{tpu_custom_call.1} parent=127 // pred_check_branch
          %896 = sbr.rel (%p894) target = $region140
        $region139: #{tpu_custom_call.1} parent=127 // pred_region
          %p897 = scmp.lt.s32.totalorder %s79, 1
          %s898 = scalar_select %p897, %s79, 1
          %s899 = smul.addr %s898, 8
          %s900 = scalar_lea.vmem %s5, %s899
        $region140: #{tpu_custom_call.1} parent=127 // pred_fallthru
          _
      $region128: #{tpu_custom_call.1} parent=5 // pred_fallthru
        _
      %p901 = scmp.le.s32.totalorder 1, %s72
      %p902 = scmp.lt.s32.totalorder %s72, 3
      %p903 = pnand %p901, %p902
      %p904 = pneg %p903
      // Predicated region
      $region141: #{tpu_custom_call.1} parent=5 // pred_check
        _
      $region142: #{tpu_custom_call.1} parent=5 // pred_check_branch
        %906 = sbr.rel (%p903) target = $region144
      $region143: #{tpu_custom_call.1} parent=5 // pred_region
        %s907 = ssub.s32 %s72, 1
        %p908 = scmp.lt.s32.totalorder %s81, 1
        %s909 = scalar_select %p908, %s81, 1
        %s910 = smul.addr %s909, 8
        %s911 = scalar_lea.vmem %s1, %s910
        %p912 = pneg %p110
        %p913 = pneg %p107
        %p914 = scmp.lt.s32.totalorder %s81, 1
        %s915 = scalar_select %p914, %s81, 1
        %s916 = scalar_lea.vmem %s3, %s915
        %p917 = pneg %p136
        %p918 = pneg %p133
        %p919 = scmp.lt.s32.totalorder %s81, 1
        %s920 = scalar_select %p919, %s81, 1
        %s921 = smul.addr %s920, 8
        %s922 = scalar_lea.vmem %s5, %s921
        %p923 = pneg %p162
        %p924 = pneg %p159
        %p925 = pneg %p183
        %p926 = pneg %p180
        %p927 = pneg %p204
        %p928 = pneg %p201
        %p929 = pneg %p225
        %p930 = pneg %p222
        %p931 = pneg %p246
        %p932 = pneg %p243
        %p933 = pneg %p267
        %p934 = pneg %p264
        %p935 = pneg %p288
        %p936 = pneg %p285
        %p937 = pneg %p309
        %p938 = pneg %p306
        %p939 = pneg %p330
        %p940 = pneg %p327
        %p941 = pneg %p351
        %p942 = pneg %p348
        %p943 = pneg %p372
        %p944 = pneg %p369
        %p945 = pneg %p393
        %p946 = pneg %p390
        %p947 = pneg %p414
        %p948 = pneg %p411
        %p949 = pneg %p435
        %p950 = pneg %p432
        %p951 = pneg %p456
        %p952 = pneg %p453
        %p953 = pneg %p477
        %p954 = pneg %p474
        %p955 = pneg %p498
        %p956 = pneg %p495
        %p957 = pneg %p519
        %p958 = pneg %p516
        %p959 = pneg %p540
        %p960 = pneg %p537
        %p961 = pneg %p561
        %p962 = pneg %p558
        %p963 = pneg %p582
        %p964 = pneg %p579
        %p965 = pneg %p603
        %p966 = pneg %p600
        %p967 = pneg %p624
        %p968 = pneg %p621
        %p969 = pneg %p645
        %p970 = pneg %p642
        %p971 = pneg %p666
        %p972 = pneg %p663
        %p973 = pneg %p687
        %p974 = pneg %p684
        %p975 = pneg %p708
        %p976 = pneg %p705
        %p977 = pneg %p729
        %p978 = pneg %p726
        %p979 = pneg %p750
        %p980 = pneg %p747
        %p981 = pneg %p778
        %p982 = pneg %p775
        %s983 = sand.u32 %s765, 1
        %s984 = scalar_lea.sflag [#allocation8], %s983
        %s985 = sand.u32 %s765, 1
        %s986 = smul.addr %s985, 8
        %s987 = scalar_lea.vmem [#allocation7], %s986
        %p988 = scmp.lt.s32.totalorder %s81, 1
        %s989 = scalar_select %p988, %s81, 1
        %s990 = smul.addr %s989, 8
        %s991 = scalar_lea.vmem %s1, %s990
        %p992 = scmp.lt.s32.totalorder %s81, 1
        %s993 = scalar_select %p992, %s81, 1
        %s994 = scalar_lea.vmem %s3, %s993
        %p995 = scmp.lt.s32.totalorder %s81, 1
        %s996 = scalar_select %p995, %s81, 1
        %s997 = smul.addr %s996, 8
        %s998 = scalar_lea.vmem %s5, %s997
        %p999 = scmp.eq.s32.totalorder %s82, 0
        // Predicated region
        $region145: #{tpu_custom_call.1} parent=143 // pred_check
          %p1000 = pneg %p999
        $region146: #{tpu_custom_call.1} parent=143 // pred_check_branch
          %1002 = sbr.rel (%p1000) target = $region148
        $region147: #{tpu_custom_call.1} parent=143 // pred_region
          %v1003 = vld [vmem:[%s994] sm:$0x1]
          %v1004 = vsub.f32 0.0, %v1003
          %v1005 = vmul.f32 %v1004, 1.442695
          %v1006 = vpow.pop %v1005
          %v1007 = vadd.f32 %v1006, 1.0
          %v1008 = vrcp.pop %v1007
          %v1009 = vmul.f32 %v1003, %v1008
          %v1010 = vld [vmem:[%s7] sm:$0xff]
          %v1011 = vld [vmem:[%s7 + $0x8] sm:$0xff]
          %v1012 = vld [vmem:[%s7 + $0x10] sm:$0xff]
          %v1013 = vld [vmem:[%s7 + $0x18] sm:$0xff]
          %v1014 = vld [vmem:[%s9] sm:$0x1]
          %vm1015 = vcmask 261120
          %v1017 = vsel %vm1015, %v1009, 0
          %1019 = vmatprep.subr.mxu0 0.0
          %1020 = vmatpush1.msra.mxu0 %v1010
          %1021 = vmatprep.subr.mxu0 0.0
          %1022 = vmatpush1.msra.mxu0 %v1011
          %1023 = vmatprep.subr.mxu0 0.0
          %1024 = vmatpush1.msra.mxu0 %v1012
          %1025 = vmatprep.subr.mxu0 0.0
          %1026 = vmatpush1.msra.mxu0 %v1013
          %1027 = vmatprep.subr.mxu0 0.0
          %1028 = vmatpush1.msra.mxu0 0.0
          %1029 = vmatprep.subr.mxu0 0.0
          %1030 = vmatpush1.msra.mxu0 0.0
          %1031 = vmatprep.subr.mxu0 0.0
          %1032 = vmatpush1.msra.mxu0 0.0
          %1033 = vmatprep.subr.mxu0 0.0
          %1034 = vmatpush1.msra.mxu0 0.0
          %1035 = vmatprep.subr.mxu0 0.0
          %1036 = vmatpush1.msra.mxu0 0.0
          %1037 = vmatprep.subr.mxu0 0.0
          %1038 = vmatpush1.msra.mxu0 0.0
          %1039 = vmatprep.subr.mxu0 0.0
          %1040 = vmatpush1.msra.mxu0 0.0
          %1041 = vmatprep.subr.mxu0 0.0
          %1042 = vmatpush1.msra.mxu0 0.0
          %1043 = vmatprep.subr.mxu0 0.0
          %1044 = vmatpush1.msra.mxu0 0.0
          %1045 = vmatprep.subr.mxu0 0.0
          %1046 = vmatpush1.msra.mxu0 0.0
          %1047 = vmatprep.subr.mxu0 0.0
          %1048 = vmatpush1.msra.mxu0 0.0
          %1049 = vmatprep.subr.mxu0 0.0
          %1050 = vmatpush1.msra.mxu0 0.0
          %1051 = vmatprep.subr.mxu0 0.0
          %1052 = vmatpush1.msra.mxu0 0.0
          %1053 = vmatprep.subr.mxu0 0.0
          %1054 = vmatpush1.msra.mxu0 0.0
          %1055 = vmatprep.subr.mxu0 0.0
          %1056 = vmatpush1.msra.mxu0 0.0
          %1057 = vmatprep.subr.mxu0 0.0
          %1058 = vmatpush1.msra.mxu0 0.0
          %1059 = vmatprep.subr.mxu0 0.0
          %1060 = vmatpush1.msra.mxu0 0.0
          %1061 = vmatprep.subr.mxu0 0.0
          %1062 = vmatpush1.msra.mxu0 0.0
          %1063 = vmatprep.subr.mxu0 0.0
          %1064 = vmatpush1.msra.mxu0 0.0
          %1065 = vmatprep.subr.mxu0 0.0
          %1066 = vmatpush1.msra.mxu0 0.0
          %1067 = vmatprep.subr.mxu0 0.0
          %1068 = vmatpush1.msra.mxu0 0.0
          %1069 = vmatprep.subr.mxu0 0.0
          %1070 = vmatpush1.msra.mxu0 0.0
          %1071 = vmatprep.subr.mxu0 0.0
          %1072 = vmatpush1.msra.mxu0 0.0
          %1073 = vmatprep.subr.mxu0 0.0
          %1074 = vmatpush1.msra.mxu0 0.0
          %1075 = vmatprep.subr.mxu0 0.0
          %1076 = vmatpush1.msra.mxu0 0.0
          %1077 = vmatprep.subr.mxu0 0.0
          %1078 = vmatpush1.msra.mxu0 0.0
          %1079 = vmatprep.subr.mxu0 0.0
          %1080 = vmatpush1.msra.mxu0 0.0
          %1081 = vmatprep.subr.mxu0 0.0
          %1082 = vmatpush1.msra.mxu0 0.0
          %1083 = vmatprep.mubr.f32.mxu0 0.0
          %1084 = vmatmul.mubr.f32.gmra.mrb[0].mxu0 %v1017
          %v1085 = vpop.f32.mrb[0].mxu0
          %v1086 = vadd.f32 %v1014, %v1085
          %v1087 = vpop.f32.mrb[0].mxu0
          %1088 = vdwg.mxu0
          %vm1089 = vcmask 253952
          %1090 = vst.msk [vmem:[#allocation2] sm:$0x1] %vm1089, %v1086
          %v1091 = vld [vmem:[%s991] sm:$0xff]
          %v1092 = vld [vmem:[%s11] sm:$0x1]
          %v1093 = vld [vmem:[%s13] sm:$0x1]
          %v1094 = vsel %vm1015, %v1091, 0.0
          %1095 = vadd.xlane.f32.xlu0 %v1094
          %v1096 = vpop.xlane.xlu0 %1095
          %v1097 = vrcp.pop 32.0
          %v1098 = vmul.f32 %v1096, %v1097
          %v1099 = vsub.f32 %v1091, %v1098
          %v1100 = vmul.f32 %v1099, %v1099
          %v1101 = vsel %vm1015, %v1100, 0.0
          %1102 = vadd.xlane.f32.xlu0 %v1101
          %v1103 = vpop.xlane.xlu0 %1102
          %v1104 = vmul.f32 %v1103, %v1097
          %v1105 = vadd.f32 %v1104, 1e-05
          %v1106 = vrsqrt.pop %v1105
          %v1107 = vmul.f32 %v1099, %v1106
          %v1109 = vlaneseq
          %v1110 = vshrl.u32 %v1109, 7
          %v1111 = vsub.s32 0, %v1110
          %v1112 = vrot.slane %v1092, %v1111
          %v1114 = vmul.f32 %v1107, %v1112
          %v1116 = vlaneseq
          %v1117 = vshrl.u32 %v1116, 7
          %v1118 = vsub.s32 0, %v1117
          %v1119 = vrot.slane %v1093, %v1118
          %v1121 = vadd.f32 %v1114, %v1119
          %v1122 = vlaneseq
          %v1123 = vshrl.u32 %v1122, 7
          %v1124 = vsub.s32 0, %v1123
          %v1125 = vrot.slane %v1086, %v1124
          %v1126 = vadd.f32 %v1121, %v1125
          %v1127 = vld [vmem:[%s19] sm:$0xff]
          %v1128 = vld [vmem:[%s19 + $0x8] sm:$0xff]
          %v1129 = vld [vmem:[%s19 + $0x10] sm:$0xff]
          %v1130 = vld [vmem:[%s19 + $0x18] sm:$0xff]
          %v1131 = vld [vmem:[%s21] sm:$0x1]
          %v1133 = vlaneseq
          %v1134 = vshrl.u32 %v1133, 7
          %v1135 = vsub.s32 0, %v1134
          %v1136 = vrot.slane %v1131, %v1135
          %v1139 = vsel %vm1015, %v1126, 0
          %1141 = vmatprep.subr.mxu0 0.0
          %1142 = vmatpush1.msra.mxu0 %v1127
          %1143 = vmatprep.subr.mxu0 0.0
          %1144 = vmatpush1.msra.mxu0 %v1128
          %1145 = vmatprep.subr.mxu0 0.0
          %1146 = vmatpush1.msra.mxu0 %v1129
          %1147 = vmatprep.subr.mxu0 0.0
          %1148 = vmatpush1.msra.mxu0 %v1130
          %1149 = vmatprep.subr.mxu0 0.0
          %1150 = vmatpush1.msra.mxu0 0.0
          %1151 = vmatprep.subr.mxu0 0.0
          %1152 = vmatpush1.msra.mxu0 0.0
          %1153 = vmatprep.subr.mxu0 0.0
          %1154 = vmatpush1.msra.mxu0 0.0
          %1155 = vmatprep.subr.mxu0 0.0
          %1156 = vmatpush1.msra.mxu0 0.0
          %1157 = vmatprep.subr.mxu0 0.0
          %1158 = vmatpush1.msra.mxu0 0.0
          %1159 = vmatprep.subr.mxu0 0.0
          %1160 = vmatpush1.msra.mxu0 0.0
          %1161 = vmatprep.subr.mxu0 0.0
          %1162 = vmatpush1.msra.mxu0 0.0
          %1163 = vmatprep.subr.mxu0 0.0
          %1164 = vmatpush1.msra.mxu0 0.0
          %1165 = vmatprep.subr.mxu0 0.0
          %1166 = vmatpush1.msra.mxu0 0.0
          %1167 = vmatprep.subr.mxu0 0.0
          %1168 = vmatpush1.msra.mxu0 0.0
          %1169 = vmatprep.subr.mxu0 0.0
          %1170 = vmatpush1.msra.mxu0 0.0
          %1171 = vmatprep.subr.mxu0 0.0
          %1172 = vmatpush1.msra.mxu0 0.0
          %1173 = vmatprep.subr.mxu0 0.0
          %1174 = vmatpush1.msra.mxu0 0.0
          %1175 = vmatprep.subr.mxu0 0.0
          %1176 = vmatpush1.msra.mxu0 0.0
          %1177 = vmatprep.subr.mxu0 0.0
          %1178 = vmatpush1.msra.mxu0 0.0
          %1179 = vmatprep.subr.mxu0 0.0
          %1180 = vmatpush1.msra.mxu0 0.0
          %1181 = vmatprep.subr.mxu0 0.0
          %1182 = vmatpush1.msra.mxu0 0.0
          %1183 = vmatprep.subr.mxu0 0.0
          %1184 = vmatpush1.msra.mxu0 0.0
          %1185 = vmatprep.subr.mxu0 0.0
          %1186 = vmatpush1.msra.mxu0 0.0
          %1187 = vmatprep.subr.mxu0 0.0
          %1188 = vmatpush1.msra.mxu0 0.0
          %1189 = vmatprep.subr.mxu0 0.0
          %1190 = vmatpush1.msra.mxu0 0.0
          %1191 = vmatprep.subr.mxu0 0.0
          %1192 = vmatpush1.msra.mxu0 0.0
          %1193 = vmatprep.subr.mxu0 0.0
          %1194 = vmatpush1.msra.mxu0 0.0
          %1195 = vmatprep.subr.mxu0 0.0
          %1196 = vmatpush1.msra.mxu0 0.0
          %1197 = vmatprep.subr.mxu0 0.0
          %1198 = vmatpush1.msra.mxu0 0.0
          %1199 = vmatprep.subr.mxu0 0.0
          %1200 = vmatpush1.msra.mxu0 0.0
          %1201 = vmatprep.subr.mxu0 0.0
          %1202 = vmatpush1.msra.mxu0 0.0
          %1203 = vmatprep.subr.mxu0 0.0
          %1204 = vmatpush1.msra.mxu0 0.0
          %1205 = vmatprep.mubr.f32.mxu0 0.0
          %1206 = vmatmul.mubr.f32.gmra.mrb[0].mxu0 %v1139
          %v1207 = vpop.f32.mrb[0].mxu0
          %v1208 = vadd.f32 %v1136, %v1207
          %v1209 = vpop.f32.mrb[0].mxu0
          %1210 = vdwg.mxu0
          %v1211 = vld [vmem:[%s23] sm:$0xff]
          %v1212 = vld [vmem:[%s23 + $0x8] sm:$0xff]
          %v1213 = vld [vmem:[%s23 + $0x10] sm:$0xff]
          %v1214 = vld [vmem:[%s23 + $0x18] sm:$0xff]
          %v1215 = vld [vmem:[%s25] sm:$0x1]
          %v1217 = vlaneseq
          %v1218 = vshrl.u32 %v1217, 7
          %v1219 = vsub.s32 0, %v1218
          %v1220 = vrot.slane %v1215, %v1219
          %1222 = vmatprep.subr.mxu0 0.0
          %1223 = vmatpush1.msra.mxu0 %v1211
          %1224 = vmatprep.subr.mxu0 0.0
          %1225 = vmatpush1.msra.mxu0 %v1212
          %1226 = vmatprep.subr.mxu0 0.0
          %1227 = vmatpush1.msra.mxu0 %v1213
          %1228 = vmatprep.subr.mxu0 0.0
          %1229 = vmatpush1.msra.mxu0 %v1214
          %1230 = vmatprep.subr.mxu0 0.0
          %1231 = vmatpush1.msra.mxu0 0.0
          %1232 = vmatprep.subr.mxu0 0.0
          %1233 = vmatpush1.msra.mxu0 0.0
          %1234 = vmatprep.subr.mxu0 0.0
          %1235 = vmatpush1.msra.mxu0 0.0
          %1236 = vmatprep.subr.mxu0 0.0
          %1237 = vmatpush1.msra.mxu0 0.0
          %1238 = vmatprep.subr.mxu0 0.0
          %1239 = vmatpush1.msra.mxu0 0.0
          %1240 = vmatprep.subr.mxu0 0.0
          %1241 = vmatpush1.msra.mxu0 0.0
          %1242 = vmatprep.subr.mxu0 0.0
          %1243 = vmatpush1.msra.mxu0 0.0
          %1244 = vmatprep.subr.mxu0 0.0
          %1245 = vmatpush1.msra.mxu0 0.0
          %1246 = vmatprep.subr.mxu0 0.0
          %1247 = vmatpush1.msra.mxu0 0.0
          %1248 = vmatprep.subr.mxu0 0.0
          %1249 = vmatpush1.msra.mxu0 0.0
          %1250 = vmatprep.subr.mxu0 0.0
          %1251 = vmatpush1.msra.mxu0 0.0
          %1252 = vmatprep.subr.mxu0 0.0
          %1253 = vmatpush1.msra.mxu0 0.0
          %1254 = vmatprep.subr.mxu0 0.0
          %1255 = vmatpush1.msra.mxu0 0.0
          %1256 = vmatprep.subr.mxu0 0.0
          %1257 = vmatpush1.msra.mxu0 0.0
          %1258 = vmatprep.subr.mxu0 0.0
          %1259 = vmatpush1.msra.mxu0 0.0
          %1260 = vmatprep.subr.mxu0 0.0
          %1261 = vmatpush1.msra.mxu0 0.0
          %1262 = vmatprep.subr.mxu0 0.0
          %1263 = vmatpush1.msra.mxu0 0.0
          %1264 = vmatprep.subr.mxu0 0.0
          %1265 = vmatpush1.msra.mxu0 0.0
          %1266 = vmatprep.subr.mxu0 0.0
          %1267 = vmatpush1.msra.mxu0 0.0
          %1268 = vmatprep.subr.mxu0 0.0
          %1269 = vmatpush1.msra.mxu0 0.0
          %1270 = vmatprep.subr.mxu0 0.0
          %1271 = vmatpush1.msra.mxu0 0.0
          %1272 = vmatprep.subr.mxu0 0.0
          %1273 = vmatpush1.msra.mxu0 0.0
          %1274 = vmatprep.subr.mxu0 0.0
          %1275 = vmatpush1.msra.mxu0 0.0
          %1276 = vmatprep.subr.mxu0 0.0
          %1277 = vmatpush1.msra.mxu0 0.0
          %1278 = vmatprep.subr.mxu0 0.0
          %1279 = vmatpush1.msra.mxu0 0.0
          %1280 = vmatprep.subr.mxu0 0.0
          %1281 = vmatpush1.msra.mxu0 0.0
          %1282 = vmatprep.subr.mxu0 0.0
          %1283 = vmatpush1.msra.mxu0 0.0
          %1284 = vmatprep.subr.mxu0 0.0
          %1285 = vmatpush1.msra.mxu0 0.0
          %1286 = vmatprep.mubr.f32.mxu0 0.0
          %1287 = vmatmul.mubr.f32.gmra.mrb[0].mxu0 %v1139
          %v1288 = vpop.f32.mrb[0].mxu0
          %v1289 = vadd.f32 %v1220, %v1288
          %v1290 = vpop.f32.mrb[0].mxu0
          %1291 = vdwg.mxu0
          %1293 = vrot.lane.b32.xlu0 %v1208, 120
          %v1294 = vpop.permute.xlu0 %1293
          %1296 = vrot.lane.b32.xlu0 %v1208, 112
          %v1297 = vpop.permute.xlu0 %1296
          %1299 = vrot.lane.b32.xlu0 %v1208, 104
          %v1300 = vpop.permute.xlu0 %1299
          %v1302 = vcombine.low %v1208, %v1297
          %v1303 = vcombine.high %v1208, %v1297
          %v1305 = vunpack.c.l.s4 1983009808
          %v1306 = vunpack.c.0.s8 %v1305
          %v1307 = vlaneseq
          %v1308 = vshrl.u32 %v1307, 7
          %v1309 = vsub.s32 %v1306, %v1308
          %v1310 = vrot.slane %v1302, %v1309
          %v1312 = vunpack.c.l.s4 1983009808
          %v1313 = vunpack.c.0.s8 %v1312
          %v1314 = vlaneseq
          %v1315 = vshrl.u32 %v1314, 7
          %v1316 = vsub.s32 %v1313, %v1315
          %v1317 = vrot.slane %v1303, %v1316
          %v1318 = vcombine.low %v1294, %v1300
          %v1319 = vcombine.high %v1294, %v1300
          %v1321 = vunpack.c.l.s4 1983009808
          %v1322 = vunpack.c.0.s8 %v1321
          %v1323 = vlaneseq
          %v1324 = vshrl.u32 %v1323, 7
          %v1325 = vsub.s32 %v1322, %v1324
          %v1326 = vrot.slane %v1318, %v1325
          %v1328 = vunpack.c.l.s4 1983009808
          %v1329 = vunpack.c.0.s8 %v1328
          %v1330 = vlaneseq
          %v1331 = vshrl.u32 %v1330, 7
          %v1332 = vsub.s32 %v1329, %v1331
          %v1333 = vrot.slane %v1319, %v1332
          %v1334 = vcombine.low %v1310, %v1326
          %v1335 = vcombine.high %v1310, %v1326
          %v1337 = vunpack.c.l.s4 1934713408
          %v1338 = vunpack.c.0.s8 %v1337
          %v1339 = vlaneseq
          %v1340 = vshrl.u32 %v1339, 7
          %v1341 = vsub.s32 %v1338, %v1340
          %v1342 = vrot.slane %v1334, %v1341
          %v1344 = vunpack.c.l.s4 1934713408
          %v1345 = vunpack.c.0.s8 %v1344
          %v1346 = vlaneseq
          %v1347 = vshrl.u32 %v1346, 7
          %v1348 = vsub.s32 %v1345, %v1347
          %v1349 = vrot.slane %v1335, %v1348
          %v1350 = vcombine.low %v1317, %v1333
          %v1351 = vcombine.high %v1317, %v1333
          %v1353 = vunpack.c.l.s4 1934713408
          %v1354 = vunpack.c.0.s8 %v1353
          %v1355 = vlaneseq
          %v1356 = vshrl.u32 %v1355, 7
          %v1357 = vsub.s32 %v1354, %v1356
          %v1358 = vrot.slane %v1350, %v1357
          %v1360 = vunpack.c.l.s4 1934713408
          %v1361 = vunpack.c.0.s8 %v1360
          %v1362 = vlaneseq
          %v1363 = vshrl.u32 %v1362, 7
          %v1364 = vsub.s32 %v1361, %v1363
          %v1365 = vrot.slane %v1351, %v1364
          %v1366 = vcombine.high %v1342, 0.0
          %v1367 = vcombine.high %v1349, 0.0
          %v1368 = vcombine.high %v1358, 0.0
          %v1369 = vcombine.high %v1365, 0.0
          %v1370 = vcombine.low %v1342, %v1349
          %v1372 = vunpack.c.l.s4 1983009808
          %v1373 = vunpack.c.0.s8 %v1372
          %v1374 = vlaneseq
          %v1375 = vshrl.u32 %v1374, 7
          %v1376 = vsub.s32 %v1373, %v1375
          %v1377 = vrot.slane %v1370, %v1376
          %v1378 = vcombine.low %v1366, %v1367
          %v1380 = vunpack.c.l.s4 1983009808
          %v1381 = vunpack.c.0.s8 %v1380
          %v1382 = vlaneseq
          %v1383 = vshrl.u32 %v1382, 7
          %v1384 = vsub.s32 %v1381, %v1383
          %v1385 = vrot.slane %v1378, %v1384
          %v1386 = vcombine.low %v1358, %v1365
          %v1388 = vunpack.c.l.s4 1983009808
          %v1389 = vunpack.c.0.s8 %v1388
          %v1390 = vlaneseq
          %v1391 = vshrl.u32 %v1390, 7
          %v1392 = vsub.s32 %v1389, %v1391
          %v1393 = vrot.slane %v1386, %v1392
          %v1394 = vcombine.low %v1368, %v1369
          %v1396 = vunpack.c.l.s4 1983009808
          %v1397 = vunpack.c.0.s8 %v1396
          %v1398 = vlaneseq
          %v1399 = vshrl.u32 %v1398, 7
          %v1400 = vsub.s32 %v1397, %v1399
          %v1401 = vrot.slane %v1394, %v1400
          %v1402 = vcombine.low %v1377, %v1385
          %v1403 = vcombine.high %v1377, %v1385
          %v1405 = vunpack.c.l.s4 1934713408
          %v1406 = vunpack.c.0.s8 %v1405
          %v1407 = vlaneseq
          %v1408 = vshrl.u32 %v1407, 7
          %v1409 = vsub.s32 %v1406, %v1408
          %v1410 = vrot.slane %v1402, %v1409
          %v1412 = vunpack.c.l.s4 1934713408
          %v1413 = vunpack.c.0.s8 %v1412
          %v1414 = vlaneseq
          %v1415 = vshrl.u32 %v1414, 7
          %v1416 = vsub.s32 %v1413, %v1415
          %v1417 = vrot.slane %v1403, %v1416
          %v1418 = vcombine.low %v1393, %v1401
          %v1419 = vcombine.high %v1393, %v1401
          %v1421 = vunpack.c.l.s4 1934713408
          %v1422 = vunpack.c.0.s8 %v1421
          %v1423 = vlaneseq
          %v1424 = vshrl.u32 %v1423, 7
          %v1425 = vsub.s32 %v1422, %v1424
          %v1426 = vrot.slane %v1418, %v1425
          %v1428 = vunpack.c.l.s4 1934713408
          %v1429 = vunpack.c.0.s8 %v1428
          %v1430 = vlaneseq
          %v1431 = vshrl.u32 %v1430, 7
          %v1432 = vsub.s32 %v1429, %v1431
          %v1433 = vrot.slane %v1419, %v1432
          %v1434 = vcombine.low %v1410, %v1426
          %v1435 = vcombine.high %v1410, %v1426
          %v1436 = vcombine.low %v1417, %v1433
          %v1437 = vcombine.high %v1417, %v1433
          %vm1438 = vcmask 64512
          %1439 = vst.msk [vmem:[#allocation3] sm:$0xff] %vm1438, %v1434
          %1440 = vst.msk [vmem:[#allocation3 + $0x8] sm:$0xff] %vm1438, %v1435
          %1441 = vst.msk [vmem:[#allocation3 + $0x10] sm:$0xff] %vm1438, %v1436
          %1442 = vst.msk [vmem:[#allocation3 + $0x18] sm:$0xff] %vm1438, %v1437
          %1444 = vrot.lane.b32.xlu0 %v1289, 120
          %v1445 = vpop.permute.xlu0 %1444
          %1447 = vrot.lane.b32.xlu0 %v1289, 112
          %v1448 = vpop.permute.xlu0 %1447
          %1450 = vrot.lane.b32.xlu0 %v1289, 104
          %v1451 = vpop.permute.xlu0 %1450
          %v1453 = vcombine.low %v1289, %v1448
          %v1454 = vcombine.high %v1289, %v1448
          %v1456 = vunpack.c.l.s4 1983009808
          %v1457 = vunpack.c.0.s8 %v1456
          %v1458 = vlaneseq
          %v1459 = vshrl.u32 %v1458, 7
          %v1460 = vsub.s32 %v1457, %v1459
          %v1461 = vrot.slane %v1453, %v1460
          %v1463 = vunpack.c.l.s4 1983009808
          %v1464 = vunpack.c.0.s8 %v1463
          %v1465 = vlaneseq
          %v1466 = vshrl.u32 %v1465, 7
          %v1467 = vsub.s32 %v1464, %v1466
          %v1468 = vrot.slane %v1454, %v1467
          %v1469 = vcombine.low %v1445, %v1451
          %v1470 = vcombine.high %v1445, %v1451
          %v1472 = vunpack.c.l.s4 1983009808
          %v1473 = vunpack.c.0.s8 %v1472
          %v1474 = vlaneseq
          %v1475 = vshrl.u32 %v1474, 7
          %v1476 = vsub.s32 %v1473, %v1475
          %v1477 = vrot.slane %v1469, %v1476
          %v1479 = vunpack.c.l.s4 1983009808
          %v1480 = vunpack.c.0.s8 %v1479
          %v1481 = vlaneseq
          %v1482 = vshrl.u32 %v1481, 7
          %v1483 = vsub.s32 %v1480, %v1482
          %v1484 = vrot.slane %v1470, %v1483
          %v1485 = vcombine.low %v1461, %v1477
          %v1486 = vcombine.high %v1461, %v1477
          %v1488 = vunpack.c.l.s4 1934713408
          %v1489 = vunpack.c.0.s8 %v1488
          %v1490 = vlaneseq
          %v1491 = vshrl.u32 %v1490, 7
          %v1492 = vsub.s32 %v1489, %v1491
          %v1493 = vrot.slane %v1485, %v1492
          %v1495 = vunpack.c.l.s4 1934713408
          %v1496 = vunpack.c.0.s8 %v1495
          %v1497 = vlaneseq
          %v1498 = vshrl.u32 %v1497, 7
          %v1499 = vsub.s32 %v1496, %v1498
          %v1500 = vrot.slane %v1486, %v1499
          %v1501 = vcombine.low %v1468, %v1484
          %v1502 = vcombine.high %v1468, %v1484
          %v1504 = vunpack.c.l.s4 1934713408
          %v1505 = vunpack.c.0.s8 %v1504
          %v1506 = vlaneseq
          %v1507 = vshrl.u32 %v1506, 7
          %v1508 = vsub.s32 %v1505, %v1507
          %v1509 = vrot.slane %v1501, %v1508
          %v1511 = vunpack.c.l.s4 1934713408
          %v1512 = vunpack.c.0.s8 %v1511
          %v1513 = vlaneseq
          %v1514 = vshrl.u32 %v1513, 7
          %v1515 = vsub.s32 %v1512, %v1514
          %v1516 = vrot.slane %v1502, %v1515
          %v1517 = vcombine.high %v1493, 0.0
          %v1518 = vcombine.high %v1500, 0.0
          %v1519 = vcombine.high %v1509, 0.0
          %v1520 = vcombine.high %v1516, 0.0
          %v1521 = vcombine.low %v1493, %v1500
          %v1523 = vunpack.c.l.s4 1983009808
          %v1524 = vunpack.c.0.s8 %v1523
          %v1525 = vlaneseq
          %v1526 = vshrl.u32 %v1525, 7
          %v1527 = vsub.s32 %v1524, %v1526
          %v1528 = vrot.slane %v1521, %v1527
          %v1529 = vcombine.low %v1517, %v1518
          %v1531 = vunpack.c.l.s4 1983009808
          %v1532 = vunpack.c.0.s8 %v1531
          %v1533 = vlaneseq
          %v1534 = vshrl.u32 %v1533, 7
          %v1535 = vsub.s32 %v1532, %v1534
          %v1536 = vrot.slane %v1529, %v1535
          %v1537 = vcombine.low %v1509, %v1516
          %v1539 = vunpack.c.l.s4 1983009808
          %v1540 = vunpack.c.0.s8 %v1539
          %v1541 = vlaneseq
          %v1542 = vshrl.u32 %v1541, 7
          %v1543 = vsub.s32 %v1540, %v1542
          %v1544 = vrot.slane %v1537, %v1543
          %v1545 = vcombine.low %v1519, %v1520
          %v1547 = vunpack.c.l.s4 1983009808
          %v1548 = vunpack.c.0.s8 %v1547
          %v1549 = vlaneseq
          %v1550 = vshrl.u32 %v1549, 7
          %v1551 = vsub.s32 %v1548, %v1550
          %v1552 = vrot.slane %v1545, %v1551
          %v1553 = vcombine.low %v1528, %v1536
          %v1554 = vcombine.high %v1528, %v1536
          %v1556 = vunpack.c.l.s4 1934713408
          %v1557 = vunpack.c.0.s8 %v1556
          %v1558 = vlaneseq
          %v1559 = vshrl.u32 %v1558, 7
          %v1560 = vsub.s32 %v1557, %v1559
          %v1561 = vrot.slane %v1553, %v1560
          %v1563 = vunpack.c.l.s4 1934713408
          %v1564 = vunpack.c.0.s8 %v1563
          %v1565 = vlaneseq
          %v1566 = vshrl.u32 %v1565, 7
          %v1567 = vsub.s32 %v1564, %v1566
          %v1568 = vrot.slane %v1554, %v1567
          %v1569 = vcombine.low %v1544, %v1552
          %v1570 = vcombine.high %v1544, %v1552
          %v1572 = vunpack.c.l.s4 1934713408
          %v1573 = vunpack.c.0.s8 %v1572
          %v1574 = vlaneseq
          %v1575 = vshrl.u32 %v1574, 7
          %v1576 = vsub.s32 %v1573, %v1575
          %v1577 = vrot.slane %v1569, %v1576
          %v1579 = vunpack.c.l.s4 1934713408
          %v1580 = vunpack.c.0.s8 %v1579
          %v1581 = vlaneseq
          %v1582 = vshrl.u32 %v1581, 7
          %v1583 = vsub.s32 %v1580, %v1582
          %v1584 = vrot.slane %v1570, %v1583
          %v1585 = vcombine.low %v1561, %v1577
          %v1586 = vcombine.high %v1561, %v1577
          %v1587 = vcombine.low %v1568, %v1584
          %v1588 = vcombine.high %v1568, %v1584
          %1589 = vst.msk [vmem:[#allocation4] sm:$0xff] %vm1438, %v1585
          %1590 = vst.msk [vmem:[#allocation4 + $0x8] sm:$0xff] %vm1438, %v1586
          %1591 = vst.msk [vmem:[#allocation4 + $0x10] sm:$0xff] %vm1438, %v1587
          %1592 = vst.msk [vmem:[#allocation4 + $0x18] sm:$0xff] %vm1438, %v1588
          %v1593 = vld [vmem:[%s998] sm:$0xff]
          %v1594 = vld [vmem:[%s39] sm:$0xff]
          %v1595 = vld [vmem:[%s39 + $0x8] sm:$0xff]
          %v1596 = vld [vmem:[%s39 + $0x10] sm:$0xff]
          %v1597 = vld [vmem:[%s39 + $0x18] sm:$0xff]
          %v1598 = vld [vmem:[%s39 + $0x20] sm:$0xff]
          %v1599 = vld [vmem:[%s39 + $0x28] sm:$0xff]
          %v1600 = vld [vmem:[%s39 + $0x30] sm:$0xff]
          %v1601 = vld [vmem:[%s39 + $0x38] sm:$0xff]
          %v1602 = vld [vmem:[%s41] sm:$0x1]
          %v1604 = vlaneseq
          %v1605 = vshrl.u32 %v1604, 7
          %v1606 = vsub.s32 0, %v1605
          %v1607 = vrot.slane %v1602, %v1606
          %vm1609 = vcmask 523264
          %v1611 = vsel %vm1609, %v1593, 0
          %1613 = vmatprep.subr.mxu0 0.0
          %1614 = vmatpush1.msra.mxu0 %v1594
          %1615 = vmatprep.subr.mxu0 0.0
          %1616 = vmatpush1.msra.mxu0 %v1595
          %1617 = vmatprep.subr.mxu0 0.0
          %1618 = vmatpush1.msra.mxu0 %v1596
          %1619 = vmatprep.subr.mxu0 0.0
          %1620 = vmatpush1.msra.mxu0 %v1597
          %1621 = vmatprep.subr.mxu0 0.0
          %1622 = vmatpush1.msra.mxu0 %v1598
          %1623 = vmatprep.subr.mxu0 0.0
          %1624 = vmatpush1.msra.mxu0 %v1599
          %1625 = vmatprep.subr.mxu0 0.0
          %1626 = vmatpush1.msra.mxu0 %v1600
          %1627 = vmatprep.subr.mxu0 0.0
          %1628 = vmatpush1.msra.mxu0 %v1601
          %1629 = vmatprep.subr.mxu0 0.0
          %1630 = vmatpush1.msra.mxu0 0.0
          %1631 = vmatprep.subr.mxu0 0.0
          %1632 = vmatpush1.msra.mxu0 0.0
          %1633 = vmatprep.subr.mxu0 0.0
          %1634 = vmatpush1.msra.mxu0 0.0
          %1635 = vmatprep.subr.mxu0 0.0
          %1636 = vmatpush1.msra.mxu0 0.0
          %1637 = vmatprep.subr.mxu0 0.0
          %1638 = vmatpush1.msra.mxu0 0.0
          %1639 = vmatprep.subr.mxu0 0.0
          %1640 = vmatpush1.msra.mxu0 0.0
          %1641 = vmatprep.subr.mxu0 0.0
          %1642 = vmatpush1.msra.mxu0 0.0
          %1643 = vmatprep.subr.mxu0 0.0
          %1644 = vmatpush1.msra.mxu0 0.0
          %1645 = vmatprep.subr.mxu0 0.0
          %1646 = vmatpush1.msra.mxu0 0.0
          %1647 = vmatprep.subr.mxu0 0.0
          %1648 = vmatpush1.msra.mxu0 0.0
          %1649 = vmatprep.subr.mxu0 0.0
          %1650 = vmatpush1.msra.mxu0 0.0
          %1651 = vmatprep.subr.mxu0 0.0
          %1652 = vmatpush1.msra.mxu0 0.0
          %1653 = vmatprep.subr.mxu0 0.0
          %1654 = vmatpush1.msra.mxu0 0.0
          %1655 = vmatprep.subr.mxu0 0.0
          %1656 = vmatpush1.msra.mxu0 0.0
          %1657 = vmatprep.subr.mxu0 0.0
          %1658 = vmatpush1.msra.mxu0 0.0
          %1659 = vmatprep.subr.mxu0 0.0
          %1660 = vmatpush1.msra.mxu0 0.0
          %1661 = vmatprep.subr.mxu0 0.0
          %1662 = vmatpush1.msra.mxu0 0.0
          %1663 = vmatprep.subr.mxu0 0.0
          %1664 = vmatpush1.msra.mxu0 0.0
          %1665 = vmatprep.subr.mxu0 0.0
          %1666 = vmatpush1.msra.mxu0 0.0
          %1667 = vmatprep.subr.mxu0 0.0
          %1668 = vmatpush1.msra.mxu0 0.0
          %1669 = vmatprep.subr.mxu0 0.0
          %1670 = vmatpush1.msra.mxu0 0.0
          %1671 = vmatprep.subr.mxu0 0.0
          %1672 = vmatpush1.msra.mxu0 0.0
          %1673 = vmatprep.subr.mxu0 0.0
          %1674 = vmatpush1.msra.mxu0 0.0
          %1675 = vmatprep.subr.mxu0 0.0
          %1676 = vmatpush1.msra.mxu0 0.0
          %1677 = vmatprep.mubr.f32.mxu0 0.0
          %1678 = vmatmul.mubr.f32.gmra.mrb[0].mxu0 %v1611
          %v1679 = vpop.f32.mrb[0].mxu0
          %v1680 = vadd.f32 %v1607, %v1679
          %v1681 = vpop.f32.mrb[0].mxu0
          %1682 = vdwg.mxu0
          %v1683 = vld [vmem:[%s43] sm:$0xff]
          %v1684 = vld [vmem:[%s43 + $0x8] sm:$0xff]
          %v1685 = vld [vmem:[%s43 + $0x10] sm:$0xff]
          %v1686 = vld [vmem:[%s43 + $0x18] sm:$0xff]
          %v1687 = vld [vmem:[%s43 + $0x20] sm:$0xff]
          %v1688 = vld [vmem:[%s43 + $0x28] sm:$0xff]
          %v1689 = vld [vmem:[%s43 + $0x30] sm:$0xff]
          %v1690 = vld [vmem:[%s43 + $0x38] sm:$0xff]
          %v1691 = vld [vmem:[%s45] sm:$0x1]
          %v1693 = vlaneseq
          %v1694 = vshrl.u32 %v1693, 7
          %v1695 = vsub.s32 0, %v1694
          %v1696 = vrot.slane %v1691, %v1695
          %1698 = vmatprep.subr.mxu0 0.0
          %1699 = vmatpush1.msra.mxu0 %v1683
          %1700 = vmatprep.subr.mxu0 0.0
          %1701 = vmatpush1.msra.mxu0 %v1684
          %1702 = vmatprep.subr.mxu0 0.0
          %1703 = vmatpush1.msra.mxu0 %v1685
          %1704 = vmatprep.subr.mxu0 0.0
          %1705 = vmatpush1.msra.mxu0 %v1686
          %1706 = vmatprep.subr.mxu0 0.0
          %1707 = vmatpush1.msra.mxu0 %v1687
          %1708 = vmatprep.subr.mxu0 0.0
          %1709 = vmatpush1.msra.mxu0 %v1688
          %1710 = vmatprep.subr.mxu0 0.0
          %1711 = vmatpush1.msra.mxu0 %v1689
          %1712 = vmatprep.subr.mxu0 0.0
          %1713 = vmatpush1.msra.mxu0 %v1690
          %1714 = vmatprep.subr.mxu0 0.0
          %1715 = vmatpush1.msra.mxu0 0.0
          %1716 = vmatprep.subr.mxu0 0.0
          %1717 = vmatpush1.msra.mxu0 0.0
          %1718 = vmatprep.subr.mxu0 0.0
          %1719 = vmatpush1.msra.mxu0 0.0
          %1720 = vmatprep.subr.mxu0 0.0
          %1721 = vmatpush1.msra.mxu0 0.0
          %1722 = vmatprep.subr.mxu0 0.0
          %1723 = vmatpush1.msra.mxu0 0.0
          %1724 = vmatprep.subr.mxu0 0.0
          %1725 = vmatpush1.msra.mxu0 0.0
          %1726 = vmatprep.subr.mxu0 0.0
          %1727 = vmatpush1.msra.mxu0 0.0
          %1728 = vmatprep.subr.mxu0 0.0
          %1729 = vmatpush1.msra.mxu0 0.0
          %1730 = vmatprep.subr.mxu0 0.0
          %1731 = vmatpush1.msra.mxu0 0.0
          %1732 = vmatprep.subr.mxu0 0.0
          %1733 = vmatpush1.msra.mxu0 0.0
          %1734 = vmatprep.subr.mxu0 0.0
          %1735 = vmatpush1.msra.mxu0 0.0
          %1736 = vmatprep.subr.mxu0 0.0
          %1737 = vmatpush1.msra.mxu0 0.0
          %1738 = vmatprep.subr.mxu0 0.0
          %1739 = vmatpush1.msra.mxu0 0.0
          %1740 = vmatprep.subr.mxu0 0.0
          %1741 = vmatpush1.msra.mxu0 0.0
          %1742 = vmatprep.subr.mxu0 0.0
          %1743 = vmatpush1.msra.mxu0 0.0
          %1744 = vmatprep.subr.mxu0 0.0
          %1745 = vmatpush1.msra.mxu0 0.0
          %1746 = vmatprep.subr.mxu0 0.0
          %1747 = vmatpush1.msra.mxu0 0.0
          %1748 = vmatprep.subr.mxu0 0.0
          %1749 = vmatpush1.msra.mxu0 0.0
          %1750 = vmatprep.subr.mxu0 0.0
          %1751 = vmatpush1.msra.mxu0 0.0
          %1752 = vmatprep.subr.mxu0 0.0
          %1753 = vmatpush1.msra.mxu0 0.0
          %1754 = vmatprep.subr.mxu0 0.0
          %1755 = vmatpush1.msra.mxu0 0.0
          %1756 = vmatprep.subr.mxu0 0.0
          %1757 = vmatpush1.msra.mxu0 0.0
          %1758 = vmatprep.subr.mxu0 0.0
          %1759 = vmatpush1.msra.mxu0 0.0
          %1760 = vmatprep.subr.mxu0 0.0
          %1761 = vmatpush1.msra.mxu0 0.0
          %1762 = vmatprep.mubr.f32.mxu0 0.0
          %1763 = vmatmul.mubr.f32.gmra.mrb[0].mxu0 %v1611
          %v1764 = vpop.f32.mrb[0].mxu0
          %v1765 = vadd.f32 %v1696, %v1764
          %v1766 = vpop.f32.mrb[0].mxu0
          %1767 = vdwg.mxu0
          %1769 = vrot.lane.b32.xlu0 %v1680, 120
          %v1770 = vpop.permute.xlu0 %1769
          %1772 = vrot.lane.b32.xlu0 %v1680, 112
          %v1773 = vpop.permute.xlu0 %1772
          %1775 = vrot.lane.b32.xlu0 %v1680, 104
          %v1776 = vpop.permute.xlu0 %1775
          %v1778 = vcombine.low %v1680, %v1773
          %v1779 = vcombine.high %v1680, %v1773
          %v1781 = vunpack.c.l.s4 1983009808
          %v1782 = vunpack.c.0.s8 %v1781
          %v1783 = vlaneseq
          %v1784 = vshrl.u32 %v1783, 7
          %v1785 = vsub.s32 %v1782, %v1784
          %v1786 = vrot.slane %v1778, %v1785
          %v1788 = vunpack.c.l.s4 1983009808
          %v1789 = vunpack.c.0.s8 %v1788
          %v1790 = vlaneseq
          %v1791 = vshrl.u32 %v1790, 7
          %v1792 = vsub.s32 %v1789, %v1791
          %v1793 = vrot.slane %v1779, %v1792
          %v1794 = vcombine.low %v1770, %v1776
          %v1795 = vcombine.high %v1770, %v1776
          %v1797 = vunpack.c.l.s4 1983009808
          %v1798 = vunpack.c.0.s8 %v1797
          %v1799 = vlaneseq
          %v1800 = vshrl.u32 %v1799, 7
          %v1801 = vsub.s32 %v1798, %v1800
          %v1802 = vrot.slane %v1794, %v1801
          %v1804 = vunpack.c.l.s4 1983009808
          %v1805 = vunpack.c.0.s8 %v1804
          %v1806 = vlaneseq
          %v1807 = vshrl.u32 %v1806, 7
          %v1808 = vsub.s32 %v1805, %v1807
          %v1809 = vrot.slane %v1795, %v1808
          %v1810 = vcombine.low %v1786, %v1802
          %v1811 = vcombine.high %v1786, %v1802
          %v1813 = vunpack.c.l.s4 1934713408
          %v1814 = vunpack.c.0.s8 %v1813
          %v1815 = vlaneseq
          %v1816 = vshrl.u32 %v1815, 7
          %v1817 = vsub.s32 %v1814, %v1816
          %v1818 = vrot.slane %v1810, %v1817
          %v1820 = vunpack.c.l.s4 1934713408
          %v1821 = vunpack.c.0.s8 %v1820
          %v1822 = vlaneseq
          %v1823 = vshrl.u32 %v1822, 7
          %v1824 = vsub.s32 %v1821, %v1823
          %v1825 = vrot.slane %v1811, %v1824
          %v1826 = vcombine.low %v1793, %v1809
          %v1827 = vcombine.high %v1793, %v1809
          %v1829 = vunpack.c.l.s4 1934713408
          %v1830 = vunpack.c.0.s8 %v1829
          %v1831 = vlaneseq
          %v1832 = vshrl.u32 %v1831, 7
          %v1833 = vsub.s32 %v1830, %v1832
          %v1834 = vrot.slane %v1826, %v1833
          %v1836 = vunpack.c.l.s4 1934713408
          %v1837 = vunpack.c.0.s8 %v1836
          %v1838 = vlaneseq
          %v1839 = vshrl.u32 %v1838, 7
          %v1840 = vsub.s32 %v1837, %v1839
          %v1841 = vrot.slane %v1827, %v1840
          %v1842 = vcombine.high %v1818, 0.0
          %v1843 = vcombine.high %v1825, 0.0
          %v1844 = vcombine.high %v1834, 0.0
          %v1845 = vcombine.high %v1841, 0.0
          %v1846 = vcombine.low %v1818, %v1825
          %v1848 = vunpack.c.l.s4 1983009808
          %v1849 = vunpack.c.0.s8 %v1848
          %v1850 = vlaneseq
          %v1851 = vshrl.u32 %v1850, 7
          %v1852 = vsub.s32 %v1849, %v1851
          %v1853 = vrot.slane %v1846, %v1852
          %v1854 = vcombine.low %v1842, %v1843
          %v1856 = vunpack.c.l.s4 1983009808
          %v1857 = vunpack.c.0.s8 %v1856
          %v1858 = vlaneseq
          %v1859 = vshrl.u32 %v1858, 7
          %v1860 = vsub.s32 %v1857, %v1859
          %v1861 = vrot.slane %v1854, %v1860
          %v1862 = vcombine.low %v1834, %v1841
          %v1864 = vunpack.c.l.s4 1983009808
          %v1865 = vunpack.c.0.s8 %v1864
          %v1866 = vlaneseq
          %v1867 = vshrl.u32 %v1866, 7
          %v1868 = vsub.s32 %v1865, %v1867
          %v1869 = vrot.slane %v1862, %v1868
          %v1870 = vcombine.low %v1844, %v1845
          %v1872 = vunpack.c.l.s4 1983009808
          %v1873 = vunpack.c.0.s8 %v1872
          %v1874 = vlaneseq
          %v1875 = vshrl.u32 %v1874, 7
          %v1876 = vsub.s32 %v1873, %v1875
          %v1877 = vrot.slane %v1870, %v1876
          %v1878 = vcombine.low %v1853, %v1861
          %v1879 = vcombine.high %v1853, %v1861
          %v1881 = vunpack.c.l.s4 1934713408
          %v1882 = vunpack.c.0.s8 %v1881
          %v1883 = vlaneseq
          %v1884 = vshrl.u32 %v1883, 7
          %v1885 = vsub.s32 %v1882, %v1884
          %v1886 = vrot.slane %v1878, %v1885
          %v1888 = vunpack.c.l.s4 1934713408
          %v1889 = vunpack.c.0.s8 %v1888
          %v1890 = vlaneseq
          %v1891 = vshrl.u32 %v1890, 7
          %v1892 = vsub.s32 %v1889, %v1891
          %v1893 = vrot.slane %v1879, %v1892
          %v1894 = vcombine.low %v1869, %v1877
          %v1895 = vcombine.high %v1869, %v1877
          %v1897 = vunpack.c.l.s4 1934713408
          %v1898 = vunpack.c.0.s8 %v1897
          %v1899 = vlaneseq
          %v1900 = vshrl.u32 %v1899, 7
          %v1901 = vsub.s32 %v1898, %v1900
          %v1902 = vrot.slane %v1894, %v1901
          %v1904 = vunpack.c.l.s4 1934713408
          %v1905 = vunpack.c.0.s8 %v1904
          %v1906 = vlaneseq
          %v1907 = vshrl.u32 %v1906, 7
          %v1908 = vsub.s32 %v1905, %v1907
          %v1909 = vrot.slane %v1895, %v1908
          %v1910 = vcombine.low %v1886, %v1902
          %v1911 = vcombine.high %v1886, %v1902
          %v1912 = vcombine.low %v1893, %v1909
          %v1913 = vcombine.high %v1893, %v1909
          %1914 = vst.msk [vmem:[#allocation5] sm:$0xff] %vm1438, %v1910
          %1915 = vst.msk [vmem:[#allocation5 + $0x8] sm:$0xff] %vm1438, %v1911
          %1916 = vst.msk [vmem:[#allocation5 + $0x10] sm:$0xff] %vm1438, %v1912
          %1917 = vst.msk [vmem:[#allocation5 + $0x18] sm:$0xff] %vm1438, %v1913
          %1919 = vrot.lane.b32.xlu0 %v1765, 120
          %v1920 = vpop.permute.xlu0 %1919
          %1922 = vrot.lane.b32.xlu0 %v1765, 112
          %v1923 = vpop.permute.xlu0 %1922
          %1925 = vrot.lane.b32.xlu0 %v1765, 104
          %v1926 = vpop.permute.xlu0 %1925
          %v1928 = vcombine.low %v1765, %v1923
          %v1929 = vcombine.high %v1765, %v1923
          %v1931 = vunpack.c.l.s4 1983009808
          %v1932 = vunpack.c.0.s8 %v1931
          %v1933 = vlaneseq
          %v1934 = vshrl.u32 %v1933, 7
          %v1935 = vsub.s32 %v1932, %v1934
          %v1936 = vrot.slane %v1928, %v1935
          %v1938 = vunpack.c.l.s4 1983009808
          %v1939 = vunpack.c.0.s8 %v1938
          %v1940 = vlaneseq
          %v1941 = vshrl.u32 %v1940, 7
          %v1942 = vsub.s32 %v1939, %v1941
          %v1943 = vrot.slane %v1929, %v1942
          %v1944 = vcombine.low %v1920, %v1926
          %v1945 = vcombine.high %v1920, %v1926
          %v1947 = vunpack.c.l.s4 1983009808
          %v1948 = vunpack.c.0.s8 %v1947
          %v1949 = vlaneseq
          %v1950 = vshrl.u32 %v1949, 7
          %v1951 = vsub.s32 %v1948, %v1950
          %v1952 = vrot.slane %v1944, %v1951
          %v1954 = vunpack.c.l.s4 1983009808
          %v1955 = vunpack.c.0.s8 %v1954
          %v1956 = vlaneseq
          %v1957 = vshrl.u32 %v1956, 7
          %v1958 = vsub.s32 %v1955, %v1957
          %v1959 = vrot.slane %v1945, %v1958
          %v1960 = vcombine.low %v1936, %v1952
          %v1961 = vcombine.high %v1936, %v1952
          %v1963 = vunpack.c.l.s4 1934713408
          %v1964 = vunpack.c.0.s8 %v1963
          %v1965 = vlaneseq
          %v1966 = vshrl.u32 %v1965, 7
          %v1967 = vsub.s32 %v1964, %v1966
          %v1968 = vrot.slane %v1960, %v1967
          %v1970 = vunpack.c.l.s4 1934713408
          %v1971 = vunpack.c.0.s8 %v1970
          %v1972 = vlaneseq
          %v1973 = vshrl.u32 %v1972, 7
          %v1974 = vsub.s32 %v1971, %v1973
          %v1975 = vrot.slane %v1961, %v1974
          %v1976 = vcombine.low %v1943, %v1959
          %v1977 = vcombine.high %v1943, %v1959
          %v1979 = vunpack.c.l.s4 1934713408
          %v1980 = vunpack.c.0.s8 %v1979
          %v1981 = vlaneseq
          %v1982 = vshrl.u32 %v1981, 7
          %v1983 = vsub.s32 %v1980, %v1982
          %v1984 = vrot.slane %v1976, %v1983
          %v1986 = vunpack.c.l.s4 1934713408
          %v1987 = vunpack.c.0.s8 %v1986
          %v1988 = vlaneseq
          %v1989 = vshrl.u32 %v1988, 7
          %v1990 = vsub.s32 %v1987, %v1989
          %v1991 = vrot.slane %v1977, %v1990
          %v1992 = vcombine.high %v1968, 0.0
          %v1993 = vcombine.high %v1975, 0.0
          %v1994 = vcombine.high %v1984, 0.0
          %v1995 = vcombine.high %v1991, 0.0
          %v1996 = vcombine.low %v1968, %v1975
          %v1998 = vunpack.c.l.s4 1983009808
          %v1999 = vunpack.c.0.s8 %v1998
          %v2000 = vlaneseq
          %v2001 = vshrl.u32 %v2000, 7
          %v2002 = vsub.s32 %v1999, %v2001
          %v2003 = vrot.slane %v1996, %v2002
          %v2004 = vcombine.low %v1992, %v1993
          %v2006 = vunpack.c.l.s4 1983009808
          %v2007 = vunpack.c.0.s8 %v2006
          %v2008 = vlaneseq
          %v2009 = vshrl.u32 %v2008, 7
          %v2010 = vsub.s32 %v2007, %v2009
          %v2011 = vrot.slane %v2004, %v2010
          %v2012 = vcombine.low %v1984, %v1991
          %v2014 = vunpack.c.l.s4 1983009808
          %v2015 = vunpack.c.0.s8 %v2014
          %v2016 = vlaneseq
          %v2017 = vshrl.u32 %v2016, 7
          %v2018 = vsub.s32 %v2015, %v2017
          %v2019 = vrot.slane %v2012, %v2018
          %v2020 = vcombine.low %v1994, %v1995
          %v2022 = vunpack.c.l.s4 1983009808
          %v2023 = vunpack.c.0.s8 %v2022
          %v2024 = vlaneseq
          %v2025 = vshrl.u32 %v2024, 7
          %v2026 = vsub.s32 %v2023, %v2025
          %v2027 = vrot.slane %v2020, %v2026
          %v2028 = vcombine.low %v2003, %v2011
          %v2029 = vcombine.high %v2003, %v2011
          %v2031 = vunpack.c.l.s4 1934713408
          %v2032 = vunpack.c.0.s8 %v2031
          %v2033 = vlaneseq
          %v2034 = vshrl.u32 %v2033, 7
          %v2035 = vsub.s32 %v2032, %v2034
          %v2036 = vrot.slane %v2028, %v2035
          %v2038 = vunpack.c.l.s4 1934713408
          %v2039 = vunpack.c.0.s8 %v2038
          %v2040 = vlaneseq
          %v2041 = vshrl.u32 %v2040, 7
          %v2042 = vsub.s32 %v2039, %v2041
          %v2043 = vrot.slane %v2029, %v2042
          %v2044 = vcombine.low %v2019, %v2027
          %v2045 = vcombine.high %v2019, %v2027
          %v2047 = vunpack.c.l.s4 1934713408
          %v2048 = vunpack.c.0.s8 %v2047
          %v2049 = vlaneseq
          %v2050 = vshrl.u32 %v2049, 7
          %v2051 = vsub.s32 %v2048, %v2050
          %v2052 = vrot.slane %v2044, %v2051
          %v2054 = vunpack.c.l.s4 1934713408
          %v2055 = vunpack.c.0.s8 %v2054
          %v2056 = vlaneseq
          %v2057 = vshrl.u32 %v2056, 7
          %v2058 = vsub.s32 %v2055, %v2057
          %v2059 = vrot.slane %v2045, %v2058
          %v2060 = vcombine.low %v2036, %v2052
          %v2061 = vcombine.high %v2036, %v2052
          %v2062 = vcombine.low %v2043, %v2059
          %v2063 = vcombine.high %v2043, %v2059
          %2064 = vst.msk [vmem:[#allocation6] sm:$0xff] %vm1438, %v2060
          %2065 = vst.msk [vmem:[#allocation6 + $0x8] sm:$0xff] %vm1438, %v2061
          %2066 = vst.msk [vmem:[#allocation6 + $0x10] sm:$0xff] %vm1438, %v2062
          %2067 = vst.msk [vmem:[#allocation6 + $0x18] sm:$0xff] %vm1438, %v2063
        $region148: #{tpu_custom_call.1} parent=143 // pred_fallthru
          _
        %s2068 = smul.u32 %s82, 8
        %s2069 = scalar_lea.vmem %s991, %s2068
        %v2070 = vld [vmem:[%s2069] sm:$0xff]
        %v2071 = vld [vmem:[#allocation2] sm:$0x1]
        %v2072 = vld [vmem:[%s11] sm:$0x1]
        %v2073 = vld [vmem:[%s13] sm:$0x1]
        %vm2074 = vcmask 261120
        %v2075 = vsel %vm2074, %v2070, 0.0
        %2076 = vadd.xlane.f32.xlu0 %v2075
        %v2077 = vpop.xlane.xlu0 %2076
        %v2078 = vrcp.pop 32.0
        %v2079 = vmul.f32 %v2077, %v2078
        %v2080 = vsub.f32 %v2070, %v2079
        %v2081 = vmul.f32 %v2080, %v2080
        %v2082 = vsel %vm2074, %v2081, 0.0
        %2083 = vadd.xlane.f32.xlu0 %v2082
        %v2084 = vpop.xlane.xlu0 %2083
        %v2085 = vmul.f32 %v2084, %v2078
        %v2086 = vadd.f32 %v2085, 1e-05
        %v2087 = vrsqrt.pop %v2086
        %v2088 = vmul.f32 %v2080, %v2087
        %v2090 = vlaneseq
        %v2091 = vshrl.u32 %v2090, 7
        %v2092 = vsub.s32 0, %v2091
        %v2093 = vrot.slane %v2072, %v2092
        %v2095 = vmul.f32 %v2088, %v2093
        %v2097 = vlaneseq
        %v2098 = vshrl.u32 %v2097, 7
        %v2099 = vsub.s32 0, %v2098
        %v2100 = vrot.slane %v2073, %v2099
        %v2102 = vadd.f32 %v2095, %v2100
        %v2104 = vlaneseq
        %v2105 = vshrl.u32 %v2104, 7
        %v2106 = vsub.s32 0, %v2105
        %v2107 = vrot.slane %v2071, %v2106
        %v2109 = vadd.f32 %v2102, %v2107
        %v2110 = vld [vmem:[%s15] sm:$0xff]
        %v2111 = vld [vmem:[%s15 + $0x8] sm:$0xff]
        %v2112 = vld [vmem:[%s15 + $0x10] sm:$0xff]
        %v2113 = vld [vmem:[%s15 + $0x18] sm:$0xff]
        %v2114 = vld [vmem:[%s17] sm:$0x1]
        %v2116 = vlaneseq
        %v2117 = vshrl.u32 %v2116, 7
        %v2118 = vsub.s32 0, %v2117
        %v2119 = vrot.slane %v2114, %v2118
        %v2122 = vsel %vm2074, %v2109, 0
        %2124 = vmatprep.subr.mxu0 0.0
        %2125 = vmatpush1.msra.mxu0 %v2110
        %2126 = vmatprep.subr.mxu0 0.0
        %2127 = vmatpush1.msra.mxu0 %v2111
        %2128 = vmatprep.subr.mxu0 0.0
        %2129 = vmatpush1.msra.mxu0 %v2112
        %2130 = vmatprep.subr.mxu0 0.0
        %2131 = vmatpush1.msra.mxu0 %v2113
        %2132 = vmatprep.subr.mxu0 0.0
        %2133 = vmatpush1.msra.mxu0 0.0
        %2134 = vmatprep.subr.mxu0 0.0
        %2135 = vmatpush1.msra.mxu0 0.0
        %2136 = vmatprep.subr.mxu0 0.0
        %2137 = vmatpush1.msra.mxu0 0.0
        %2138 = vmatprep.subr.mxu0 0.0
        %2139 = vmatpush1.msra.mxu0 0.0
        %2140 = vmatprep.subr.mxu0 0.0
        %2141 = vmatpush1.msra.mxu0 0.0
        %2142 = vmatprep.subr.mxu0 0.0
        %2143 = vmatpush1.msra.mxu0 0.0
        %2144 = vmatprep.subr.mxu0 0.0
        %2145 = vmatpush1.msra.mxu0 0.0
        %2146 = vmatprep.subr.mxu0 0.0
        %2147 = vmatpush1.msra.mxu0 0.0
        %2148 = vmatprep.subr.mxu0 0.0
        %2149 = vmatpush1.msra.mxu0 0.0
        %2150 = vmatprep.subr.mxu0 0.0
        %2151 = vmatpush1.msra.mxu0 0.0
        %2152 = vmatprep.subr.mxu0 0.0
        %2153 = vmatpush1.msra.mxu0 0.0
        %2154 = vmatprep.subr.mxu0 0.0
        %2155 = vmatpush1.msra.mxu0 0.0
        %2156 = vmatprep.subr.mxu0 0.0
        %2157 = vmatpush1.msra.mxu0 0.0
        %2158 = vmatprep.subr.mxu0 0.0
        %2159 = vmatpush1.msra.mxu0 0.0
        %2160 = vmatprep.subr.mxu0 0.0
        %2161 = vmatpush1.msra.mxu0 0.0
        %2162 = vmatprep.subr.mxu0 0.0
        %2163 = vmatpush1.msra.mxu0 0.0
        %2164 = vmatprep.subr.mxu0 0.0
        %2165 = vmatpush1.msra.mxu0 0.0
        %2166 = vmatprep.subr.mxu0 0.0
        %2167 = vmatpush1.msra.mxu0 0.0
        %2168 = vmatprep.subr.mxu0 0.0
        %2169 = vmatpush1.msra.mxu0 0.0
        %2170 = vmatprep.subr.mxu0 0.0
        %2171 = vmatpush1.msra.mxu0 0.0
        %2172 = vmatprep.subr.mxu0 0.0
        %2173 = vmatpush1.msra.mxu0 0.0
        %2174 = vmatprep.subr.mxu0 0.0
        %2175 = vmatpush1.msra.mxu0 0.0
        %2176 = vmatprep.subr.mxu0 0.0
        %2177 = vmatpush1.msra.mxu0 0.0
        %2178 = vmatprep.subr.mxu0 0.0
        %2179 = vmatpush1.msra.mxu0 0.0
        %2180 = vmatprep.subr.mxu0 0.0
        %2181 = vmatpush1.msra.mxu0 0.0
        %2182 = vmatprep.subr.mxu0 0.0
        %2183 = vmatpush1.msra.mxu0 0.0
        %2184 = vmatprep.subr.mxu0 0.0
        %2185 = vmatpush1.msra.mxu0 0.0
        %2186 = vmatprep.subr.mxu0 0.0
        %2187 = vmatpush1.msra.mxu0 0.0
        %2188 = vmatprep.mubr.f32.mxu0 0.0
        %2189 = vmatmul.mubr.f32.gmra.mrb[0].mxu0 %v2122
        %v2190 = vpop.f32.mrb[0].mxu0
        %v2191 = vadd.f32 %v2119, %v2190
        %v2192 = vpop.f32.mrb[0].mxu0
        %2193 = vdwg.mxu0
        %2195 = vrot.lane.b32.xlu0 %v2191, 120
        %v2196 = vpop.permute.xlu0 %2195
        %2198 = vrot.lane.b32.xlu0 %v2191, 112
        %v2199 = vpop.permute.xlu0 %2198
        %2201 = vrot.lane.b32.xlu0 %v2191, 104
        %v2202 = vpop.permute.xlu0 %2201
        %v2204 = vcombine.low %v2191, %v2199
        %v2205 = vcombine.high %v2191, %v2199
        %v2207 = vunpack.c.l.s4 1983009808
        %v2208 = vunpack.c.0.s8 %v2207
        %v2209 = vlaneseq
        %v2210 = vshrl.u32 %v2209, 7
        %v2211 = vsub.s32 %v2208, %v2210
        %v2212 = vrot.slane %v2204, %v2211
        %v2214 = vunpack.c.l.s4 1983009808
        %v2215 = vunpack.c.0.s8 %v2214
        %v2216 = vlaneseq
        %v2217 = vshrl.u32 %v2216, 7
        %v2218 = vsub.s32 %v2215, %v2217
        %v2219 = vrot.slane %v2205, %v2218
        %v2220 = vcombine.low %v2196, %v2202
        %v2221 = vcombine.high %v2196, %v2202
        %v2223 = vunpack.c.l.s4 1983009808
        %v2224 = vunpack.c.0.s8 %v2223
        %v2225 = vlaneseq
        %v2226 = vshrl.u32 %v2225, 7
        %v2227 = vsub.s32 %v2224, %v2226
        %v2228 = vrot.slane %v2220, %v2227
        %v2230 = vunpack.c.l.s4 1983009808
        %v2231 = vunpack.c.0.s8 %v2230
        %v2232 = vlaneseq
        %v2233 = vshrl.u32 %v2232, 7
        %v2234 = vsub.s32 %v2231, %v2233
        %v2235 = vrot.slane %v2221, %v2234
        %v2236 = vcombine.low %v2212, %v2228
        %v2237 = vcombine.high %v2212, %v2228
        %v2239 = vunpack.c.l.s4 1934713408
        %v2240 = vunpack.c.0.s8 %v2239
        %v2241 = vlaneseq
        %v2242 = vshrl.u32 %v2241, 7
        %v2243 = vsub.s32 %v2240, %v2242
        %v2244 = vrot.slane %v2236, %v2243
        %v2246 = vunpack.c.l.s4 1934713408
        %v2247 = vunpack.c.0.s8 %v2246
        %v2248 = vlaneseq
        %v2249 = vshrl.u32 %v2248, 7
        %v2250 = vsub.s32 %v2247, %v2249
        %v2251 = vrot.slane %v2237, %v2250
        %v2252 = vcombine.low %v2219, %v2235
        %v2253 = vcombine.high %v2219, %v2235
        %v2255 = vunpack.c.l.s4 1934713408
        %v2256 = vunpack.c.0.s8 %v2255
        %v2257 = vlaneseq
        %v2258 = vshrl.u32 %v2257, 7
        %v2259 = vsub.s32 %v2256, %v2258
        %v2260 = vrot.slane %v2252, %v2259
        %v2262 = vunpack.c.l.s4 1934713408
        %v2263 = vunpack.c.0.s8 %v2262
        %v2264 = vlaneseq
        %v2265 = vshrl.u32 %v2264, 7
        %v2266 = vsub.s32 %v2263, %v2265
        %v2267 = vrot.slane %v2253, %v2266
        %v2268 = vcombine.high %v2244, 0.0
        %v2269 = vcombine.high %v2251, 0.0
        %v2270 = vcombine.high %v2260, 0.0
        %v2271 = vcombine.high %v2267, 0.0
        %v2272 = vcombine.low %v2244, %v2251
        %v2274 = vunpack.c.l.s4 1983009808
        %v2275 = vunpack.c.0.s8 %v2274
        %v2276 = vlaneseq
        %v2277 = vshrl.u32 %v2276, 7
        %v2278 = vsub.s32 %v2275, %v2277
        %v2279 = vrot.slane %v2272, %v2278
        %v2280 = vcombine.low %v2268, %v2269
        %v2282 = vunpack.c.l.s4 1983009808
        %v2283 = vunpack.c.0.s8 %v2282
        %v2284 = vlaneseq
        %v2285 = vshrl.u32 %v2284, 7
        %v2286 = vsub.s32 %v2283, %v2285
        %v2287 = vrot.slane %v2280, %v2286
        %v2288 = vcombine.low %v2260, %v2267
        %v2290 = vunpack.c.l.s4 1983009808
        %v2291 = vunpack.c.0.s8 %v2290
        %v2292 = vlaneseq
        %v2293 = vshrl.u32 %v2292, 7
        %v2294 = vsub.s32 %v2291, %v2293
        %v2295 = vrot.slane %v2288, %v2294
        %v2296 = vcombine.low %v2270, %v2271
        %v2298 = vunpack.c.l.s4 1983009808
        %v2299 = vunpack.c.0.s8 %v2298
        %v2300 = vlaneseq
        %v2301 = vshrl.u32 %v2300, 7
        %v2302 = vsub.s32 %v2299, %v2301
        %v2303 = vrot.slane %v2296, %v2302
        %v2304 = vcombine.low %v2279, %v2287
        %v2305 = vcombine.high %v2279, %v2287
        %v2307 = vunpack.c.l.s4 1934713408
        %v2308 = vunpack.c.0.s8 %v2307
        %v2309 = vlaneseq
        %v2310 = vshrl.u32 %v2309, 7
        %v2311 = vsub.s32 %v2308, %v2310
        %v2312 = vrot.slane %v2304, %v2311
        %v2314 = vunpack.c.l.s4 1934713408
        %v2315 = vunpack.c.0.s8 %v2314
        %v2316 = vlaneseq
        %v2317 = vshrl.u32 %v2316, 7
        %v2318 = vsub.s32 %v2315, %v2317
        %v2319 = vrot.slane %v2305, %v2318
        %v2320 = vcombine.low %v2295, %v2303
        %v2321 = vcombine.high %v2295, %v2303
        %v2323 = vunpack.c.l.s4 1934713408
        %v2324 = vunpack.c.0.s8 %v2323
        %v2325 = vlaneseq
        %v2326 = vshrl.u32 %v2325, 7
        %v2327 = vsub.s32 %v2324, %v2326
        %v2328 = vrot.slane %v2320, %v2327
        %v2330 = vunpack.c.l.s4 1934713408
        %v2331 = vunpack.c.0.s8 %v2330
        %v2332 = vlaneseq
        %v2333 = vshrl.u32 %v2332, 7
        %v2334 = vsub.s32 %v2331, %v2333
        %v2335 = vrot.slane %v2321, %v2334
        %v2336 = vcombine.low %v2312, %v2328
        %v2337 = vcombine.high %v2312, %v2328
        %v2338 = vcombine.low %v2319, %v2335
        %v2339 = vcombine.high %v2319, %v2335
        %v2340 = vld [vmem:[#allocation3] sm:$0xff]
        %v2341 = vld [vmem:[#allocation3 + $0x8] sm:$0xff]
        %v2342 = vld [vmem:[#allocation3 + $0x10] sm:$0xff]
        %v2343 = vld [vmem:[#allocation3 + $0x18] sm:$0xff]
        %v2344 = vld [vmem:[#allocation4] sm:$0xff]
        %v2345 = vld [vmem:[#allocation4 + $0x8] sm:$0xff]
        %v2346 = vld [vmem:[#allocation4 + $0x10] sm:$0xff]
        %v2347 = vld [vmem:[#allocation4 + $0x18] sm:$0xff]
        %vm2348 = vcmask 64512
        %v2350 = vsel %vm2348, %v2336, 0
        %v2353 = vsel %vm2348, %v2340, 0
        %2355 = vmatprep.subr.mxu0 0.0
        %2356 = vmatpush1.xpose.msra.mxu0 %v2353
        %2357 = vmatprep.subr.mxu0 0.0
        %2358 = vmatpush1.xpose.msra.mxu0 0.0
        %2359 = vmatprep.subr.mxu0 0.0
        %2360 = vmatpush1.xpose.msra.mxu0 0.0
        %2361 = vmatprep.subr.mxu0 0.0
        %2362 = vmatpush1.xpose.msra.mxu0 0.0
        %2363 = vmatprep.subr.mxu0 0.0
        %2364 = vmatpush1.xpose.msra.mxu0 0.0
        %2365 = vmatprep.subr.mxu0 0.0
        %2366 = vmatpush1.xpose.msra.mxu0 0.0
        %2367 = vmatprep.subr.mxu0 0.0
        %2368 = vmatpush1.xpose.msra.mxu0 0.0
        %2369 = vmatprep.subr.mxu0 0.0
        %2370 = vmatpush1.xpose.msra.mxu0 0.0
        %2371 = vmatprep.subr.mxu0 0.0
        %2372 = vmatpush1.xpose.msra.mxu0 0.0
        %2373 = vmatprep.subr.mxu0 0.0
        %2374 = vmatpush1.xpose.msra.mxu0 0.0
        %2375 = vmatprep.subr.mxu0 0.0
        %2376 = vmatpush1.xpose.msra.mxu0 0.0
        %2377 = vmatprep.subr.mxu0 0.0
        %2378 = vmatpush1.xpose.msra.mxu0 0.0
        %2379 = vmatprep.subr.mxu0 0.0
        %2380 = vmatpush1.xpose.msra.mxu0 0.0
        %2381 = vmatprep.subr.mxu0 0.0
        %2382 = vmatpush1.xpose.msra.mxu0 0.0
        %2383 = vmatprep.subr.mxu0 0.0
        %2384 = vmatpush1.xpose.msra.mxu0 0.0
        %2385 = vmatprep.subr.mxu0 0.0
        %2386 = vmatpush1.xpose.msra.mxu0 0.0
        %2387 = vmatprep.subr.mxu0 0.0
        %2388 = vmatpush1.xpose.msra.mxu0 0.0
        %2389 = vmatprep.subr.mxu0 0.0
        %2390 = vmatpush1.xpose.msra.mxu0 0.0
        %2391 = vmatprep.subr.mxu0 0.0
        %2392 = vmatpush1.xpose.msra.mxu0 0.0
        %2393 = vmatprep.subr.mxu0 0.0
        %2394 = vmatpush1.xpose.msra.mxu0 0.0
        %2395 = vmatprep.subr.mxu0 0.0
        %2396 = vmatpush1.xpose.msra.mxu0 0.0
        %2397 = vmatprep.subr.mxu0 0.0
        %2398 = vmatpush1.xpose.msra.mxu0 0.0
        %2399 = vmatprep.subr.mxu0 0.0
        %2400 = vmatpush1.xpose.msra.mxu0 0.0
        %2401 = vmatprep.subr.mxu0 0.0
        %2402 = vmatpush1.xpose.msra.mxu0 0.0
        %2403 = vmatprep.subr.mxu0 0.0
        %2404 = vmatpush1.xpose.msra.mxu0 0.0
        %2405 = vmatprep.subr.mxu0 0.0
        %2406 = vmatpush1.xpose.msra.mxu0 0.0
        %2407 = vmatprep.subr.mxu0 0.0
        %2408 = vmatpush1.xpose.msra.mxu0 0.0
        %2409 = vmatprep.subr.mxu0 0.0
        %2410 = vmatpush1.xpose.msra.mxu0 0.0
        %2411 = vmatprep.subr.mxu0 0.0
        %2412 = vmatpush1.xpose.msra.mxu0 0.0
        %2413 = vmatprep.subr.mxu0 0.0
        %2414 = vmatpush1.xpose.msra.mxu0 0.0
        %2415 = vmatprep.subr.mxu0 0.0
        %2416 = vmatpush1.xpose.msra.mxu0 0.0
        %2417 = vmatprep.subr.mxu0 0.0
        %2418 = vmatpush1.xpose.msra.mxu0 0.0
        %2419 = vmatprep.mubr.f32.mxu0 0.0
        %2420 = vmatmul.mubr.f32.gmra.mrb[0].mxu0 %v2350
        %v2421 = vpop.f32.mrb[0].mxu0
        %v2422 = vadd.f32 0.0, %v2421
        %v2423 = vpop.f32.mrb[0].mxu0
        %2424 = vdwg.mxu0
        %v2426 = vsel %vm2348, %v2337, 0
        %v2429 = vsel %vm2348, %v2341, 0
        %2431 = vmatprep.subr.mxu0 0.0
        %2432 = vmatpush1.xpose.msra.mxu0 %v2429
        %2433 = vmatprep.subr.mxu0 0.0
        %2434 = vmatpush1.xpose.msra.mxu0 0.0
        %2435 = vmatprep.subr.mxu0 0.0
        %2436 = vmatpush1.xpose.msra.mxu0 0.0
        %2437 = vmatprep.subr.mxu0 0.0
        %2438 = vmatpush1.xpose.msra.mxu0 0.0
        %2439 = vmatprep.subr.mxu0 0.0
        %2440 = vmatpush1.xpose.msra.mxu0 0.0
        %2441 = vmatprep.subr.mxu0 0.0
        %2442 = vmatpush1.xpose.msra.mxu0 0.0
        %2443 = vmatprep.subr.mxu0 0.0
        %2444 = vmatpush1.xpose.msra.mxu0 0.0
        %2445 = vmatprep.subr.mxu0 0.0
        %2446 = vmatpush1.xpose.msra.mxu0 0.0
        %2447 = vmatprep.subr.mxu0 0.0
        %2448 = vmatpush1.xpose.msra.mxu0 0.0
        %2449 = vmatprep.subr.mxu0 0.0
        %2450 = vmatpush1.xpose.msra.mxu0 0.0
        %2451 = vmatprep.subr.mxu0 0.0
        %2452 = vmatpush1.xpose.msra.mxu0 0.0
        %2453 = vmatprep.subr.mxu0 0.0
        %2454 = vmatpush1.xpose.msra.mxu0 0.0
        %2455 = vmatprep.subr.mxu0 0.0
        %2456 = vmatpush1.xpose.msra.mxu0 0.0
        %2457 = vmatprep.subr.mxu0 0.0
        %2458 = vmatpush1.xpose.msra.mxu0 0.0
        %2459 = vmatprep.subr.mxu0 0.0
        %2460 = vmatpush1.xpose.msra.mxu0 0.0
        %2461 = vmatprep.subr.mxu0 0.0
        %2462 = vmatpush1.xpose.msra.mxu0 0.0
        %2463 = vmatprep.subr.mxu0 0.0
        %2464 = vmatpush1.xpose.msra.mxu0 0.0
        %2465 = vmatprep.subr.mxu0 0.0
        %2466 = vmatpush1.xpose.msra.mxu0 0.0
        %2467 = vmatprep.subr.mxu0 0.0
        %2468 = vmatpush1.xpose.msra.mxu0 0.0
        %2469 = vmatprep.subr.mxu0 0.0
        %2470 = vmatpush1.xpose.msra.mxu0 0.0
        %2471 = vmatprep.subr.mxu0 0.0
        %2472 = vmatpush1.xpose.msra.mxu0 0.0
        %2473 = vmatprep.subr.mxu0 0.0
        %2474 = vmatpush1.xpose.msra.mxu0 0.0
        %2475 = vmatprep.subr.mxu0 0.0
        %2476 = vmatpush1.xpose.msra.mxu0 0.0
        %2477 = vmatprep.subr.mxu0 0.0
        %2478 = vmatpush1.xpose.msra.mxu0 0.0
        %2479 = vmatprep.subr.mxu0 0.0
        %2480 = vmatpush1.xpose.msra.mxu0 0.0
        %2481 = vmatprep.subr.mxu0 0.0
        %2482 = vmatpush1.xpose.msra.mxu0 0.0
        %2483 = vmatprep.subr.mxu0 0.0
        %2484 = vmatpush1.xpose.msra.mxu0 0.0
        %2485 = vmatprep.subr.mxu0 0.0
        %2486 = vmatpush1.xpose.msra.mxu0 0.0
        %2487 = vmatprep.subr.mxu0 0.0
        %2488 = vmatpush1.xpose.msra.mxu0 0.0
        %2489 = vmatprep.subr.mxu0 0.0
        %2490 = vmatpush1.xpose.msra.mxu0 0.0
        %2491 = vmatprep.subr.mxu0 0.0
        %2492 = vmatpush1.xpose.msra.mxu0 0.0
        %2493 = vmatprep.subr.mxu0 0.0
        %2494 = vmatpush1.xpose.msra.mxu0 0.0
        %2495 = vmatprep.mubr.f32.mxu0 0.0
        %2496 = vmatmul.mubr.f32.gmra.mrb[0].mxu0 %v2426
        %v2497 = vpop.f32.mrb[0].mxu0
        %v2498 = vadd.f32 0.0, %v2497
        %v2499 = vpop.f32.mrb[0].mxu0
        %2500 = vdwg.mxu0
        %v2502 = vsel %vm2348, %v2338, 0
        %v2505 = vsel %vm2348, %v2342, 0
        %2507 = vmatprep.subr.mxu0 0.0
        %2508 = vmatpush1.xpose.msra.mxu0 %v2505
        %2509 = vmatprep.subr.mxu0 0.0
        %2510 = vmatpush1.xpose.msra.mxu0 0.0
        %2511 = vmatprep.subr.mxu0 0.0
        %2512 = vmatpush1.xpose.msra.mxu0 0.0
        %2513 = vmatprep.subr.mxu0 0.0
        %2514 = vmatpush1.xpose.msra.mxu0 0.0
        %2515 = vmatprep.subr.mxu0 0.0
        %2516 = vmatpush1.xpose.msra.mxu0 0.0
        %2517 = vmatprep.subr.mxu0 0.0
        %2518 = vmatpush1.xpose.msra.mxu0 0.0
        %2519 = vmatprep.subr.mxu0 0.0
        %2520 = vmatpush1.xpose.msra.mxu0 0.0
        %2521 = vmatprep.subr.mxu0 0.0
        %2522 = vmatpush1.xpose.msra.mxu0 0.0
        %2523 = vmatprep.subr.mxu0 0.0
        %2524 = vmatpush1.xpose.msra.mxu0 0.0
        %2525 = vmatprep.subr.mxu0 0.0
        %2526 = vmatpush1.xpose.msra.mxu0 0.0
        %2527 = vmatprep.subr.mxu0 0.0
        %2528 = vmatpush1.xpose.msra.mxu0 0.0
        %2529 = vmatprep.subr.mxu0 0.0
        %2530 = vmatpush1.xpose.msra.mxu0 0.0
        %2531 = vmatprep.subr.mxu0 0.0
        %2532 = vmatpush1.xpose.msra.mxu0 0.0
        %2533 = vmatprep.subr.mxu0 0.0
        %2534 = vmatpush1.xpose.msra.mxu0 0.0
        %2535 = vmatprep.subr.mxu0 0.0
        %2536 = vmatpush1.xpose.msra.mxu0 0.0
        %2537 = vmatprep.subr.mxu0 0.0
        %2538 = vmatpush1.xpose.msra.mxu0 0.0
        %2539 = vmatprep.subr.mxu0 0.0
        %2540 = vmatpush1.xpose.msra.mxu0 0.0
        %2541 = vmatprep.subr.mxu0 0.0
        %2542 = vmatpush1.xpose.msra.mxu0 0.0
        %2543 = vmatprep.subr.mxu0 0.0
        %2544 = vmatpush1.xpose.msra.mxu0 0.0
        %2545 = vmatprep.subr.mxu0 0.0
        %2546 = vmatpush1.xpose.msra.mxu0 0.0
        %2547 = vmatprep.subr.mxu0 0.0
        %2548 = vmatpush1.xpose.msra.mxu0 0.0
        %2549 = vmatprep.subr.mxu0 0.0
        %2550 = vmatpush1.xpose.msra.mxu0 0.0
        %2551 = vmatprep.subr.mxu0 0.0
        %2552 = vmatpush1.xpose.msra.mxu0 0.0
        %2553 = vmatprep.subr.mxu0 0.0
        %2554 = vmatpush1.xpose.msra.mxu0 0.0
        %2555 = vmatprep.subr.mxu0 0.0
        %2556 = vmatpush1.xpose.msra.mxu0 0.0
        %2557 = vmatprep.subr.mxu0 0.0
        %2558 = vmatpush1.xpose.msra.mxu0 0.0
        %2559 = vmatprep.subr.mxu0 0.0
        %2560 = vmatpush1.xpose.msra.mxu0 0.0
        %2561 = vmatprep.subr.mxu0 0.0
        %2562 = vmatpush1.xpose.msra.mxu0 0.0
        %2563 = vmatprep.subr.mxu0 0.0
        %2564 = vmatpush1.xpose.msra.mxu0 0.0
        %2565 = vmatprep.subr.mxu0 0.0
        %2566 = vmatpush1.xpose.msra.mxu0 0.0
        %2567 = vmatprep.subr.mxu0 0.0
        %2568 = vmatpush1.xpose.msra.mxu0 0.0
        %2569 = vmatprep.subr.mxu0 0.0
        %2570 = vmatpush1.xpose.msra.mxu0 0.0
        %2571 = vmatprep.mubr.f32.mxu0 0.0
        %2572 = vmatmul.mubr.f32.gmra.mrb[0].mxu0 %v2502
        %v2573 = vpop.f32.mrb[0].mxu0
        %v2574 = vadd.f32 0.0, %v2573
        %v2575 = vpop.f32.mrb[0].mxu0
        %2576 = vdwg.mxu0
        %v2578 = vsel %vm2348, %v2339, 0
        %v2581 = vsel %vm2348, %v2343, 0
        %2583 = vmatprep.subr.mxu0 0.0
        %2584 = vmatpush1.xpose.msra.mxu0 %v2581
        %2585 = vmatprep.subr.mxu0 0.0
        %2586 = vmatpush1.xpose.msra.mxu0 0.0
        %2587 = vmatprep.subr.mxu0 0.0
        %2588 = vmatpush1.xpose.msra.mxu0 0.0
        %2589 = vmatprep.subr.mxu0 0.0
        %2590 = vmatpush1.xpose.msra.mxu0 0.0
        %2591 = vmatprep.subr.mxu0 0.0
        %2592 = vmatpush1.xpose.msra.mxu0 0.0
        %2593 = vmatprep.subr.mxu0 0.0
        %2594 = vmatpush1.xpose.msra.mxu0 0.0
        %2595 = vmatprep.subr.mxu0 0.0
        %2596 = vmatpush1.xpose.msra.mxu0 0.0
        %2597 = vmatprep.subr.mxu0 0.0
        %2598 = vmatpush1.xpose.msra.mxu0 0.0
        %2599 = vmatprep.subr.mxu0 0.0
        %2600 = vmatpush1.xpose.msra.mxu0 0.0
        %2601 = vmatprep.subr.mxu0 0.0
        %2602 = vmatpush1.xpose.msra.mxu0 0.0
        %2603 = vmatprep.subr.mxu0 0.0
        %2604 = vmatpush1.xpose.msra.mxu0 0.0
        %2605 = vmatprep.subr.mxu0 0.0
        %2606 = vmatpush1.xpose.msra.mxu0 0.0
        %2607 = vmatprep.subr.mxu0 0.0
        %2608 = vmatpush1.xpose.msra.mxu0 0.0
        %2609 = vmatprep.subr.mxu0 0.0
        %2610 = vmatpush1.xpose.msra.mxu0 0.0
        %2611 = vmatprep.subr.mxu0 0.0
        %2612 = vmatpush1.xpose.msra.mxu0 0.0
        %2613 = vmatprep.subr.mxu0 0.0
        %2614 = vmatpush1.xpose.msra.mxu0 0.0
        %2615 = vmatprep.subr.mxu0 0.0
        %2616 = vmatpush1.xpose.msra.mxu0 0.0
        %2617 = vmatprep.subr.mxu0 0.0
        %2618 = vmatpush1.xpose.msra.mxu0 0.0
        %2619 = vmatprep.subr.mxu0 0.0
        %2620 = vmatpush1.xpose.msra.mxu0 0.0
        %2621 = vmatprep.subr.mxu0 0.0
        %2622 = vmatpush1.xpose.msra.mxu0 0.0
        %2623 = vmatprep.subr.mxu0 0.0
        %2624 = vmatpush1.xpose.msra.mxu0 0.0
        %2625 = vmatprep.subr.mxu0 0.0
        %2626 = vmatpush1.xpose.msra.mxu0 0.0
        %2627 = vmatprep.subr.mxu0 0.0
        %2628 = vmatpush1.xpose.msra.mxu0 0.0
        %2629 = vmatprep.subr.mxu0 0.0
        %2630 = vmatpush1.xpose.msra.mxu0 0.0
        %2631 = vmatprep.subr.mxu0 0.0
        %2632 = vmatpush1.xpose.msra.mxu0 0.0
        %2633 = vmatprep.subr.mxu0 0.0
        %2634 = vmatpush1.xpose.msra.mxu0 0.0
        %2635 = vmatprep.subr.mxu0 0.0
        %2636 = vmatpush1.xpose.msra.mxu0 0.0
        %2637 = vmatprep.subr.mxu0 0.0
        %2638 = vmatpush1.xpose.msra.mxu0 0.0
        %2639 = vmatprep.subr.mxu0 0.0
        %2640 = vmatpush1.xpose.msra.mxu0 0.0
        %2641 = vmatprep.subr.mxu0 0.0
        %2642 = vmatpush1.xpose.msra.mxu0 0.0
        %2643 = vmatprep.subr.mxu0 0.0
        %2644 = vmatpush1.xpose.msra.mxu0 0.0
        %2645 = vmatprep.subr.mxu0 0.0
        %2646 = vmatpush1.xpose.msra.mxu0 0.0
        %2647 = vmatprep.mubr.f32.mxu0 0.0
        %2648 = vmatmul.mubr.f32.gmra.mrb[0].mxu0 %v2578
        %v2649 = vpop.f32.mrb[0].mxu0
        %v2650 = vadd.f32 0.0, %v2649
        %v2651 = vpop.f32.mrb[0].mxu0
        %2652 = vdwg.mxu0
        %v2653 = vsel %vm2348, %v2422, -inf
        %2654 = vmax.xlane.f32.xlu0 %v2653
        %v2655 = vpop.xlane.xlu0 %2654
        %v2656 = vsel %vm2348, %v2498, -inf
        %2657 = vmax.xlane.f32.xlu0 %v2656
        %v2658 = vpop.xlane.xlu0 %2657
        %v2659 = vsel %vm2348, %v2574, -inf
        %2660 = vmax.xlane.f32.xlu0 %v2659
        %v2661 = vpop.xlane.xlu0 %2660
        %v2662 = vsel %vm2348, %v2650, -inf
        %2663 = vmax.xlane.f32.xlu0 %v2662
        %v2664 = vpop.xlane.xlu0 %2663
        %v2665 = vmax.f32 %v2655, -1e+30
        %v2666 = vmax.f32 %v2658, -1e+30
        %v2667 = vmax.f32 %v2661, -1e+30
        %v2668 = vmax.f32 %v2664, -1e+30
        %v2669 = vsub.f32 -1e+30, %v2665
        %v2670 = vsub.f32 -1e+30, %v2666
        %v2671 = vsub.f32 -1e+30, %v2667
        %v2672 = vsub.f32 -1e+30, %v2668
        %v2673 = vmul.f32 %v2669, 1.442695
        %v2674 = vpow.pop %v2673
        %v2675 = vmul.f32 %v2670, 1.442695
        %v2676 = vpow.pop %v2675
        %v2677 = vmul.f32 %v2671, 1.442695
        %v2678 = vpow.pop %v2677
        %v2679 = vmul.f32 %v2672, 1.442695
        %v2680 = vpow.pop %v2679
        %v2681 = vsub.f32 %v2422, %v2665
        %v2682 = vsub.f32 %v2498, %v2666
        %v2683 = vsub.f32 %v2574, %v2667
        %v2684 = vsub.f32 %v2650, %v2668
        %v2685 = vmul.f32 %v2681, 1.442695
        %v2686 = vpow.pop %v2685
        %v2687 = vmul.f32 %v2682, 1.442695
        %v2688 = vpow.pop %v2687
        %v2689 = vmul.f32 %v2683, 1.442695
        %v2690 = vpow.pop %v2689
        %v2691 = vmul.f32 %v2684, 1.442695
        %v2692 = vpow.pop %v2691
        %v2693 = vmul.f32 %v2674, 0.0
        %v2694 = vmul.f32 %v2676, 0.0
        %v2695 = vmul.f32 %v2678, 0.0
        %v2696 = vmul.f32 %v2680, 0.0
        %v2697 = vsel %vm2348, %v2686, 0.0
        %2698 = vadd.xlane.f32.xlu0 %v2697
        %v2699 = vpop.xlane.xlu0 %2698
        %v2700 = vsel %vm2348, %v2688, 0.0
        %2701 = vadd.xlane.f32.xlu0 %v2700
        %v2702 = vpop.xlane.xlu0 %2701
        %v2703 = vsel %vm2348, %v2690, 0.0
        %2704 = vadd.xlane.f32.xlu0 %v2703
        %v2705 = vpop.xlane.xlu0 %2704
        %v2706 = vsel %vm2348, %v2692, 0.0
        %2707 = vadd.xlane.f32.xlu0 %v2706
        %v2708 = vpop.xlane.xlu0 %2707
        %v2709 = vadd.f32 %v2693, %v2699
        %v2710 = vadd.f32 %v2694, %v2702
        %v2711 = vadd.f32 %v2695, %v2705
        %v2712 = vadd.f32 %v2696, %v2708
        %v2714 = vsel %vm2348, %v2686, 0
        %2716 = vmatprep.subr.mxu0 0.0
        %2717 = vmatpush1.msra.mxu0 %v2344
        %2718 = vmatprep.subr.mxu0 0.0
        %2719 = vmatpush1.msra.mxu0 0.0
        %2720 = vmatprep.subr.mxu0 0.0
        %2721 = vmatpush1.msra.mxu0 0.0
        %2722 = vmatprep.subr.mxu0 0.0
        %2723 = vmatpush1.msra.mxu0 0.0
        %2724 = vmatprep.subr.mxu0 0.0
        %2725 = vmatpush1.msra.mxu0 0.0
        %2726 = vmatprep.subr.mxu0 0.0
        %2727 = vmatpush1.msra.mxu0 0.0
        %2728 = vmatprep.subr.mxu0 0.0
        %2729 = vmatpush1.msra.mxu0 0.0
        %2730 = vmatprep.subr.mxu0 0.0
        %2731 = vmatpush1.msra.mxu0 0.0
        %2732 = vmatprep.subr.mxu0 0.0
        %2733 = vmatpush1.msra.mxu0 0.0
        %2734 = vmatprep.subr.mxu0 0.0
        %2735 = vmatpush1.msra.mxu0 0.0
        %2736 = vmatprep.subr.mxu0 0.0
        %2737 = vmatpush1.msra.mxu0 0.0
        %2738 = vmatprep.subr.mxu0 0.0
        %2739 = vmatpush1.msra.mxu0 0.0
        %2740 = vmatprep.subr.mxu0 0.0
        %2741 = vmatpush1.msra.mxu0 0.0
        %2742 = vmatprep.subr.mxu0 0.0
        %2743 = vmatpush1.msra.mxu0 0.0
        %2744 = vmatprep.subr.mxu0 0.0
        %2745 = vmatpush1.msra.mxu0 0.0
        %2746 = vmatprep.subr.mxu0 0.0
        %2747 = vmatpush1.msra.mxu0 0.0
        %2748 = vmatprep.subr.mxu0 0.0
        %2749 = vmatpush1.msra.mxu0 0.0
        %2750 = vmatprep.subr.mxu0 0.0
        %2751 = vmatpush1.msra.mxu0 0.0
        %2752 = vmatprep.subr.mxu0 0.0
        %2753 = vmatpush1.msra.mxu0 0.0
        %2754 = vmatprep.subr.mxu0 0.0
        %2755 = vmatpush1.msra.mxu0 0.0
        %2756 = vmatprep.subr.mxu0 0.0
        %2757 = vmatpush1.msra.mxu0 0.0
        %2758 = vmatprep.subr.mxu0 0.0
        %2759 = vmatpush1.msra.mxu0 0.0
        %2760 = vmatprep.subr.mxu0 0.0
        %2761 = vmatpush1.msra.mxu0 0.0
        %2762 = vmatprep.subr.mxu0 0.0
        %2763 = vmatpush1.msra.mxu0 0.0
        %2764 = vmatprep.subr.mxu0 0.0
        %2765 = vmatpush1.msra.mxu0 0.0
        %2766 = vmatprep.subr.mxu0 0.0
        %2767 = vmatpush1.msra.mxu0 0.0
        %2768 = vmatprep.subr.mxu0 0.0
        %2769 = vmatpush1.msra.mxu0 0.0
        %2770 = vmatprep.subr.mxu0 0.0
        %2771 = vmatpush1.msra.mxu0 0.0
        %2772 = vmatprep.subr.mxu0 0.0
        %2773 = vmatpush1.msra.mxu0 0.0
        %2774 = vmatprep.subr.mxu0 0.0
        %2775 = vmatpush1.msra.mxu0 0.0
        %2776 = vmatprep.subr.mxu0 0.0
        %2777 = vmatpush1.msra.mxu0 0.0
        %2778 = vmatprep.subr.mxu0 0.0
        %2779 = vmatpush1.msra.mxu0 0.0
        %2780 = vmatprep.mubr.f32.mxu0 0.0
        %2781 = vmatmul.mubr.f32.gmra.mrb[0].mxu0 %v2714
        %v2782 = vpop.f32.mrb[0].mxu0
        %v2783 = vadd.f32 0.0, %v2782
        %v2784 = vpop.f32.mrb[0].mxu0
        %2785 = vdwg.mxu0
        %v2787 = vsel %vm2348, %v2688, 0
        %2789 = vmatprep.subr.mxu0 0.0
        %2790 = vmatpush1.msra.mxu0 %v2345
        %2791 = vmatprep.subr.mxu0 0.0
        %2792 = vmatpush1.msra.mxu0 0.0
        %2793 = vmatprep.subr.mxu0 0.0
        %2794 = vmatpush1.msra.mxu0 0.0
        %2795 = vmatprep.subr.mxu0 0.0
        %2796 = vmatpush1.msra.mxu0 0.0
        %2797 = vmatprep.subr.mxu0 0.0
        %2798 = vmatpush1.msra.mxu0 0.0
        %2799 = vmatprep.subr.mxu0 0.0
        %2800 = vmatpush1.msra.mxu0 0.0
        %2801 = vmatprep.subr.mxu0 0.0
        %2802 = vmatpush1.msra.mxu0 0.0
        %2803 = vmatprep.subr.mxu0 0.0
        %2804 = vmatpush1.msra.mxu0 0.0
        %2805 = vmatprep.subr.mxu0 0.0
        %2806 = vmatpush1.msra.mxu0 0.0
        %2807 = vmatprep.subr.mxu0 0.0
        %2808 = vmatpush1.msra.mxu0 0.0
        %2809 = vmatprep.subr.mxu0 0.0
        %2810 = vmatpush1.msra.mxu0 0.0
        %2811 = vmatprep.subr.mxu0 0.0
        %2812 = vmatpush1.msra.mxu0 0.0
        %2813 = vmatprep.subr.mxu0 0.0
        %2814 = vmatpush1.msra.mxu0 0.0
        %2815 = vmatprep.subr.mxu0 0.0
        %2816 = vmatpush1.msra.mxu0 0.0
        %2817 = vmatprep.subr.mxu0 0.0
        %2818 = vmatpush1.msra.mxu0 0.0
        %2819 = vmatprep.subr.mxu0 0.0
        %2820 = vmatpush1.msra.mxu0 0.0
        %2821 = vmatprep.subr.mxu0 0.0
        %2822 = vmatpush1.msra.mxu0 0.0
        %2823 = vmatprep.subr.mxu0 0.0
        %2824 = vmatpush1.msra.mxu0 0.0
        %2825 = vmatprep.subr.mxu0 0.0
        %2826 = vmatpush1.msra.mxu0 0.0
        %2827 = vmatprep.subr.mxu0 0.0
        %2828 = vmatpush1.msra.mxu0 0.0
        %2829 = vmatprep.subr.mxu0 0.0
        %2830 = vmatpush1.msra.mxu0 0.0
        %2831 = vmatprep.subr.mxu0 0.0
        %2832 = vmatpush1.msra.mxu0 0.0
        %2833 = vmatprep.subr.mxu0 0.0
        %2834 = vmatpush1.msra.mxu0 0.0
        %2835 = vmatprep.subr.mxu0 0.0
        %2836 = vmatpush1.msra.mxu0 0.0
        %2837 = vmatprep.subr.mxu0 0.0
        %2838 = vmatpush1.msra.mxu0 0.0
        %2839 = vmatprep.subr.mxu0 0.0
        %2840 = vmatpush1.msra.mxu0 0.0
        %2841 = vmatprep.subr.mxu0 0.0
        %2842 = vmatpush1.msra.mxu0 0.0
        %2843 = vmatprep.subr.mxu0 0.0
        %2844 = vmatpush1.msra.mxu0 0.0
        %2845 = vmatprep.subr.mxu0 0.0
        %2846 = vmatpush1.msra.mxu0 0.0
        %2847 = vmatprep.subr.mxu0 0.0
        %2848 = vmatpush1.msra.mxu0 0.0
        %2849 = vmatprep.subr.mxu0 0.0
        %2850 = vmatpush1.msra.mxu0 0.0
        %2851 = vmatprep.subr.mxu0 0.0
        %2852 = vmatpush1.msra.mxu0 0.0
        %2853 = vmatprep.mubr.f32.mxu0 0.0
        %2854 = vmatmul.mubr.f32.gmra.mrb[0].mxu0 %v2787
        %v2855 = vpop.f32.mrb[0].mxu0
        %v2856 = vadd.f32 0.0, %v2855
        %v2857 = vpop.f32.mrb[0].mxu0
        %2858 = vdwg.mxu0
        %v2860 = vsel %vm2348, %v2690, 0
        %2862 = vmatprep.subr.mxu0 0.0
        %2863 = vmatpush1.msra.mxu0 %v2346
        %2864 = vmatprep.subr.mxu0 0.0
        %2865 = vmatpush1.msra.mxu0 0.0
        %2866 = vmatprep.subr.mxu0 0.0
        %2867 = vmatpush1.msra.mxu0 0.0
        %2868 = vmatprep.subr.mxu0 0.0
        %2869 = vmatpush1.msra.mxu0 0.0
        %2870 = vmatprep.subr.mxu0 0.0
        %2871 = vmatpush1.msra.mxu0 0.0
        %2872 = vmatprep.subr.mxu0 0.0
        %2873 = vmatpush1.msra.mxu0 0.0
        %2874 = vmatprep.subr.mxu0 0.0
        %2875 = vmatpush1.msra.mxu0 0.0
        %2876 = vmatprep.subr.mxu0 0.0
        %2877 = vmatpush1.msra.mxu0 0.0
        %2878 = vmatprep.subr.mxu0 0.0
        %2879 = vmatpush1.msra.mxu0 0.0
        %2880 = vmatprep.subr.mxu0 0.0
        %2881 = vmatpush1.msra.mxu0 0.0
        %2882 = vmatprep.subr.mxu0 0.0
        %2883 = vmatpush1.msra.mxu0 0.0
        %2884 = vmatprep.subr.mxu0 0.0
        %2885 = vmatpush1.msra.mxu0 0.0
        %2886 = vmatprep.subr.mxu0 0.0
        %2887 = vmatpush1.msra.mxu0 0.0
        %2888 = vmatprep.subr.mxu0 0.0
        %2889 = vmatpush1.msra.mxu0 0.0
        %2890 = vmatprep.subr.mxu0 0.0
        %2891 = vmatpush1.msra.mxu0 0.0
        %2892 = vmatprep.subr.mxu0 0.0
        %2893 = vmatpush1.msra.mxu0 0.0
        %2894 = vmatprep.subr.mxu0 0.0
        %2895 = vmatpush1.msra.mxu0 0.0
        %2896 = vmatprep.subr.mxu0 0.0
        %2897 = vmatpush1.msra.mxu0 0.0
        %2898 = vmatprep.subr.mxu0 0.0
        %2899 = vmatpush1.msra.mxu0 0.0
        %2900 = vmatprep.subr.mxu0 0.0
        %2901 = vmatpush1.msra.mxu0 0.0
        %2902 = vmatprep.subr.mxu0 0.0
        %2903 = vmatpush1.msra.mxu0 0.0
        %2904 = vmatprep.subr.mxu0 0.0
        %2905 = vmatpush1.msra.mxu0 0.0
        %2906 = vmatprep.subr.mxu0 0.0
        %2907 = vmatpush1.msra.mxu0 0.0
        %2908 = vmatprep.subr.mxu0 0.0
        %2909 = vmatpush1.msra.mxu0 0.0
        %2910 = vmatprep.subr.mxu0 0.0
        %2911 = vmatpush1.msra.mxu0 0.0
        %2912 = vmatprep.subr.mxu0 0.0
        %2913 = vmatpush1.msra.mxu0 0.0
        %2914 = vmatprep.subr.mxu0 0.0
        %2915 = vmatpush1.msra.mxu0 0.0
        %2916 = vmatprep.subr.mxu0 0.0
        %2917 = vmatpush1.msra.mxu0 0.0
        %2918 = vmatprep.subr.mxu0 0.0
        %2919 = vmatpush1.msra.mxu0 0.0
        %2920 = vmatprep.subr.mxu0 0.0
        %2921 = vmatpush1.msra.mxu0 0.0
        %2922 = vmatprep.subr.mxu0 0.0
        %2923 = vmatpush1.msra.mxu0 0.0
        %2924 = vmatprep.subr.mxu0 0.0
        %2925 = vmatpush1.msra.mxu0 0.0
        %2926 = vmatprep.mubr.f32.mxu0 0.0
        %2927 = vmatmul.mubr.f32.gmra.mrb[0].mxu0 %v2860
        %v2928 = vpop.f32.mrb[0].mxu0
        %v2929 = vadd.f32 0.0, %v2928
        %v2930 = vpop.f32.mrb[0].mxu0
        %2931 = vdwg.mxu0
        %v2933 = vsel %vm2348, %v2692, 0
        %2935 = vmatprep.subr.mxu0 0.0
        %2936 = vmatpush1.msra.mxu0 %v2347
        %2937 = vmatprep.subr.mxu0 0.0
        %2938 = vmatpush1.msra.mxu0 0.0
        %2939 = vmatprep.subr.mxu0 0.0
        %2940 = vmatpush1.msra.mxu0 0.0
        %2941 = vmatprep.subr.mxu0 0.0
        %2942 = vmatpush1.msra.mxu0 0.0
        %2943 = vmatprep.subr.mxu0 0.0
        %2944 = vmatpush1.msra.mxu0 0.0
        %2945 = vmatprep.subr.mxu0 0.0
        %2946 = vmatpush1.msra.mxu0 0.0
        %2947 = vmatprep.subr.mxu0 0.0
        %2948 = vmatpush1.msra.mxu0 0.0
        %2949 = vmatprep.subr.mxu0 0.0
        %2950 = vmatpush1.msra.mxu0 0.0
        %2951 = vmatprep.subr.mxu0 0.0
        %2952 = vmatpush1.msra.mxu0 0.0
        %2953 = vmatprep.subr.mxu0 0.0
        %2954 = vmatpush1.msra.mxu0 0.0
        %2955 = vmatprep.subr.mxu0 0.0
        %2956 = vmatpush1.msra.mxu0 0.0
        %2957 = vmatprep.subr.mxu0 0.0
        %2958 = vmatpush1.msra.mxu0 0.0
        %2959 = vmatprep.subr.mxu0 0.0
        %2960 = vmatpush1.msra.mxu0 0.0
        %2961 = vmatprep.subr.mxu0 0.0
        %2962 = vmatpush1.msra.mxu0 0.0
        %2963 = vmatprep.subr.mxu0 0.0
        %2964 = vmatpush1.msra.mxu0 0.0
        %2965 = vmatprep.subr.mxu0 0.0
        %2966 = vmatpush1.msra.mxu0 0.0
        %2967 = vmatprep.subr.mxu0 0.0
        %2968 = vmatpush1.msra.mxu0 0.0
        %2969 = vmatprep.subr.mxu0 0.0
        %2970 = vmatpush1.msra.mxu0 0.0
        %2971 = vmatprep.subr.mxu0 0.0
        %2972 = vmatpush1.msra.mxu0 0.0
        %2973 = vmatprep.subr.mxu0 0.0
        %2974 = vmatpush1.msra.mxu0 0.0
        %2975 = vmatprep.subr.mxu0 0.0
        %2976 = vmatpush1.msra.mxu0 0.0
        %2977 = vmatprep.subr.mxu0 0.0
        %2978 = vmatpush1.msra.mxu0 0.0
        %2979 = vmatprep.subr.mxu0 0.0
        %2980 = vmatpush1.msra.mxu0 0.0
        %2981 = vmatprep.subr.mxu0 0.0
        %2982 = vmatpush1.msra.mxu0 0.0
        %2983 = vmatprep.subr.mxu0 0.0
        %2984 = vmatpush1.msra.mxu0 0.0
        %2985 = vmatprep.subr.mxu0 0.0
        %2986 = vmatpush1.msra.mxu0 0.0
        %2987 = vmatprep.subr.mxu0 0.0
        %2988 = vmatpush1.msra.mxu0 0.0
        %2989 = vmatprep.subr.mxu0 0.0
        %2990 = vmatpush1.msra.mxu0 0.0
        %2991 = vmatprep.subr.mxu0 0.0
        %2992 = vmatpush1.msra.mxu0 0.0
        %2993 = vmatprep.subr.mxu0 0.0
        %2994 = vmatpush1.msra.mxu0 0.0
        %2995 = vmatprep.subr.mxu0 0.0
        %2996 = vmatpush1.msra.mxu0 0.0
        %2997 = vmatprep.subr.mxu0 0.0
        %2998 = vmatpush1.msra.mxu0 0.0
        %2999 = vmatprep.mubr.f32.mxu0 0.0
        %3000 = vmatmul.mubr.f32.gmra.mrb[0].mxu0 %v2933
        %v3001 = vpop.f32.mrb[0].mxu0
        %v3002 = vadd.f32 0.0, %v3001
        %v3003 = vpop.f32.mrb[0].mxu0
        %3004 = vdwg.mxu0
        %v3005 = vadd.f32 %v2693, %v2783
        %v3006 = vadd.f32 %v2694, %v2856
        %v3007 = vadd.f32 %v2695, %v2929
        %v3008 = vadd.f32 %v2696, %v3002
        %v3009 = vrcp.pop %v2709
        %v3010 = vrcp.pop %v2710
        %v3011 = vrcp.pop %v2711
        %v3012 = vrcp.pop %v2712
        %v3013 = vmul.f32 %v3005, %v3009
        %v3014 = vmul.f32 %v3006, %v3010
        %v3015 = vmul.f32 %v3007, %v3011
        %v3016 = vmul.f32 %v3008, %v3012
        %v3017 = vcombine.low %v3013, %v3015
        %v3018 = vcombine.high %v3013, %v3015
        %v3020 = vunpack.c.l.s4 1983009808
        %v3021 = vunpack.c.0.s8 %v3020
        %v3022 = vlaneseq
        %v3023 = vshrl.u32 %v3022, 7
        %v3024 = vsub.s32 %v3021, %v3023
        %v3025 = vrot.slane %v3017, %v3024
        %v3027 = vunpack.c.l.s4 1983009808
        %v3028 = vunpack.c.0.s8 %v3027
        %v3029 = vlaneseq
        %v3030 = vshrl.u32 %v3029, 7
        %v3031 = vsub.s32 %v3028, %v3030
        %v3032 = vrot.slane %v3018, %v3031
        %v3033 = vcombine.low %v3014, %v3016
        %v3034 = vcombine.high %v3014, %v3016
        %v3036 = vunpack.c.l.s4 1983009808
        %v3037 = vunpack.c.0.s8 %v3036
        %v3038 = vlaneseq
        %v3039 = vshrl.u32 %v3038, 7
        %v3040 = vsub.s32 %v3037, %v3039
        %v3041 = vrot.slane %v3033, %v3040
        %v3043 = vunpack.c.l.s4 1983009808
        %v3044 = vunpack.c.0.s8 %v3043
        %v3045 = vlaneseq
        %v3046 = vshrl.u32 %v3045, 7
        %v3047 = vsub.s32 %v3044, %v3046
        %v3048 = vrot.slane %v3034, %v3047
        %v3049 = vcombine.low %v3025, %v3041
        %v3050 = vcombine.high %v3025, %v3041
        %v3052 = vunpack.c.l.s4 1934713408
        %v3053 = vunpack.c.0.s8 %v3052
        %v3054 = vlaneseq
        %v3055 = vshrl.u32 %v3054, 7
        %v3056 = vsub.s32 %v3053, %v3055
        %v3057 = vrot.slane %v3049, %v3056
        %v3059 = vunpack.c.l.s4 1934713408
        %v3060 = vunpack.c.0.s8 %v3059
        %v3061 = vlaneseq
        %v3062 = vshrl.u32 %v3061, 7
        %v3063 = vsub.s32 %v3060, %v3062
        %v3064 = vrot.slane %v3050, %v3063
        %v3065 = vcombine.low %v3032, %v3048
        %v3066 = vcombine.high %v3032, %v3048
        %v3068 = vunpack.c.l.s4 1934713408
        %v3069 = vunpack.c.0.s8 %v3068
        %v3070 = vlaneseq
        %v3071 = vshrl.u32 %v3070, 7
        %v3072 = vsub.s32 %v3069, %v3071
        %v3073 = vrot.slane %v3065, %v3072
        %v3075 = vunpack.c.l.s4 1934713408
        %v3076 = vunpack.c.0.s8 %v3075
        %v3077 = vlaneseq
        %v3078 = vshrl.u32 %v3077, 7
        %v3079 = vsub.s32 %v3076, %v3078
        %v3080 = vrot.slane %v3066, %v3079
        %v3081 = vcombine.high %v3057, 0.0
        %v3082 = vcombine.high %v3064, 0.0
        %v3083 = vcombine.high %v3073, 0.0
        %v3084 = vcombine.high %v3080, 0.0
        %v3085 = vcombine.low %v3057, %v3064
        %v3087 = vunpack.c.l.s4 1983009808
        %v3088 = vunpack.c.0.s8 %v3087
        %v3089 = vlaneseq
        %v3090 = vshrl.u32 %v3089, 7
        %v3091 = vsub.s32 %v3088, %v3090
        %v3092 = vrot.slane %v3085, %v3091
        %v3093 = vcombine.low %v3081, %v3082
        %v3095 = vunpack.c.l.s4 1983009808
        %v3096 = vunpack.c.0.s8 %v3095
        %v3097 = vlaneseq
        %v3098 = vshrl.u32 %v3097, 7
        %v3099 = vsub.s32 %v3096, %v3098
        %v3100 = vrot.slane %v3093, %v3099
        %v3101 = vcombine.low %v3073, %v3080
        %v3103 = vunpack.c.l.s4 1983009808
        %v3104 = vunpack.c.0.s8 %v3103
        %v3105 = vlaneseq
        %v3106 = vshrl.u32 %v3105, 7
        %v3107 = vsub.s32 %v3104, %v3106
        %v3108 = vrot.slane %v3101, %v3107
        %v3109 = vcombine.low %v3083, %v3084
        %v3111 = vunpack.c.l.s4 1983009808
        %v3112 = vunpack.c.0.s8 %v3111
        %v3113 = vlaneseq
        %v3114 = vshrl.u32 %v3113, 7
        %v3115 = vsub.s32 %v3112, %v3114
        %v3116 = vrot.slane %v3109, %v3115
        %v3117 = vcombine.low %v3092, %v3100
        %v3118 = vcombine.high %v3092, %v3100
        %v3120 = vunpack.c.l.s4 1934713408
        %v3121 = vunpack.c.0.s8 %v3120
        %v3122 = vlaneseq
        %v3123 = vshrl.u32 %v3122, 7
        %v3124 = vsub.s32 %v3121, %v3123
        %v3125 = vrot.slane %v3117, %v3124
        %v3127 = vunpack.c.l.s4 1934713408
        %v3128 = vunpack.c.0.s8 %v3127
        %v3129 = vlaneseq
        %v3130 = vshrl.u32 %v3129, 7
        %v3131 = vsub.s32 %v3128, %v3130
        %v3132 = vrot.slane %v3118, %v3131
        %v3133 = vcombine.low %v3108, %v3116
        %v3134 = vcombine.high %v3108, %v3116
        %v3136 = vunpack.c.l.s4 1934713408
        %v3137 = vunpack.c.0.s8 %v3136
        %v3138 = vlaneseq
        %v3139 = vshrl.u32 %v3138, 7
        %v3140 = vsub.s32 %v3137, %v3139
        %v3141 = vrot.slane %v3133, %v3140
        %v3143 = vunpack.c.l.s4 1934713408
        %v3144 = vunpack.c.0.s8 %v3143
        %v3145 = vlaneseq
        %v3146 = vshrl.u32 %v3145, 7
        %v3147 = vsub.s32 %v3144, %v3146
        %v3148 = vrot.slane %v3134, %v3147
        %v3149 = vcombine.low %v3125, %v3141
        %v3150 = vcombine.high %v3125, %v3141
        %v3151 = vcombine.low %v3132, %v3148
        %v3152 = vcombine.high %v3132, %v3148
        %3154 = vrot.lane.b32.xlu0 %v3150, 8
        %v3155 = vpop.permute.xlu0 %3154
        %3158 = vrot.lane.b32.xlu0 %v3151, 16
        %v3159 = vpop.permute.xlu0 %3158
        %3162 = vrot.lane.b32.xlu0 %v3152, 24
        %v3163 = vpop.permute.xlu0 %3162
        %v3165 = vsel %vm2348, %v3149, %v3155
        %vm3166 = vcmask 130048
        %v3167 = vsel %vm3166, %v3165, %v3159
        %vm3168 = vcmask 195584
        %v3169 = vsel %vm3168, %v3167, %v3163
        %v3170 = vld [vmem:[%s27] sm:$0xff]
        %v3171 = vld [vmem:[%s27 + $0x8] sm:$0xff]
        %v3172 = vld [vmem:[%s27 + $0x10] sm:$0xff]
        %v3173 = vld [vmem:[%s27 + $0x18] sm:$0xff]
        %v3174 = vld [vmem:[%s29] sm:$0x1]
        %v3176 = vlaneseq
        %v3177 = vshrl.u32 %v3176, 7
        %v3178 = vsub.s32 0, %v3177
        %v3179 = vrot.slane %v3174, %v3178
        %v3182 = vsel %vm2074, %v3169, 0
        %3184 = vmatprep.subr.mxu0 0.0
        %3185 = vmatpush1.msra.mxu0 %v3170
        %3186 = vmatprep.subr.mxu0 0.0
        %3187 = vmatpush1.msra.mxu0 %v3171
        %3188 = vmatprep.subr.mxu0 0.0
        %3189 = vmatpush1.msra.mxu0 %v3172
        %3190 = vmatprep.subr.mxu0 0.0
        %3191 = vmatpush1.msra.mxu0 %v3173
        %3192 = vmatprep.subr.mxu0 0.0
        %3193 = vmatpush1.msra.mxu0 0.0
        %3194 = vmatprep.subr.mxu0 0.0
        %3195 = vmatpush1.msra.mxu0 0.0
        %3196 = vmatprep.subr.mxu0 0.0
        %3197 = vmatpush1.msra.mxu0 0.0
        %3198 = vmatprep.subr.mxu0 0.0
        %3199 = vmatpush1.msra.mxu0 0.0
        %3200 = vmatprep.subr.mxu0 0.0
        %3201 = vmatpush1.msra.mxu0 0.0
        %3202 = vmatprep.subr.mxu0 0.0
        %3203 = vmatpush1.msra.mxu0 0.0
        %3204 = vmatprep.subr.mxu0 0.0
        %3205 = vmatpush1.msra.mxu0 0.0
        %3206 = vmatprep.subr.mxu0 0.0
        %3207 = vmatpush1.msra.mxu0 0.0
        %3208 = vmatprep.subr.mxu0 0.0
        %3209 = vmatpush1.msra.mxu0 0.0
        %3210 = vmatprep.subr.mxu0 0.0
        %3211 = vmatpush1.msra.mxu0 0.0
        %3212 = vmatprep.subr.mxu0 0.0
        %3213 = vmatpush1.msra.mxu0 0.0
        %3214 = vmatprep.subr.mxu0 0.0
        %3215 = vmatpush1.msra.mxu0 0.0
        %3216 = vmatprep.subr.mxu0 0.0
        %3217 = vmatpush1.msra.mxu0 0.0
        %3218 = vmatprep.subr.mxu0 0.0
        %3219 = vmatpush1.msra.mxu0 0.0
        %3220 = vmatprep.subr.mxu0 0.0
        %3221 = vmatpush1.msra.mxu0 0.0
        %3222 = vmatprep.subr.mxu0 0.0
        %3223 = vmatpush1.msra.mxu0 0.0
        %3224 = vmatprep.subr.mxu0 0.0
        %3225 = vmatpush1.msra.mxu0 0.0
        %3226 = vmatprep.subr.mxu0 0.0
        %3227 = vmatpush1.msra.mxu0 0.0
        %3228 = vmatprep.subr.mxu0 0.0
        %3229 = vmatpush1.msra.mxu0 0.0
        %3230 = vmatprep.subr.mxu0 0.0
        %3231 = vmatpush1.msra.mxu0 0.0
        %3232 = vmatprep.subr.mxu0 0.0
        %3233 = vmatpush1.msra.mxu0 0.0
        %3234 = vmatprep.subr.mxu0 0.0
        %3235 = vmatpush1.msra.mxu0 0.0
        %3236 = vmatprep.subr.mxu0 0.0
        %3237 = vmatpush1.msra.mxu0 0.0
        %3238 = vmatprep.subr.mxu0 0.0
        %3239 = vmatpush1.msra.mxu0 0.0
        %3240 = vmatprep.subr.mxu0 0.0
        %3241 = vmatpush1.msra.mxu0 0.0
        %3242 = vmatprep.subr.mxu0 0.0
        %3243 = vmatpush1.msra.mxu0 0.0
        %3244 = vmatprep.subr.mxu0 0.0
        %3245 = vmatpush1.msra.mxu0 0.0
        %3246 = vmatprep.subr.mxu0 0.0
        %3247 = vmatpush1.msra.mxu0 0.0
        %3248 = vmatprep.mubr.f32.mxu0 0.0
        %3249 = vmatmul.mubr.f32.gmra.mrb[0].mxu0 %v3182
        %v3250 = vpop.f32.mrb[0].mxu0
        %v3251 = vadd.f32 %v3179, %v3250
        %v3252 = vpop.f32.mrb[0].mxu0
        %3253 = vdwg.mxu0
        %v3254 = vadd.f32 %v2070, %v3251
        %v3255 = vld [vmem:[%s31] sm:$0x1]
        %v3256 = vld [vmem:[%s33] sm:$0x1]
        %v3257 = vsel %vm2074, %v3254, 0.0
        %3258 = vadd.xlane.f32.xlu0 %v3257
        %v3259 = vpop.xlane.xlu0 %3258
        %v3260 = vmul.f32 %v3259, %v2078
        %v3261 = vsub.f32 %v3254, %v3260
        %v3262 = vmul.f32 %v3261, %v3261
        %v3263 = vsel %vm2074, %v3262, 0.0
        %3264 = vadd.xlane.f32.xlu0 %v3263
        %v3265 = vpop.xlane.xlu0 %3264
        %v3266 = vmul.f32 %v3265, %v2078
        %v3267 = vadd.f32 %v3266, 1e-05
        %v3268 = vrsqrt.pop %v3267
        %v3269 = vmul.f32 %v3261, %v3268
        %v3271 = vlaneseq
        %v3272 = vshrl.u32 %v3271, 7
        %v3273 = vsub.s32 0, %v3272
        %v3274 = vrot.slane %v3255, %v3273
        %v3276 = vmul.f32 %v3269, %v3274
        %v3278 = vlaneseq
        %v3279 = vshrl.u32 %v3278, 7
        %v3280 = vsub.s32 0, %v3279
        %v3281 = vrot.slane %v3256, %v3280
        %v3283 = vadd.f32 %v3276, %v3281
        %v3284 = vld [vmem:[%s35] sm:$0xff]
        %v3285 = vld [vmem:[%s35 + $0x8] sm:$0xff]
        %v3286 = vld [vmem:[%s35 + $0x10] sm:$0xff]
        %v3287 = vld [vmem:[%s35 + $0x18] sm:$0xff]
        %v3288 = vld [vmem:[%s37] sm:$0x1]
        %v3290 = vlaneseq
        %v3291 = vshrl.u32 %v3290, 7
        %v3292 = vsub.s32 0, %v3291
        %v3293 = vrot.slane %v3288, %v3292
        %v3296 = vsel %vm2074, %v3283, 0
        %3298 = vmatprep.subr.mxu0 0.0
        %3299 = vmatpush1.msra.mxu0 %v3284
        %3300 = vmatprep.subr.mxu0 0.0
        %3301 = vmatpush1.msra.mxu0 %v3285
        %3302 = vmatprep.subr.mxu0 0.0
        %3303 = vmatpush1.msra.mxu0 %v3286
        %3304 = vmatprep.subr.mxu0 0.0
        %3305 = vmatpush1.msra.mxu0 %v3287
        %3306 = vmatprep.subr.mxu0 0.0
        %3307 = vmatpush1.msra.mxu0 0.0
        %3308 = vmatprep.subr.mxu0 0.0
        %3309 = vmatpush1.msra.mxu0 0.0
        %3310 = vmatprep.subr.mxu0 0.0
        %3311 = vmatpush1.msra.mxu0 0.0
        %3312 = vmatprep.subr.mxu0 0.0
        %3313 = vmatpush1.msra.mxu0 0.0
        %3314 = vmatprep.subr.mxu0 0.0
        %3315 = vmatpush1.msra.mxu0 0.0
        %3316 = vmatprep.subr.mxu0 0.0
        %3317 = vmatpush1.msra.mxu0 0.0
        %3318 = vmatprep.subr.mxu0 0.0
        %3319 = vmatpush1.msra.mxu0 0.0
        %3320 = vmatprep.subr.mxu0 0.0
        %3321 = vmatpush1.msra.mxu0 0.0
        %3322 = vmatprep.subr.mxu0 0.0
        %3323 = vmatpush1.msra.mxu0 0.0
        %3324 = vmatprep.subr.mxu0 0.0
        %3325 = vmatpush1.msra.mxu0 0.0
        %3326 = vmatprep.subr.mxu0 0.0
        %3327 = vmatpush1.msra.mxu0 0.0
        %3328 = vmatprep.subr.mxu0 0.0
        %3329 = vmatpush1.msra.mxu0 0.0
        %3330 = vmatprep.subr.mxu0 0.0
        %3331 = vmatpush1.msra.mxu0 0.0
        %3332 = vmatprep.subr.mxu0 0.0
        %3333 = vmatpush1.msra.mxu0 0.0
        %3334 = vmatprep.subr.mxu0 0.0
        %3335 = vmatpush1.msra.mxu0 0.0
        %3336 = vmatprep.subr.mxu0 0.0
        %3337 = vmatpush1.msra.mxu0 0.0
        %3338 = vmatprep.subr.mxu0 0.0
        %3339 = vmatpush1.msra.mxu0 0.0
        %3340 = vmatprep.subr.mxu0 0.0
        %3341 = vmatpush1.msra.mxu0 0.0
        %3342 = vmatprep.subr.mxu0 0.0
        %3343 = vmatpush1.msra.mxu0 0.0
        %3344 = vmatprep.subr.mxu0 0.0
        %3345 = vmatpush1.msra.mxu0 0.0
        %3346 = vmatprep.subr.mxu0 0.0
        %3347 = vmatpush1.msra.mxu0 0.0
        %3348 = vmatprep.subr.mxu0 0.0
        %3349 = vmatpush1.msra.mxu0 0.0
        %3350 = vmatprep.subr.mxu0 0.0
        %3351 = vmatpush1.msra.mxu0 0.0
        %3352 = vmatprep.subr.mxu0 0.0
        %3353 = vmatpush1.msra.mxu0 0.0
        %3354 = vmatprep.subr.mxu0 0.0
        %3355 = vmatpush1.msra.mxu0 0.0
        %3356 = vmatprep.subr.mxu0 0.0
        %3357 = vmatpush1.msra.mxu0 0.0
        %3358 = vmatprep.subr.mxu0 0.0
        %3359 = vmatpush1.msra.mxu0 0.0
        %3360 = vmatprep.subr.mxu0 0.0
        %3361 = vmatpush1.msra.mxu0 0.0
        %3362 = vmatprep.mubr.f32.mxu0 0.0
        %3363 = vmatmul.mubr.f32.gmra.mrb[0].mxu0 %v3296
        %v3364 = vpop.f32.mrb[0].mxu0
        %v3365 = vadd.f32 %v3293, %v3364
        %v3366 = vpop.f32.mrb[0].mxu0
        %3367 = vdwg.mxu0
        %3369 = vrot.lane.b32.xlu0 %v3365, 120
        %v3370 = vpop.permute.xlu0 %3369
        %3372 = vrot.lane.b32.xlu0 %v3365, 112
        %v3373 = vpop.permute.xlu0 %3372
        %3375 = vrot.lane.b32.xlu0 %v3365, 104
        %v3376 = vpop.permute.xlu0 %3375
        %v3378 = vcombine.low %v3365, %v3373
        %v3379 = vcombine.high %v3365, %v3373
        %v3381 = vunpack.c.l.s4 1983009808
        %v3382 = vunpack.c.0.s8 %v3381
        %v3383 = vlaneseq
        %v3384 = vshrl.u32 %v3383, 7
        %v3385 = vsub.s32 %v3382, %v3384
        %v3386 = vrot.slane %v3378, %v3385
        %v3388 = vunpack.c.l.s4 1983009808
        %v3389 = vunpack.c.0.s8 %v3388
        %v3390 = vlaneseq
        %v3391 = vshrl.u32 %v3390, 7
        %v3392 = vsub.s32 %v3389, %v3391
        %v3393 = vrot.slane %v3379, %v3392
        %v3394 = vcombine.low %v3370, %v3376
        %v3395 = vcombine.high %v3370, %v3376
        %v3397 = vunpack.c.l.s4 1983009808
        %v3398 = vunpack.c.0.s8 %v3397
        %v3399 = vlaneseq
        %v3400 = vshrl.u32 %v3399, 7
        %v3401 = vsub.s32 %v3398, %v3400
        %v3402 = vrot.slane %v3394, %v3401
        %v3404 = vunpack.c.l.s4 1983009808
        %v3405 = vunpack.c.0.s8 %v3404
        %v3406 = vlaneseq
        %v3407 = vshrl.u32 %v3406, 7
        %v3408 = vsub.s32 %v3405, %v3407
        %v3409 = vrot.slane %v3395, %v3408
        %v3410 = vcombine.low %v3386, %v3402
        %v3411 = vcombine.high %v3386, %v3402
        %v3413 = vunpack.c.l.s4 1934713408
        %v3414 = vunpack.c.0.s8 %v3413
        %v3415 = vlaneseq
        %v3416 = vshrl.u32 %v3415, 7
        %v3417 = vsub.s32 %v3414, %v3416
        %v3418 = vrot.slane %v3410, %v3417
        %v3420 = vunpack.c.l.s4 1934713408
        %v3421 = vunpack.c.0.s8 %v3420
        %v3422 = vlaneseq
        %v3423 = vshrl.u32 %v3422, 7
        %v3424 = vsub.s32 %v3421, %v3423
        %v3425 = vrot.slane %v3411, %v3424
        %v3426 = vcombine.low %v3393, %v3409
        %v3427 = vcombine.high %v3393, %v3409
        %v3429 = vunpack.c.l.s4 1934713408
        %v3430 = vunpack.c.0.s8 %v3429
        %v3431 = vlaneseq
        %v3432 = vshrl.u32 %v3431, 7
        %v3433 = vsub.s32 %v3430, %v3432
        %v3434 = vrot.slane %v3426, %v3433
        %v3436 = vunpack.c.l.s4 1934713408
        %v3437 = vunpack.c.0.s8 %v3436
        %v3438 = vlaneseq
        %v3439 = vshrl.u32 %v3438, 7
        %v3440 = vsub.s32 %v3437, %v3439
        %v3441 = vrot.slane %v3427, %v3440
        %v3442 = vcombine.high %v3418, 0.0
        %v3443 = vcombine.high %v3425, 0.0
        %v3444 = vcombine.high %v3434, 0.0
        %v3445 = vcombine.high %v3441, 0.0
        %v3446 = vcombine.low %v3418, %v3425
        %v3448 = vunpack.c.l.s4 1983009808
        %v3449 = vunpack.c.0.s8 %v3448
        %v3450 = vlaneseq
        %v3451 = vshrl.u32 %v3450, 7
        %v3452 = vsub.s32 %v3449, %v3451
        %v3453 = vrot.slane %v3446, %v3452
        %v3454 = vcombine.low %v3442, %v3443
        %v3456 = vunpack.c.l.s4 1983009808
        %v3457 = vunpack.c.0.s8 %v3456
        %v3458 = vlaneseq
        %v3459 = vshrl.u32 %v3458, 7
        %v3460 = vsub.s32 %v3457, %v3459
        %v3461 = vrot.slane %v3454, %v3460
        %v3462 = vcombine.low %v3434, %v3441
        %v3464 = vunpack.c.l.s4 1983009808
        %v3465 = vunpack.c.0.s8 %v3464
        %v3466 = vlaneseq
        %v3467 = vshrl.u32 %v3466, 7
        %v3468 = vsub.s32 %v3465, %v3467
        %v3469 = vrot.slane %v3462, %v3468
        %v3470 = vcombine.low %v3444, %v3445
        %v3472 = vunpack.c.l.s4 1983009808
        %v3473 = vunpack.c.0.s8 %v3472
        %v3474 = vlaneseq
        %v3475 = vshrl.u32 %v3474, 7
        %v3476 = vsub.s32 %v3473, %v3475
        %v3477 = vrot.slane %v3470, %v3476
        %v3478 = vcombine.low %v3453, %v3461
        %v3479 = vcombine.high %v3453, %v3461
        %v3481 = vunpack.c.l.s4 1934713408
        %v3482 = vunpack.c.0.s8 %v3481
        %v3483 = vlaneseq
        %v3484 = vshrl.u32 %v3483, 7
        %v3485 = vsub.s32 %v3482, %v3484
        %v3486 = vrot.slane %v3478, %v3485
        %v3488 = vunpack.c.l.s4 1934713408
        %v3489 = vunpack.c.0.s8 %v3488
        %v3490 = vlaneseq
        %v3491 = vshrl.u32 %v3490, 7
        %v3492 = vsub.s32 %v3489, %v3491
        %v3493 = vrot.slane %v3479, %v3492
        %v3494 = vcombine.low %v3469, %v3477
        %v3495 = vcombine.high %v3469, %v3477
        %v3497 = vunpack.c.l.s4 1934713408
        %v3498 = vunpack.c.0.s8 %v3497
        %v3499 = vlaneseq
        %v3500 = vshrl.u32 %v3499, 7
        %v3501 = vsub.s32 %v3498, %v3500
        %v3502 = vrot.slane %v3494, %v3501
        %v3504 = vunpack.c.l.s4 1934713408
        %v3505 = vunpack.c.0.s8 %v3504
        %v3506 = vlaneseq
        %v3507 = vshrl.u32 %v3506, 7
        %v3508 = vsub.s32 %v3505, %v3507
        %v3509 = vrot.slane %v3495, %v3508
        %v3510 = vcombine.low %v3486, %v3502
        %v3511 = vcombine.high %v3486, %v3502
        %v3512 = vcombine.low %v3493, %v3509
        %v3513 = vcombine.high %v3493, %v3509
        %v3514 = vld [vmem:[#allocation5] sm:$0xff]
        %v3515 = vld [vmem:[#allocation5 + $0x8] sm:$0xff]
        %v3516 = vld [vmem:[#allocation5 + $0x10] sm:$0xff]
        %v3517 = vld [vmem:[#allocation5 + $0x18] sm:$0xff]
        %v3518 = vld [vmem:[#allocation6] sm:$0xff]
        %v3519 = vld [vmem:[#allocation6 + $0x8] sm:$0xff]
        %v3520 = vld [vmem:[#allocation6 + $0x10] sm:$0xff]
        %v3521 = vld [vmem:[#allocation6 + $0x18] sm:$0xff]
        %v3523 = vsel %vm2348, %v3510, 0
        %v3526 = vsel %vm2348, %v3514, 0
        %3528 = vmatprep.subr.mxu0 0.0
        %3529 = vmatpush1.xpose.msra.mxu0 %v3526
        %3530 = vmatprep.subr.mxu0 0.0
        %3531 = vmatpush1.xpose.msra.mxu0 0.0
        %3532 = vmatprep.subr.mxu0 0.0
        %3533 = vmatpush1.xpose.msra.mxu0 0.0
        %3534 = vmatprep.subr.mxu0 0.0
        %3535 = vmatpush1.xpose.msra.mxu0 0.0
        %3536 = vmatprep.subr.mxu0 0.0
        %3537 = vmatpush1.xpose.msra.mxu0 0.0
        %3538 = vmatprep.subr.mxu0 0.0
        %3539 = vmatpush1.xpose.msra.mxu0 0.0
        %3540 = vmatprep.subr.mxu0 0.0
        %3541 = vmatpush1.xpose.msra.mxu0 0.0
        %3542 = vmatprep.subr.mxu0 0.0
        %3543 = vmatpush1.xpose.msra.mxu0 0.0
        %3544 = vmatprep.subr.mxu0 0.0
        %3545 = vmatpush1.xpose.msra.mxu0 0.0
        %3546 = vmatprep.subr.mxu0 0.0
        %3547 = vmatpush1.xpose.msra.mxu0 0.0
        %3548 = vmatprep.subr.mxu0 0.0
        %3549 = vmatpush1.xpose.msra.mxu0 0.0
        %3550 = vmatprep.subr.mxu0 0.0
        %3551 = vmatpush1.xpose.msra.mxu0 0.0
        %3552 = vmatprep.subr.mxu0 0.0
        %3553 = vmatpush1.xpose.msra.mxu0 0.0
        %3554 = vmatprep.subr.mxu0 0.0
        %3555 = vmatpush1.xpose.msra.mxu0 0.0
        %3556 = vmatprep.subr.mxu0 0.0
        %3557 = vmatpush1.xpose.msra.mxu0 0.0
        %3558 = vmatprep.subr.mxu0 0.0
        %3559 = vmatpush1.xpose.msra.mxu0 0.0
        %3560 = vmatprep.subr.mxu0 0.0
        %3561 = vmatpush1.xpose.msra.mxu0 0.0
        %3562 = vmatprep.subr.mxu0 0.0
        %3563 = vmatpush1.xpose.msra.mxu0 0.0
        %3564 = vmatprep.subr.mxu0 0.0
        %3565 = vmatpush1.xpose.msra.mxu0 0.0
        %3566 = vmatprep.subr.mxu0 0.0
        %3567 = vmatpush1.xpose.msra.mxu0 0.0
        %3568 = vmatprep.subr.mxu0 0.0
        %3569 = vmatpush1.xpose.msra.mxu0 0.0
        %3570 = vmatprep.subr.mxu0 0.0
        %3571 = vmatpush1.xpose.msra.mxu0 0.0
        %3572 = vmatprep.subr.mxu0 0.0
        %3573 = vmatpush1.xpose.msra.mxu0 0.0
        %3574 = vmatprep.subr.mxu0 0.0
        %3575 = vmatpush1.xpose.msra.mxu0 0.0
        %3576 = vmatprep.subr.mxu0 0.0
        %3577 = vmatpush1.xpose.msra.mxu0 0.0
        %3578 = vmatprep.subr.mxu0 0.0
        %3579 = vmatpush1.xpose.msra.mxu0 0.0
        %3580 = vmatprep.subr.mxu0 0.0
        %3581 = vmatpush1.xpose.msra.mxu0 0.0
        %3582 = vmatprep.subr.mxu0 0.0
        %3583 = vmatpush1.xpose.msra.mxu0 0.0
        %3584 = vmatprep.subr.mxu0 0.0
        %3585 = vmatpush1.xpose.msra.mxu0 0.0
        %3586 = vmatprep.subr.mxu0 0.0
        %3587 = vmatpush1.xpose.msra.mxu0 0.0
        %3588 = vmatprep.subr.mxu0 0.0
        %3589 = vmatpush1.xpose.msra.mxu0 0.0
        %3590 = vmatprep.subr.mxu0 0.0
        %3591 = vmatpush1.xpose.msra.mxu0 0.0
        %3592 = vmatprep.mubr.f32.mxu0 0.0
        %3593 = vmatmul.mubr.f32.gmra.mrb[0].mxu0 %v3523
        %v3594 = vpop.f32.mrb[0].mxu0
        %v3595 = vadd.f32 0.0, %v3594
        %v3596 = vpop.f32.mrb[0].mxu0
        %3597 = vdwg.mxu0
        %v3599 = vsel %vm2348, %v3511, 0
        %v3602 = vsel %vm2348, %v3515, 0
        %3604 = vmatprep.subr.mxu0 0.0
        %3605 = vmatpush1.xpose.msra.mxu0 %v3602
        %3606 = vmatprep.subr.mxu0 0.0
        %3607 = vmatpush1.xpose.msra.mxu0 0.0
        %3608 = vmatprep.subr.mxu0 0.0
        %3609 = vmatpush1.xpose.msra.mxu0 0.0
        %3610 = vmatprep.subr.mxu0 0.0
        %3611 = vmatpush1.xpose.msra.mxu0 0.0
        %3612 = vmatprep.subr.mxu0 0.0
        %3613 = vmatpush1.xpose.msra.mxu0 0.0
        %3614 = vmatprep.subr.mxu0 0.0
        %3615 = vmatpush1.xpose.msra.mxu0 0.0
        %3616 = vmatprep.subr.mxu0 0.0
        %3617 = vmatpush1.xpose.msra.mxu0 0.0
        %3618 = vmatprep.subr.mxu0 0.0
        %3619 = vmatpush1.xpose.msra.mxu0 0.0
        %3620 = vmatprep.subr.mxu0 0.0
        %3621 = vmatpush1.xpose.msra.mxu0 0.0
        %3622 = vmatprep.subr.mxu0 0.0
        %3623 = vmatpush1.xpose.msra.mxu0 0.0
        %3624 = vmatprep.subr.mxu0 0.0
        %3625 = vmatpush1.xpose.msra.mxu0 0.0
        %3626 = vmatprep.subr.mxu0 0.0
        %3627 = vmatpush1.xpose.msra.mxu0 0.0
        %3628 = vmatprep.subr.mxu0 0.0
        %3629 = vmatpush1.xpose.msra.mxu0 0.0
        %3630 = vmatprep.subr.mxu0 0.0
        %3631 = vmatpush1.xpose.msra.mxu0 0.0
        %3632 = vmatprep.subr.mxu0 0.0
        %3633 = vmatpush1.xpose.msra.mxu0 0.0
        %3634 = vmatprep.subr.mxu0 0.0
        %3635 = vmatpush1.xpose.msra.mxu0 0.0
        %3636 = vmatprep.subr.mxu0 0.0
        %3637 = vmatpush1.xpose.msra.mxu0 0.0
        %3638 = vmatprep.subr.mxu0 0.0
        %3639 = vmatpush1.xpose.msra.mxu0 0.0
        %3640 = vmatprep.subr.mxu0 0.0
        %3641 = vmatpush1.xpose.msra.mxu0 0.0
        %3642 = vmatprep.subr.mxu0 0.0
        %3643 = vmatpush1.xpose.msra.mxu0 0.0
        %3644 = vmatprep.subr.mxu0 0.0
        %3645 = vmatpush1.xpose.msra.mxu0 0.0
        %3646 = vmatprep.subr.mxu0 0.0
        %3647 = vmatpush1.xpose.msra.mxu0 0.0
        %3648 = vmatprep.subr.mxu0 0.0
        %3649 = vmatpush1.xpose.msra.mxu0 0.0
        %3650 = vmatprep.subr.mxu0 0.0
        %3651 = vmatpush1.xpose.msra.mxu0 0.0
        %3652 = vmatprep.subr.mxu0 0.0
        %3653 = vmatpush1.xpose.msra.mxu0 0.0
        %3654 = vmatprep.subr.mxu0 0.0
        %3655 = vmatpush1.xpose.msra.mxu0 0.0
        %3656 = vmatprep.subr.mxu0 0.0
        %3657 = vmatpush1.xpose.msra.mxu0 0.0
        %3658 = vmatprep.subr.mxu0 0.0
        %3659 = vmatpush1.xpose.msra.mxu0 0.0
        %3660 = vmatprep.subr.mxu0 0.0
        %3661 = vmatpush1.xpose.msra.mxu0 0.0
        %3662 = vmatprep.subr.mxu0 0.0
        %3663 = vmatpush1.xpose.msra.mxu0 0.0
        %3664 = vmatprep.subr.mxu0 0.0
        %3665 = vmatpush1.xpose.msra.mxu0 0.0
        %3666 = vmatprep.subr.mxu0 0.0
        %3667 = vmatpush1.xpose.msra.mxu0 0.0
        %3668 = vmatprep.mubr.f32.mxu0 0.0
        %3669 = vmatmul.mubr.f32.gmra.mrb[0].mxu0 %v3599
        %v3670 = vpop.f32.mrb[0].mxu0
        %v3671 = vadd.f32 0.0, %v3670
        %v3672 = vpop.f32.mrb[0].mxu0
        %3673 = vdwg.mxu0
        %v3675 = vsel %vm2348, %v3512, 0
        %v3678 = vsel %vm2348, %v3516, 0
        %3680 = vmatprep.subr.mxu0 0.0
        %3681 = vmatpush1.xpose.msra.mxu0 %v3678
        %3682 = vmatprep.subr.mxu0 0.0
        %3683 = vmatpush1.xpose.msra.mxu0 0.0
        %3684 = vmatprep.subr.mxu0 0.0
        %3685 = vmatpush1.xpose.msra.mxu0 0.0
        %3686 = vmatprep.subr.mxu0 0.0
        %3687 = vmatpush1.xpose.msra.mxu0 0.0
        %3688 = vmatprep.subr.mxu0 0.0
        %3689 = vmatpush1.xpose.msra.mxu0 0.0
        %3690 = vmatprep.subr.mxu0 0.0
        %3691 = vmatpush1.xpose.msra.mxu0 0.0
        %3692 = vmatprep.subr.mxu0 0.0
        %3693 = vmatpush1.xpose.msra.mxu0 0.0
        %3694 = vmatprep.subr.mxu0 0.0
        %3695 = vmatpush1.xpose.msra.mxu0 0.0
        %3696 = vmatprep.subr.mxu0 0.0
        %3697 = vmatpush1.xpose.msra.mxu0 0.0
        %3698 = vmatprep.subr.mxu0 0.0
        %3699 = vmatpush1.xpose.msra.mxu0 0.0
        %3700 = vmatprep.subr.mxu0 0.0
        %3701 = vmatpush1.xpose.msra.mxu0 0.0
        %3702 = vmatprep.subr.mxu0 0.0
        %3703 = vmatpush1.xpose.msra.mxu0 0.0
        %3704 = vmatprep.subr.mxu0 0.0
        %3705 = vmatpush1.xpose.msra.mxu0 0.0
        %3706 = vmatprep.subr.mxu0 0.0
        %3707 = vmatpush1.xpose.msra.mxu0 0.0
        %3708 = vmatprep.subr.mxu0 0.0
        %3709 = vmatpush1.xpose.msra.mxu0 0.0
        %3710 = vmatprep.subr.mxu0 0.0
        %3711 = vmatpush1.xpose.msra.mxu0 0.0
        %3712 = vmatprep.subr.mxu0 0.0
        %3713 = vmatpush1.xpose.msra.mxu0 0.0
        %3714 = vmatprep.subr.mxu0 0.0
        %3715 = vmatpush1.xpose.msra.mxu0 0.0
        %3716 = vmatprep.subr.mxu0 0.0
        %3717 = vmatpush1.xpose.msra.mxu0 0.0
        %3718 = vmatprep.subr.mxu0 0.0
        %3719 = vmatpush1.xpose.msra.mxu0 0.0
        %3720 = vmatprep.subr.mxu0 0.0
        %3721 = vmatpush1.xpose.msra.mxu0 0.0
        %3722 = vmatprep.subr.mxu0 0.0
        %3723 = vmatpush1.xpose.msra.mxu0 0.0
        %3724 = vmatprep.subr.mxu0 0.0
        %3725 = vmatpush1.xpose.msra.mxu0 0.0
        %3726 = vmatprep.subr.mxu0 0.0
        %3727 = vmatpush1.xpose.msra.mxu0 0.0
        %3728 = vmatprep.subr.mxu0 0.0
        %3729 = vmatpush1.xpose.msra.mxu0 0.0
        %3730 = vmatprep.subr.mxu0 0.0
        %3731 = vmatpush1.xpose.msra.mxu0 0.0
        %3732 = vmatprep.subr.mxu0 0.0
        %3733 = vmatpush1.xpose.msra.mxu0 0.0
        %3734 = vmatprep.subr.mxu0 0.0
        %3735 = vmatpush1.xpose.msra.mxu0 0.0
        %3736 = vmatprep.subr.mxu0 0.0
        %3737 = vmatpush1.xpose.msra.mxu0 0.0
        %3738 = vmatprep.subr.mxu0 0.0
        %3739 = vmatpush1.xpose.msra.mxu0 0.0
        %3740 = vmatprep.subr.mxu0 0.0
        %3741 = vmatpush1.xpose.msra.mxu0 0.0
        %3742 = vmatprep.subr.mxu0 0.0
        %3743 = vmatpush1.xpose.msra.mxu0 0.0
        %3744 = vmatprep.mubr.f32.mxu0 0.0
        %3745 = vmatmul.mubr.f32.gmra.mrb[0].mxu0 %v3675
        %v3746 = vpop.f32.mrb[0].mxu0
        %v3747 = vadd.f32 0.0, %v3746
        %v3748 = vpop.f32.mrb[0].mxu0
        %3749 = vdwg.mxu0
        %v3751 = vsel %vm2348, %v3513, 0
        %v3754 = vsel %vm2348, %v3517, 0
        %3756 = vmatprep.subr.mxu0 0.0
        %3757 = vmatpush1.xpose.msra.mxu0 %v3754
        %3758 = vmatprep.subr.mxu0 0.0
        %3759 = vmatpush1.xpose.msra.mxu0 0.0
        %3760 = vmatprep.subr.mxu0 0.0
        %3761 = vmatpush1.xpose.msra.mxu0 0.0
        %3762 = vmatprep.subr.mxu0 0.0
        %3763 = vmatpush1.xpose.msra.mxu0 0.0
        %3764 = vmatprep.subr.mxu0 0.0
        %3765 = vmatpush1.xpose.msra.mxu0 0.0
        %3766 = vmatprep.subr.mxu0 0.0
        %3767 = vmatpush1.xpose.msra.mxu0 0.0
        %3768 = vmatprep.subr.mxu0 0.0
        %3769 = vmatpush1.xpose.msra.mxu0 0.0
        %3770 = vmatprep.subr.mxu0 0.0
        %3771 = vmatpush1.xpose.msra.mxu0 0.0
        %3772 = vmatprep.subr.mxu0 0.0
        %3773 = vmatpush1.xpose.msra.mxu0 0.0
        %3774 = vmatprep.subr.mxu0 0.0
        %3775 = vmatpush1.xpose.msra.mxu0 0.0
        %3776 = vmatprep.subr.mxu0 0.0
        %3777 = vmatpush1.xpose.msra.mxu0 0.0
        %3778 = vmatprep.subr.mxu0 0.0
        %3779 = vmatpush1.xpose.msra.mxu0 0.0
        %3780 = vmatprep.subr.mxu0 0.0
        %3781 = vmatpush1.xpose.msra.mxu0 0.0
        %3782 = vmatprep.subr.mxu0 0.0
        %3783 = vmatpush1.xpose.msra.mxu0 0.0
        %3784 = vmatprep.subr.mxu0 0.0
        %3785 = vmatpush1.xpose.msra.mxu0 0.0
        %3786 = vmatprep.subr.mxu0 0.0
        %3787 = vmatpush1.xpose.msra.mxu0 0.0
        %3788 = vmatprep.subr.mxu0 0.0
        %3789 = vmatpush1.xpose.msra.mxu0 0.0
        %3790 = vmatprep.subr.mxu0 0.0
        %3791 = vmatpush1.xpose.msra.mxu0 0.0
        %3792 = vmatprep.subr.mxu0 0.0
        %3793 = vmatpush1.xpose.msra.mxu0 0.0
        %3794 = vmatprep.subr.mxu0 0.0
        %3795 = vmatpush1.xpose.msra.mxu0 0.0
        %3796 = vmatprep.subr.mxu0 0.0
        %3797 = vmatpush1.xpose.msra.mxu0 0.0
        %3798 = vmatprep.subr.mxu0 0.0
        %3799 = vmatpush1.xpose.msra.mxu0 0.0
        %3800 = vmatprep.subr.mxu0 0.0
        %3801 = vmatpush1.xpose.msra.mxu0 0.0
        %3802 = vmatprep.subr.mxu0 0.0
        %3803 = vmatpush1.xpose.msra.mxu0 0.0
        %3804 = vmatprep.subr.mxu0 0.0
        %3805 = vmatpush1.xpose.msra.mxu0 0.0
        %3806 = vmatprep.subr.mxu0 0.0
        %3807 = vmatpush1.xpose.msra.mxu0 0.0
        %3808 = vmatprep.subr.mxu0 0.0
        %3809 = vmatpush1.xpose.msra.mxu0 0.0
        %3810 = vmatprep.subr.mxu0 0.0
        %3811 = vmatpush1.xpose.msra.mxu0 0.0
        %3812 = vmatprep.subr.mxu0 0.0
        %3813 = vmatpush1.xpose.msra.mxu0 0.0
        %3814 = vmatprep.subr.mxu0 0.0
        %3815 = vmatpush1.xpose.msra.mxu0 0.0
        %3816 = vmatprep.subr.mxu0 0.0
        %3817 = vmatpush1.xpose.msra.mxu0 0.0
        %3818 = vmatprep.subr.mxu0 0.0
        %3819 = vmatpush1.xpose.msra.mxu0 0.0
        %3820 = vmatprep.mubr.f32.mxu0 0.0
        %3821 = vmatmul.mubr.f32.gmra.mrb[0].mxu0 %v3751
        %v3822 = vpop.f32.mrb[0].mxu0
        %v3823 = vadd.f32 0.0, %v3822
        %v3824 = vpop.f32.mrb[0].mxu0
        %3825 = vdwg.mxu0
        %v3826 = vsel %vm2348, %v3595, -inf
        %3827 = vmax.xlane.f32.xlu0 %v3826
        %v3828 = vpop.xlane.xlu0 %3827
        %v3829 = vsel %vm2348, %v3671, -inf
        %3830 = vmax.xlane.f32.xlu0 %v3829
        %v3831 = vpop.xlane.xlu0 %3830
        %v3832 = vsel %vm2348, %v3747, -inf
        %3833 = vmax.xlane.f32.xlu0 %v3832
        %v3834 = vpop.xlane.xlu0 %3833
        %v3835 = vsel %vm2348, %v3823, -inf
        %3836 = vmax.xlane.f32.xlu0 %v3835
        %v3837 = vpop.xlane.xlu0 %3836
        %v3838 = vsub.f32 %v3595, %v3828
        %v3839 = vsub.f32 %v3671, %v3831
        %v3840 = vsub.f32 %v3747, %v3834
        %v3841 = vsub.f32 %v3823, %v3837
        %v3842 = vmul.f32 %v3838, 1.442695
        %v3843 = vpow.pop %v3842
        %v3844 = vmul.f32 %v3839, 1.442695
        %v3845 = vpow.pop %v3844
        %v3846 = vmul.f32 %v3840, 1.442695
        %v3847 = vpow.pop %v3846
        %v3848 = vmul.f32 %v3841, 1.442695
        %v3849 = vpow.pop %v3848
        %v3850 = vsel %vm2348, %v3843, 0.0
        %3851 = vadd.xlane.f32.xlu0 %v3850
        %v3852 = vpop.xlane.xlu0 %3851
        %v3853 = vsel %vm2348, %v3845, 0.0
        %3854 = vadd.xlane.f32.xlu0 %v3853
        %v3855 = vpop.xlane.xlu0 %3854
        %v3856 = vsel %vm2348, %v3847, 0.0
        %3857 = vadd.xlane.f32.xlu0 %v3856
        %v3858 = vpop.xlane.xlu0 %3857
        %v3859 = vsel %vm2348, %v3849, 0.0
        %3860 = vadd.xlane.f32.xlu0 %v3859
        %v3861 = vpop.xlane.xlu0 %3860
        %v3862 = vrcp.pop %v3852
        %v3863 = vrcp.pop %v3855
        %v3864 = vrcp.pop %v3858
        %v3865 = vrcp.pop %v3861
        %v3866 = vmul.f32 %v3843, %v3862
        %v3867 = vmul.f32 %v3845, %v3863
        %v3868 = vmul.f32 %v3847, %v3864
        %v3869 = vmul.f32 %v3849, %v3865
        %v3871 = vsel %vm2348, %v3866, 0
        %3873 = vmatprep.subr.mxu0 0.0
        %3874 = vmatpush1.msra.mxu0 %v3518
        %3875 = vmatprep.subr.mxu0 0.0
        %3876 = vmatpush1.msra.mxu0 0.0
        %3877 = vmatprep.subr.mxu0 0.0
        %3878 = vmatpush1.msra.mxu0 0.0
        %3879 = vmatprep.subr.mxu0 0.0
        %3880 = vmatpush1.msra.mxu0 0.0
        %3881 = vmatprep.subr.mxu0 0.0
        %3882 = vmatpush1.msra.mxu0 0.0
        %3883 = vmatprep.subr.mxu0 0.0
        %3884 = vmatpush1.msra.mxu0 0.0
        %3885 = vmatprep.subr.mxu0 0.0
        %3886 = vmatpush1.msra.mxu0 0.0
        %3887 = vmatprep.subr.mxu0 0.0
        %3888 = vmatpush1.msra.mxu0 0.0
        %3889 = vmatprep.subr.mxu0 0.0
        %3890 = vmatpush1.msra.mxu0 0.0
        %3891 = vmatprep.subr.mxu0 0.0
        %3892 = vmatpush1.msra.mxu0 0.0
        %3893 = vmatprep.subr.mxu0 0.0
        %3894 = vmatpush1.msra.mxu0 0.0
        %3895 = vmatprep.subr.mxu0 0.0
        %3896 = vmatpush1.msra.mxu0 0.0
        %3897 = vmatprep.subr.mxu0 0.0
        %3898 = vmatpush1.msra.mxu0 0.0
        %3899 = vmatprep.subr.mxu0 0.0
        %3900 = vmatpush1.msra.mxu0 0.0
        %3901 = vmatprep.subr.mxu0 0.0
        %3902 = vmatpush1.msra.mxu0 0.0
        %3903 = vmatprep.subr.mxu0 0.0
        %3904 = vmatpush1.msra.mxu0 0.0
        %3905 = vmatprep.subr.mxu0 0.0
        %3906 = vmatpush1.msra.mxu0 0.0
        %3907 = vmatprep.subr.mxu0 0.0
        %3908 = vmatpush1.msra.mxu0 0.0
        %3909 = vmatprep.subr.mxu0 0.0
        %3910 = vmatpush1.msra.mxu0 0.0
        %3911 = vmatprep.subr.mxu0 0.0
        %3912 = vmatpush1.msra.mxu0 0.0
        %3913 = vmatprep.subr.mxu0 0.0
        %3914 = vmatpush1.msra.mxu0 0.0
        %3915 = vmatprep.subr.mxu0 0.0
        %3916 = vmatpush1.msra.mxu0 0.0
        %3917 = vmatprep.subr.mxu0 0.0
        %3918 = vmatpush1.msra.mxu0 0.0
        %3919 = vmatprep.subr.mxu0 0.0
        %3920 = vmatpush1.msra.mxu0 0.0
        %3921 = vmatprep.subr.mxu0 0.0
        %3922 = vmatpush1.msra.mxu0 0.0
        %3923 = vmatprep.subr.mxu0 0.0
        %3924 = vmatpush1.msra.mxu0 0.0
        %3925 = vmatprep.subr.mxu0 0.0
        %3926 = vmatpush1.msra.mxu0 0.0
        %3927 = vmatprep.subr.mxu0 0.0
        %3928 = vmatpush1.msra.mxu0 0.0
        %3929 = vmatprep.subr.mxu0 0.0
        %3930 = vmatpush1.msra.mxu0 0.0
        %3931 = vmatprep.subr.mxu0 0.0
        %3932 = vmatpush1.msra.mxu0 0.0
        %3933 = vmatprep.subr.mxu0 0.0
        %3934 = vmatpush1.msra.mxu0 0.0
        %3935 = vmatprep.subr.mxu0 0.0
        %3936 = vmatpush1.msra.mxu0 0.0
        %3937 = vmatprep.mubr.f32.mxu0 0.0
        %3938 = vmatmul.mubr.f32.gmra.mrb[0].mxu0 %v3871
        %v3939 = vpop.f32.mrb[0].mxu0
        %v3940 = vadd.f32 0.0, %v3939
        %v3941 = vpop.f32.mrb[0].mxu0
        %3942 = vdwg.mxu0
        %v3944 = vsel %vm2348, %v3867, 0
        %3946 = vmatprep.subr.mxu0 0.0
        %3947 = vmatpush1.msra.mxu0 %v3519
        %3948 = vmatprep.subr.mxu0 0.0
        %3949 = vmatpush1.msra.mxu0 0.0
        %3950 = vmatprep.subr.mxu0 0.0
        %3951 = vmatpush1.msra.mxu0 0.0
        %3952 = vmatprep.subr.mxu0 0.0
        %3953 = vmatpush1.msra.mxu0 0.0
        %3954 = vmatprep.subr.mxu0 0.0
        %3955 = vmatpush1.msra.mxu0 0.0
        %3956 = vmatprep.subr.mxu0 0.0
        %3957 = vmatpush1.msra.mxu0 0.0
        %3958 = vmatprep.subr.mxu0 0.0
        %3959 = vmatpush1.msra.mxu0 0.0
        %3960 = vmatprep.subr.mxu0 0.0
        %3961 = vmatpush1.msra.mxu0 0.0
        %3962 = vmatprep.subr.mxu0 0.0
        %3963 = vmatpush1.msra.mxu0 0.0
        %3964 = vmatprep.subr.mxu0 0.0
        %3965 = vmatpush1.msra.mxu0 0.0
        %3966 = vmatprep.subr.mxu0 0.0
        %3967 = vmatpush1.msra.mxu0 0.0
        %3968 = vmatprep.subr.mxu0 0.0
        %3969 = vmatpush1.msra.mxu0 0.0
        %3970 = vmatprep.subr.mxu0 0.0
        %3971 = vmatpush1.msra.mxu0 0.0
        %3972 = vmatprep.subr.mxu0 0.0
        %3973 = vmatpush1.msra.mxu0 0.0
        %3974 = vmatprep.subr.mxu0 0.0
        %3975 = vmatpush1.msra.mxu0 0.0
        %3976 = vmatprep.subr.mxu0 0.0
        %3977 = vmatpush1.msra.mxu0 0.0
        %3978 = vmatprep.subr.mxu0 0.0
        %3979 = vmatpush1.msra.mxu0 0.0
        %3980 = vmatprep.subr.mxu0 0.0
        %3981 = vmatpush1.msra.mxu0 0.0
        %3982 = vmatprep.subr.mxu0 0.0
        %3983 = vmatpush1.msra.mxu0 0.0
        %3984 = vmatprep.subr.mxu0 0.0
        %3985 = vmatpush1.msra.mxu0 0.0
        %3986 = vmatprep.subr.mxu0 0.0
        %3987 = vmatpush1.msra.mxu0 0.0
        %3988 = vmatprep.subr.mxu0 0.0
        %3989 = vmatpush1.msra.mxu0 0.0
        %3990 = vmatprep.subr.mxu0 0.0
        %3991 = vmatpush1.msra.mxu0 0.0
        %3992 = vmatprep.subr.mxu0 0.0
        %3993 = vmatpush1.msra.mxu0 0.0
        %3994 = vmatprep.subr.mxu0 0.0
        %3995 = vmatpush1.msra.mxu0 0.0
        %3996 = vmatprep.subr.mxu0 0.0
        %3997 = vmatpush1.msra.mxu0 0.0
        %3998 = vmatprep.subr.mxu0 0.0
        %3999 = vmatpush1.msra.mxu0 0.0
        %4000 = vmatprep.subr.mxu0 0.0
        %4001 = vmatpush1.msra.mxu0 0.0
        %4002 = vmatprep.subr.mxu0 0.0
        %4003 = vmatpush1.msra.mxu0 0.0
        %4004 = vmatprep.subr.mxu0 0.0
        %4005 = vmatpush1.msra.mxu0 0.0
        %4006 = vmatprep.subr.mxu0 0.0
        %4007 = vmatpush1.msra.mxu0 0.0
        %4008 = vmatprep.subr.mxu0 0.0
        %4009 = vmatpush1.msra.mxu0 0.0
        %4010 = vmatprep.mubr.f32.mxu0 0.0
        %4011 = vmatmul.mubr.f32.gmra.mrb[0].mxu0 %v3944
        %v4012 = vpop.f32.mrb[0].mxu0
        %v4013 = vadd.f32 0.0, %v4012
        %v4014 = vpop.f32.mrb[0].mxu0
        %4015 = vdwg.mxu0
        %v4017 = vsel %vm2348, %v3868, 0
        %4019 = vmatprep.subr.mxu0 0.0
        %4020 = vmatpush1.msra.mxu0 %v3520
        %4021 = vmatprep.subr.mxu0 0.0
        %4022 = vmatpush1.msra.mxu0 0.0
        %4023 = vmatprep.subr.mxu0 0.0
        %4024 = vmatpush1.msra.mxu0 0.0
        %4025 = vmatprep.subr.mxu0 0.0
        %4026 = vmatpush1.msra.mxu0 0.0
        %4027 = vmatprep.subr.mxu0 0.0
        %4028 = vmatpush1.msra.mxu0 0.0
        %4029 = vmatprep.subr.mxu0 0.0
        %4030 = vmatpush1.msra.mxu0 0.0
        %4031 = vmatprep.subr.mxu0 0.0
        %4032 = vmatpush1.msra.mxu0 0.0
        %4033 = vmatprep.subr.mxu0 0.0
        %4034 = vmatpush1.msra.mxu0 0.0
        %4035 = vmatprep.subr.mxu0 0.0
        %4036 = vmatpush1.msra.mxu0 0.0
        %4037 = vmatprep.subr.mxu0 0.0
        %4038 = vmatpush1.msra.mxu0 0.0
        %4039 = vmatprep.subr.mxu0 0.0
        %4040 = vmatpush1.msra.mxu0 0.0
        %4041 = vmatprep.subr.mxu0 0.0
        %4042 = vmatpush1.msra.mxu0 0.0
        %4043 = vmatprep.subr.mxu0 0.0
        %4044 = vmatpush1.msra.mxu0 0.0
        %4045 = vmatprep.subr.mxu0 0.0
        %4046 = vmatpush1.msra.mxu0 0.0
        %4047 = vmatprep.subr.mxu0 0.0
        %4048 = vmatpush1.msra.mxu0 0.0
        %4049 = vmatprep.subr.mxu0 0.0
        %4050 = vmatpush1.msra.mxu0 0.0
        %4051 = vmatprep.subr.mxu0 0.0
        %4052 = vmatpush1.msra.mxu0 0.0
        %4053 = vmatprep.subr.mxu0 0.0
        %4054 = vmatpush1.msra.mxu0 0.0
        %4055 = vmatprep.subr.mxu0 0.0
        %4056 = vmatpush1.msra.mxu0 0.0
        %4057 = vmatprep.subr.mxu0 0.0
        %4058 = vmatpush1.msra.mxu0 0.0
        %4059 = vmatprep.subr.mxu0 0.0
        %4060 = vmatpush1.msra.mxu0 0.0
        %4061 = vmatprep.subr.mxu0 0.0
        %4062 = vmatpush1.msra.mxu0 0.0
        %4063 = vmatprep.subr.mxu0 0.0
        %4064 = vmatpush1.msra.mxu0 0.0
        %4065 = vmatprep.subr.mxu0 0.0
        %4066 = vmatpush1.msra.mxu0 0.0
        %4067 = vmatprep.subr.mxu0 0.0
        %4068 = vmatpush1.msra.mxu0 0.0
        %4069 = vmatprep.subr.mxu0 0.0
        %4070 = vmatpush1.msra.mxu0 0.0
        %4071 = vmatprep.subr.mxu0 0.0
        %4072 = vmatpush1.msra.mxu0 0.0
        %4073 = vmatprep.subr.mxu0 0.0
        %4074 = vmatpush1.msra.mxu0 0.0
        %4075 = vmatprep.subr.mxu0 0.0
        %4076 = vmatpush1.msra.mxu0 0.0
        %4077 = vmatprep.subr.mxu0 0.0
        %4078 = vmatpush1.msra.mxu0 0.0
        %4079 = vmatprep.subr.mxu0 0.0
        %4080 = vmatpush1.msra.mxu0 0.0
        %4081 = vmatprep.subr.mxu0 0.0
        %4082 = vmatpush1.msra.mxu0 0.0
        %4083 = vmatprep.mubr.f32.mxu0 0.0
        %4084 = vmatmul.mubr.f32.gmra.mrb[0].mxu0 %v4017
        %v4085 = vpop.f32.mrb[0].mxu0
        %v4086 = vadd.f32 0.0, %v4085
        %v4087 = vpop.f32.mrb[0].mxu0
        %4088 = vdwg.mxu0
        %v4090 = vsel %vm2348, %v3869, 0
        %4092 = vmatprep.subr.mxu0 0.0
        %4093 = vmatpush1.msra.mxu0 %v3521
        %4094 = vmatprep.subr.mxu0 0.0
        %4095 = vmatpush1.msra.mxu0 0.0
        %4096 = vmatprep.subr.mxu0 0.0
        %4097 = vmatpush1.msra.mxu0 0.0
        %4098 = vmatprep.subr.mxu0 0.0
        %4099 = vmatpush1.msra.mxu0 0.0
        %4100 = vmatprep.subr.mxu0 0.0
        %4101 = vmatpush1.msra.mxu0 0.0
        %4102 = vmatprep.subr.mxu0 0.0
        %4103 = vmatpush1.msra.mxu0 0.0
        %4104 = vmatprep.subr.mxu0 0.0
        %4105 = vmatpush1.msra.mxu0 0.0
        %4106 = vmatprep.subr.mxu0 0.0
        %4107 = vmatpush1.msra.mxu0 0.0
        %4108 = vmatprep.subr.mxu0 0.0
        %4109 = vmatpush1.msra.mxu0 0.0
        %4110 = vmatprep.subr.mxu0 0.0
        %4111 = vmatpush1.msra.mxu0 0.0
        %4112 = vmatprep.subr.mxu0 0.0
        %4113 = vmatpush1.msra.mxu0 0.0
        %4114 = vmatprep.subr.mxu0 0.0
        %4115 = vmatpush1.msra.mxu0 0.0
        %4116 = vmatprep.subr.mxu0 0.0
        %4117 = vmatpush1.msra.mxu0 0.0
        %4118 = vmatprep.subr.mxu0 0.0
        %4119 = vmatpush1.msra.mxu0 0.0
        %4120 = vmatprep.subr.mxu0 0.0
        %4121 = vmatpush1.msra.mxu0 0.0
        %4122 = vmatprep.subr.mxu0 0.0
        %4123 = vmatpush1.msra.mxu0 0.0
        %4124 = vmatprep.subr.mxu0 0.0
        %4125 = vmatpush1.msra.mxu0 0.0
        %4126 = vmatprep.subr.mxu0 0.0
        %4127 = vmatpush1.msra.mxu0 0.0
        %4128 = vmatprep.subr.mxu0 0.0
        %4129 = vmatpush1.msra.mxu0 0.0
        %4130 = vmatprep.subr.mxu0 0.0
        %4131 = vmatpush1.msra.mxu0 0.0
        %4132 = vmatprep.subr.mxu0 0.0
        %4133 = vmatpush1.msra.mxu0 0.0
        %4134 = vmatprep.subr.mxu0 0.0
        %4135 = vmatpush1.msra.mxu0 0.0
        %4136 = vmatprep.subr.mxu0 0.0
        %4137 = vmatpush1.msra.mxu0 0.0
        %4138 = vmatprep.subr.mxu0 0.0
        %4139 = vmatpush1.msra.mxu0 0.0
        %4140 = vmatprep.subr.mxu0 0.0
        %4141 = vmatpush1.msra.mxu0 0.0
        %4142 = vmatprep.subr.mxu0 0.0
        %4143 = vmatpush1.msra.mxu0 0.0
        %4144 = vmatprep.subr.mxu0 0.0
        %4145 = vmatpush1.msra.mxu0 0.0
        %4146 = vmatprep.subr.mxu0 0.0
        %4147 = vmatpush1.msra.mxu0 0.0
        %4148 = vmatprep.subr.mxu0 0.0
        %4149 = vmatpush1.msra.mxu0 0.0
        %4150 = vmatprep.subr.mxu0 0.0
        %4151 = vmatpush1.msra.mxu0 0.0
        %4152 = vmatprep.subr.mxu0 0.0
        %4153 = vmatpush1.msra.mxu0 0.0
        %4154 = vmatprep.subr.mxu0 0.0
        %4155 = vmatpush1.msra.mxu0 0.0
        %4156 = vmatprep.mubr.f32.mxu0 0.0
        %4157 = vmatmul.mubr.f32.gmra.mrb[0].mxu0 %v4090
        %v4158 = vpop.f32.mrb[0].mxu0
        %v4159 = vadd.f32 0.0, %v4158
        %v4160 = vpop.f32.mrb[0].mxu0
        %4161 = vdwg.mxu0
        %v4162 = vcombine.low %v3940, %v4086
        %v4163 = vcombine.high %v3940, %v4086
        %v4165 = vunpack.c.l.s4 1983009808
        %v4166 = vunpack.c.0.s8 %v4165
        %v4167 = vlaneseq
        %v4168 = vshrl.u32 %v4167, 7
        %v4169 = vsub.s32 %v4166, %v4168
        %v4170 = vrot.slane %v4162, %v4169
        %v4172 = vunpack.c.l.s4 1983009808
        %v4173 = vunpack.c.0.s8 %v4172
        %v4174 = vlaneseq
        %v4175 = vshrl.u32 %v4174, 7
        %v4176 = vsub.s32 %v4173, %v4175
        %v4177 = vrot.slane %v4163, %v4176
        %v4178 = vcombine.low %v4013, %v4159
        %v4179 = vcombine.high %v4013, %v4159
        %v4181 = vunpack.c.l.s4 1983009808
        %v4182 = vunpack.c.0.s8 %v4181
        %v4183 = vlaneseq
        %v4184 = vshrl.u32 %v4183, 7
        %v4185 = vsub.s32 %v4182, %v4184
        %v4186 = vrot.slane %v4178, %v4185
        %v4188 = vunpack.c.l.s4 1983009808
        %v4189 = vunpack.c.0.s8 %v4188
        %v4190 = vlaneseq
        %v4191 = vshrl.u32 %v4190, 7
        %v4192 = vsub.s32 %v4189, %v4191
        %v4193 = vrot.slane %v4179, %v4192
        %v4194 = vcombine.low %v4170, %v4186
        %v4195 = vcombine.high %v4170, %v4186
        %v4197 = vunpack.c.l.s4 1934713408
        %v4198 = vunpack.c.0.s8 %v4197
        %v4199 = vlaneseq
        %v4200 = vshrl.u32 %v4199, 7
        %v4201 = vsub.s32 %v4198, %v4200
        %v4202 = vrot.slane %v4194, %v4201
        %v4204 = vunpack.c.l.s4 1934713408
        %v4205 = vunpack.c.0.s8 %v4204
        %v4206 = vlaneseq
        %v4207 = vshrl.u32 %v4206, 7
        %v4208 = vsub.s32 %v4205, %v4207
        %v4209 = vrot.slane %v4195, %v4208
        %v4210 = vcombine.low %v4177, %v4193
        %v4211 = vcombine.high %v4177, %v4193
        %v4213 = vunpack.c.l.s4 1934713408
        %v4214 = vunpack.c.0.s8 %v4213
        %v4215 = vlaneseq
        %v4216 = vshrl.u32 %v4215, 7
        %v4217 = vsub.s32 %v4214, %v4216
        %v4218 = vrot.slane %v4210, %v4217
        %v4220 = vunpack.c.l.s4 1934713408
        %v4221 = vunpack.c.0.s8 %v4220
        %v4222 = vlaneseq
        %v4223 = vshrl.u32 %v4222, 7
        %v4224 = vsub.s32 %v4221, %v4223
        %v4225 = vrot.slane %v4211, %v4224
        %v4226 = vcombine.high %v4202, 0.0
        %v4227 = vcombine.high %v4209, 0.0
        %v4228 = vcombine.high %v4218, 0.0
        %v4229 = vcombine.high %v4225, 0.0
        %v4230 = vcombine.low %v4202, %v4209
        %v4232 = vunpack.c.l.s4 1983009808
        %v4233 = vunpack.c.0.s8 %v4232
        %v4234 = vlaneseq
        %v4235 = vshrl.u32 %v4234, 7
        %v4236 = vsub.s32 %v4233, %v4235
        %v4237 = vrot.slane %v4230, %v4236
        %v4238 = vcombine.low %v4226, %v4227
        %v4240 = vunpack.c.l.s4 1983009808
        %v4241 = vunpack.c.0.s8 %v4240
        %v4242 = vlaneseq
        %v4243 = vshrl.u32 %v4242, 7
        %v4244 = vsub.s32 %v4241, %v4243
        %v4245 = vrot.slane %v4238, %v4244
        %v4246 = vcombine.low %v4218, %v4225
        %v4248 = vunpack.c.l.s4 1983009808
        %v4249 = vunpack.c.0.s8 %v4248
        %v4250 = vlaneseq
        %v4251 = vshrl.u32 %v4250, 7
        %v4252 = vsub.s32 %v4249, %v4251
        %v4253 = vrot.slane %v4246, %v4252
        %v4254 = vcombine.low %v4228, %v4229
        %v4256 = vunpack.c.l.s4 1983009808
        %v4257 = vunpack.c.0.s8 %v4256
        %v4258 = vlaneseq
        %v4259 = vshrl.u32 %v4258, 7
        %v4260 = vsub.s32 %v4257, %v4259
        %v4261 = vrot.slane %v4254, %v4260
        %v4262 = vcombine.low %v4237, %v4245
        %v4263 = vcombine.high %v4237, %v4245
        %v4265 = vunpack.c.l.s4 1934713408
        %v4266 = vunpack.c.0.s8 %v4265
        %v4267 = vlaneseq
        %v4268 = vshrl.u32 %v4267, 7
        %v4269 = vsub.s32 %v4266, %v4268
        %v4270 = vrot.slane %v4262, %v4269
        %v4272 = vunpack.c.l.s4 1934713408
        %v4273 = vunpack.c.0.s8 %v4272
        %v4274 = vlaneseq
        %v4275 = vshrl.u32 %v4274, 7
        %v4276 = vsub.s32 %v4273, %v4275
        %v4277 = vrot.slane %v4263, %v4276
        %v4278 = vcombine.low %v4253, %v4261
        %v4279 = vcombine.high %v4253, %v4261
        %v4281 = vunpack.c.l.s4 1934713408
        %v4282 = vunpack.c.0.s8 %v4281
        %v4283 = vlaneseq
        %v4284 = vshrl.u32 %v4283, 7
        %v4285 = vsub.s32 %v4282, %v4284
        %v4286 = vrot.slane %v4278, %v4285
        %v4288 = vunpack.c.l.s4 1934713408
        %v4289 = vunpack.c.0.s8 %v4288
        %v4290 = vlaneseq
        %v4291 = vshrl.u32 %v4290, 7
        %v4292 = vsub.s32 %v4289, %v4291
        %v4293 = vrot.slane %v4279, %v4292
        %v4294 = vcombine.low %v4270, %v4286
        %v4295 = vcombine.high %v4270, %v4286
        %v4296 = vcombine.low %v4277, %v4293
        %v4297 = vcombine.high %v4277, %v4293
        %4299 = vrot.lane.b32.xlu0 %v4295, 8
        %v4300 = vpop.permute.xlu0 %4299
        %4303 = vrot.lane.b32.xlu0 %v4296, 16
        %v4304 = vpop.permute.xlu0 %4303
        %4307 = vrot.lane.b32.xlu0 %v4297, 24
        %v4308 = vpop.permute.xlu0 %4307
        %v4310 = vsel %vm2348, %v4294, %v4300
        %v4311 = vsel %vm3166, %v4310, %v4304
        %v4312 = vsel %vm3168, %v4311, %v4308
        %v4313 = vld [vmem:[%s47] sm:$0xff]
        %v4314 = vld [vmem:[%s47 + $0x8] sm:$0xff]
        %v4315 = vld [vmem:[%s47 + $0x10] sm:$0xff]
        %v4316 = vld [vmem:[%s47 + $0x18] sm:$0xff]
        %v4317 = vld [vmem:[%s49] sm:$0x1]
        %v4319 = vlaneseq
        %v4320 = vshrl.u32 %v4319, 7
        %v4321 = vsub.s32 0, %v4320
        %v4322 = vrot.slane %v4317, %v4321
        %v4325 = vsel %vm2074, %v4312, 0
        %4327 = vmatprep.subr.mxu0 0.0
        %4328 = vmatpush1.msra.mxu0 %v4313
        %4329 = vmatprep.subr.mxu0 0.0
        %4330 = vmatpush1.msra.mxu0 %v4314
        %4331 = vmatprep.subr.mxu0 0.0
        %4332 = vmatpush1.msra.mxu0 %v4315
        %4333 = vmatprep.subr.mxu0 0.0
        %4334 = vmatpush1.msra.mxu0 %v4316
        %4335 = vmatprep.subr.mxu0 0.0
        %4336 = vmatpush1.msra.mxu0 0.0
        %4337 = vmatprep.subr.mxu0 0.0
        %4338 = vmatpush1.msra.mxu0 0.0
        %4339 = vmatprep.subr.mxu0 0.0
        %4340 = vmatpush1.msra.mxu0 0.0
        %4341 = vmatprep.subr.mxu0 0.0
        %4342 = vmatpush1.msra.mxu0 0.0
        %4343 = vmatprep.subr.mxu0 0.0
        %4344 = vmatpush1.msra.mxu0 0.0
        %4345 = vmatprep.subr.mxu0 0.0
        %4346 = vmatpush1.msra.mxu0 0.0
        %4347 = vmatprep.subr.mxu0 0.0
        %4348 = vmatpush1.msra.mxu0 0.0
        %4349 = vmatprep.subr.mxu0 0.0
        %4350 = vmatpush1.msra.mxu0 0.0
        %4351 = vmatprep.subr.mxu0 0.0
        %4352 = vmatpush1.msra.mxu0 0.0
        %4353 = vmatprep.subr.mxu0 0.0
        %4354 = vmatpush1.msra.mxu0 0.0
        %4355 = vmatprep.subr.mxu0 0.0
        %4356 = vmatpush1.msra.mxu0 0.0
        %4357 = vmatprep.subr.mxu0 0.0
        %4358 = vmatpush1.msra.mxu0 0.0
        %4359 = vmatprep.subr.mxu0 0.0
        %4360 = vmatpush1.msra.mxu0 0.0
        %4361 = vmatprep.subr.mxu0 0.0
        %4362 = vmatpush1.msra.mxu0 0.0
        %4363 = vmatprep.subr.mxu0 0.0
        %4364 = vmatpush1.msra.mxu0 0.0
        %4365 = vmatprep.subr.mxu0 0.0
        %4366 = vmatpush1.msra.mxu0 0.0
        %4367 = vmatprep.subr.mxu0 0.0
        %4368 = vmatpush1.msra.mxu0 0.0
        %4369 = vmatprep.subr.mxu0 0.0
        %4370 = vmatpush1.msra.mxu0 0.0
        %4371 = vmatprep.subr.mxu0 0.0
        %4372 = vmatpush1.msra.mxu0 0.0
        %4373 = vmatprep.subr.mxu0 0.0
        %4374 = vmatpush1.msra.mxu0 0.0
        %4375 = vmatprep.subr.mxu0 0.0
        %4376 = vmatpush1.msra.mxu0 0.0
        %4377 = vmatprep.subr.mxu0 0.0
        %4378 = vmatpush1.msra.mxu0 0.0
        %4379 = vmatprep.subr.mxu0 0.0
        %4380 = vmatpush1.msra.mxu0 0.0
        %4381 = vmatprep.subr.mxu0 0.0
        %4382 = vmatpush1.msra.mxu0 0.0
        %4383 = vmatprep.subr.mxu0 0.0
        %4384 = vmatpush1.msra.mxu0 0.0
        %4385 = vmatprep.subr.mxu0 0.0
        %4386 = vmatpush1.msra.mxu0 0.0
        %4387 = vmatprep.subr.mxu0 0.0
        %4388 = vmatpush1.msra.mxu0 0.0
        %4389 = vmatprep.subr.mxu0 0.0
        %4390 = vmatpush1.msra.mxu0 0.0
        %4391 = vmatprep.mubr.f32.mxu0 0.0
        %4392 = vmatmul.mubr.f32.gmra.mrb[0].mxu0 %v4325
        %v4393 = vpop.f32.mrb[0].mxu0
        %v4394 = vadd.f32 %v4322, %v4393
        %v4395 = vpop.f32.mrb[0].mxu0
        %4396 = vdwg.mxu0
        %v4397 = vadd.f32 %v3254, %v4394
        %v4398 = vld [vmem:[%s51] sm:$0x1]
        %v4399 = vld [vmem:[%s53] sm:$0x1]
        %v4400 = vsel %vm2074, %v4397, 0.0
        %4401 = vadd.xlane.f32.xlu0 %v4400
        %v4402 = vpop.xlane.xlu0 %4401
        %v4403 = vmul.f32 %v4402, %v2078
        %v4404 = vsub.f32 %v4397, %v4403
        %v4405 = vmul.f32 %v4404, %v4404
        %v4406 = vsel %vm2074, %v4405, 0.0
        %4407 = vadd.xlane.f32.xlu0 %v4406
        %v4408 = vpop.xlane.xlu0 %4407
        %v4409 = vmul.f32 %v4408, %v2078
        %v4410 = vadd.f32 %v4409, 1e-05
        %v4411 = vrsqrt.pop %v4410
        %v4412 = vmul.f32 %v4404, %v4411
        %v4414 = vlaneseq
        %v4415 = vshrl.u32 %v4414, 7
        %v4416 = vsub.s32 0, %v4415
        %v4417 = vrot.slane %v4398, %v4416
        %v4419 = vmul.f32 %v4412, %v4417
        %v4421 = vlaneseq
        %v4422 = vshrl.u32 %v4421, 7
        %v4423 = vsub.s32 0, %v4422
        %v4424 = vrot.slane %v4399, %v4423
        %v4426 = vadd.f32 %v4419, %v4424
        %v4427 = vld [vmem:[%s55] sm:$0xff]
        %v4428 = vld [vmem:[%s55 + $0x8] sm:$0xff]
        %v4429 = vld [vmem:[%s55 + $0x10] sm:$0xff]
        %v4430 = vld [vmem:[%s55 + $0x18] sm:$0xff]
        %v4431 = vld [vmem:[%s57] sm:$0x1]
        %v4433 = vlaneseq
        %v4434 = vshrl.u32 %v4433, 7
        %v4435 = vsub.s32 0, %v4434
        %v4436 = vrot.slane %v4431, %v4435
        %v4439 = vsel %vm2074, %v4426, 0
        %4441 = vmatprep.subr.mxu0 0.0
        %4442 = vmatpush1.msra.mxu0 %v4427
        %4443 = vmatprep.subr.mxu0 0.0
        %4444 = vmatpush1.msra.mxu0 %v4428
        %4445 = vmatprep.subr.mxu0 0.0
        %4446 = vmatpush1.msra.mxu0 %v4429
        %4447 = vmatprep.subr.mxu0 0.0
        %4448 = vmatpush1.msra.mxu0 %v4430
        %4449 = vmatprep.subr.mxu0 0.0
        %4450 = vmatpush1.msra.mxu0 0.0
        %4451 = vmatprep.subr.mxu0 0.0
        %4452 = vmatpush1.msra.mxu0 0.0
        %4453 = vmatprep.subr.mxu0 0.0
        %4454 = vmatpush1.msra.mxu0 0.0
        %4455 = vmatprep.subr.mxu0 0.0
        %4456 = vmatpush1.msra.mxu0 0.0
        %4457 = vmatprep.subr.mxu0 0.0
        %4458 = vmatpush1.msra.mxu0 0.0
        %4459 = vmatprep.subr.mxu0 0.0
        %4460 = vmatpush1.msra.mxu0 0.0
        %4461 = vmatprep.subr.mxu0 0.0
        %4462 = vmatpush1.msra.mxu0 0.0
        %4463 = vmatprep.subr.mxu0 0.0
        %4464 = vmatpush1.msra.mxu0 0.0
        %4465 = vmatprep.subr.mxu0 0.0
        %4466 = vmatpush1.msra.mxu0 0.0
        %4467 = vmatprep.subr.mxu0 0.0
        %4468 = vmatpush1.msra.mxu0 0.0
        %4469 = vmatprep.subr.mxu0 0.0
        %4470 = vmatpush1.msra.mxu0 0.0
        %4471 = vmatprep.subr.mxu0 0.0
        %4472 = vmatpush1.msra.mxu0 0.0
        %4473 = vmatprep.subr.mxu0 0.0
        %4474 = vmatpush1.msra.mxu0 0.0
        %4475 = vmatprep.subr.mxu0 0.0
        %4476 = vmatpush1.msra.mxu0 0.0
        %4477 = vmatprep.subr.mxu0 0.0
        %4478 = vmatpush1.msra.mxu0 0.0
        %4479 = vmatprep.subr.mxu0 0.0
        %4480 = vmatpush1.msra.mxu0 0.0
        %4481 = vmatprep.subr.mxu0 0.0
        %4482 = vmatpush1.msra.mxu0 0.0
        %4483 = vmatprep.subr.mxu0 0.0
        %4484 = vmatpush1.msra.mxu0 0.0
        %4485 = vmatprep.subr.mxu0 0.0
        %4486 = vmatpush1.msra.mxu0 0.0
        %4487 = vmatprep.subr.mxu0 0.0
        %4488 = vmatpush1.msra.mxu0 0.0
        %4489 = vmatprep.subr.mxu0 0.0
        %4490 = vmatpush1.msra.mxu0 0.0
        %4491 = vmatprep.subr.mxu0 0.0
        %4492 = vmatpush1.msra.mxu0 0.0
        %4493 = vmatprep.subr.mxu0 0.0
        %4494 = vmatpush1.msra.mxu0 0.0
        %4495 = vmatprep.subr.mxu0 0.0
        %4496 = vmatpush1.msra.mxu0 0.0
        %4497 = vmatprep.subr.mxu0 0.0
        %4498 = vmatpush1.msra.mxu0 0.0
        %4499 = vmatprep.subr.mxu0 0.0
        %4500 = vmatpush1.msra.mxu0 0.0
        %4501 = vmatprep.subr.mxu0 0.0
        %4502 = vmatpush1.msra.mxu0 0.0
        %4503 = vmatprep.subr.mxu0 0.0
        %4504 = vmatpush1.msra.mxu0 0.0
        %4505 = vmatprep.mubr.f32.mxu0 0.0
        %4506 = vmatmul.mubr.f32.gmra.mrb[0].mxu0 %v4439
        %v4507 = vpop.f32.mrb[0].mxu0
        %v4508 = vadd.f32 %v4436, %v4507
        %v4509 = vpop.f32.mrb[0].mxu0
        %4510 = vdwg.mxu0
        %v4511 = vsub.f32 0.0, %v4508
        %v4512 = vmul.f32 %v4511, 1.442695
        %v4513 = vpow.pop %v4512
        %v4514 = vadd.f32 %v4513, 1.0
        %v4515 = vrcp.pop %v4514
        %v4516 = vmul.f32 %v4508, %v4515
        %v4517 = vld [vmem:[%s59] sm:$0xff]
        %v4518 = vld [vmem:[%s59 + $0x8] sm:$0xff]
        %v4519 = vld [vmem:[%s59 + $0x10] sm:$0xff]
        %v4520 = vld [vmem:[%s59 + $0x18] sm:$0xff]
        %v4521 = vld [vmem:[%s59 + $0x20] sm:$0xff]
        %v4522 = vld [vmem:[%s59 + $0x28] sm:$0xff]
        %v4523 = vld [vmem:[%s59 + $0x30] sm:$0xff]
        %v4524 = vld [vmem:[%s59 + $0x38] sm:$0xff]
        %v4525 = vld [vmem:[%s59 + $0x40] sm:$0xff]
        %v4526 = vld [vmem:[%s59 + $0x48] sm:$0xff]
        %v4527 = vld [vmem:[%s59 + $0x50] sm:$0xff]
        %v4528 = vld [vmem:[%s59 + $0x58] sm:$0xff]
        %v4529 = vld [vmem:[%s59 + $0x60] sm:$0xff]
        %v4530 = vld [vmem:[%s59 + $0x68] sm:$0xff]
        %v4531 = vld [vmem:[%s59 + $0x70] sm:$0xff]
        %v4532 = vld [vmem:[%s59 + $0x78] sm:$0xff]
        %v4533 = vld [vmem:[%s61] sm:$0x1]
        %v4535 = vlaneseq
        %v4536 = vshrl.u32 %v4535, 7
        %v4537 = vsub.s32 0, %v4536
        %v4538 = vrot.slane %v4533, %v4537
        %4540 = vmatprep.subr.mxu0 0.0
        %4541 = vmatpush1.msra.mxu0 %v4517
        %4542 = vmatprep.subr.mxu0 0.0
        %4543 = vmatpush1.msra.mxu0 %v4518
        %4544 = vmatprep.subr.mxu0 0.0
        %4545 = vmatpush1.msra.mxu0 %v4519
        %4546 = vmatprep.subr.mxu0 0.0
        %4547 = vmatpush1.msra.mxu0 %v4520
        %4548 = vmatprep.subr.mxu0 0.0
        %4549 = vmatpush1.msra.mxu0 %v4521
        %4550 = vmatprep.subr.mxu0 0.0
        %4551 = vmatpush1.msra.mxu0 %v4522
        %4552 = vmatprep.subr.mxu0 0.0
        %4553 = vmatpush1.msra.mxu0 %v4523
        %4554 = vmatprep.subr.mxu0 0.0
        %4555 = vmatpush1.msra.mxu0 %v4524
        %4556 = vmatprep.subr.mxu0 0.0
        %4557 = vmatpush1.msra.mxu0 %v4525
        %4558 = vmatprep.subr.mxu0 0.0
        %4559 = vmatpush1.msra.mxu0 %v4526
        %4560 = vmatprep.subr.mxu0 0.0
        %4561 = vmatpush1.msra.mxu0 %v4527
        %4562 = vmatprep.subr.mxu0 0.0
        %4563 = vmatpush1.msra.mxu0 %v4528
        %4564 = vmatprep.subr.mxu0 0.0
        %4565 = vmatpush1.msra.mxu0 %v4529
        %4566 = vmatprep.subr.mxu0 0.0
        %4567 = vmatpush1.msra.mxu0 %v4530
        %4568 = vmatprep.subr.mxu0 0.0
        %4569 = vmatpush1.msra.mxu0 %v4531
        %4570 = vmatprep.subr.mxu0 0.0
        %4571 = vmatpush1.msra.mxu0 %v4532
        %4572 = vmatprep.subr.mxu0 0.0
        %4573 = vmatpush1.msra.mxu0 0.0
        %4574 = vmatprep.subr.mxu0 0.0
        %4575 = vmatpush1.msra.mxu0 0.0
        %4576 = vmatprep.subr.mxu0 0.0
        %4577 = vmatpush1.msra.mxu0 0.0
        %4578 = vmatprep.subr.mxu0 0.0
        %4579 = vmatpush1.msra.mxu0 0.0
        %4580 = vmatprep.subr.mxu0 0.0
        %4581 = vmatpush1.msra.mxu0 0.0
        %4582 = vmatprep.subr.mxu0 0.0
        %4583 = vmatpush1.msra.mxu0 0.0
        %4584 = vmatprep.subr.mxu0 0.0
        %4585 = vmatpush1.msra.mxu0 0.0
        %4586 = vmatprep.subr.mxu0 0.0
        %4587 = vmatpush1.msra.mxu0 0.0
        %4588 = vmatprep.subr.mxu0 0.0
        %4589 = vmatpush1.msra.mxu0 0.0
        %4590 = vmatprep.subr.mxu0 0.0
        %4591 = vmatpush1.msra.mxu0 0.0
        %4592 = vmatprep.subr.mxu0 0.0
        %4593 = vmatpush1.msra.mxu0 0.0
        %4594 = vmatprep.subr.mxu0 0.0
        %4595 = vmatpush1.msra.mxu0 0.0
        %4596 = vmatprep.subr.mxu0 0.0
        %4597 = vmatpush1.msra.mxu0 0.0
        %4598 = vmatprep.subr.mxu0 0.0
        %4599 = vmatpush1.msra.mxu0 0.0
        %4600 = vmatprep.subr.mxu0 0.0
        %4601 = vmatpush1.msra.mxu0 0.0
        %4602 = vmatprep.subr.mxu0 0.0
        %4603 = vmatpush1.msra.mxu0 0.0
        %4604 = vmatprep.mubr.f32.mxu0 0.0
        %4605 = vmatmul.mubr.f32.gmra.mrb[0].mxu0 %v4516
        %v4606 = vpop.f32.mrb[0].mxu0
        %v4607 = vadd.f32 %v4538, %v4606
        %v4608 = vpop.f32.mrb[0].mxu0
        %4609 = vdwg.mxu0
        %v4610 = vadd.f32 %v4397, %v4607
        %4611 = vst.msk [vmem:[%s987] sm:$0xff] %vm2074, %v4610
        %s4612 = sand.u32 %s765, 1
        %s4613 = scalar_lea.sflag [#allocation8], %s4612
        %s4614 = sand.u32 %s765, 1
        %s4615 = smul.addr %s4614, 8
        %s4616 = scalar_lea.vmem [#allocation7], %s4615
        // Predicated region
        $region149: #{tpu_custom_call.1} parent=143 // pred_check
          %p4617 = pneg %p775
        $region150: #{tpu_custom_call.1} parent=143 // pred_check_branch
          %4619 = sbr.rel (%p4617) target = $region152
        $region151: #{tpu_custom_call.1} parent=143 // pred_region
          %s4621 = ssub.s32 128, 128
          %4622 = vsyncadd %s4613, %s4621
          %s4623 = sadd.s32 %s82, %s81
          %s4624 = smul.addr %s4623, 128
          %s4625 = scalar_lea.hbm %s63, %s4624
          %s4627 = sshll.u32 %s4616, 4
          %s4628 = int_to_ptr.vmem [resolvable:$true] %s4627
          %4630 = dma.vmem_to_hbm [thread:$0]  %s4628, 128, %s4625, %s4613
        $region152: #{tpu_custom_call.1} parent=143 // pred_fallthru
          _
      $region144: #{tpu_custom_call.1} parent=5 // pred_fallthru
        _
      %p4631 = scmp.le.s32.totalorder 2, %s72
      // Predicated region
      $region153: #{tpu_custom_call.1} parent=5 // pred_check
        %p4632 = pneg %p4631
      $region154: #{tpu_custom_call.1} parent=5 // pred_check_branch
        %4634 = sbr.rel (%p4632) target = $region156
      $region155: #{tpu_custom_call.1} parent=5 // pred_region
        %s4635 = ssub.s32 %s72, 2
        // Predicated region
        $region157: #{tpu_custom_call.1} parent=155 // pred_check
          %p4636 = pneg %p781
        $region158: #{tpu_custom_call.1} parent=155 // pred_check_branch
          %4638 = sbr.rel (%p4636) target = $region160
        $region159: #{tpu_custom_call.1} parent=155 // pred_region
          %s4639 = sand.u32 %s766, 1
          %s4640 = scalar_lea.sflag [#allocation8], %s4639
          %s4641 = sand.u32 %s766, 1
          %s4642 = smul.addr %s4641, 8
          %s4643 = scalar_lea.vmem [#allocation7], %s4642
          %4644 = dma.done %s4640, 128
        $region160: #{tpu_custom_call.1} parent=155 // pred_fallthru
          _
      $region156: #{tpu_custom_call.1} parent=5 // pred_fallthru
        _
    $region6: #{tpu_custom_call.1} parent=1 // loop_footer
      %s76 = sadd.s32 1, %s72
    $region7: #{tpu_custom_call.1} parent=1 // loop_footer_branch
      %71 = sbr.rel target = $region3
    $region8: #{tpu_custom_call.1} parent=1 // loop_exit
      _
    %4645 = vsyncpa [#allocation8], 1
    %s4646 = scalar_lea.sflag [#allocation8], 1
    %4647 = vsyncpa %s4646, 1

</llo_original>
